<compile_context>
chip_gen: v6e
topology: v6e:2x2x1
jax: 0.10.0
libtpu: 0.0.40
codegen_flags: <defaults>
</compile_context>

<pallas_src>
import functools

import jax
import jax.numpy as jnp
from jax.experimental import pallas as pl
from jax.experimental.pallas import tpu as pltpu

ACT_DTYPE = jnp.bfloat16       # HBM dtype for activations between kernels
EXACT_GELU = False             # True -> erf-based GELU (tight torch parity, VPU-heavy)
APPROX_RECIP = True            # False -> exact divide in SiLU (tight torch parity)

_SQRT1_2 = 0.7071067811865476
_GELU_C = 0.7978845608028654   # sqrt(2/pi)


# --------------------------------------------------------------------------
# Compiler params / tiling helpers
# --------------------------------------------------------------------------
@functools.lru_cache(maxsize=None)
def _vmem_limit_bytes():
    # Generation-aware scoped-VMEM limit (v5e/v6e: 128 MiB physical, v7x: 64 MiB).
    try:
        cap = int(pltpu.get_tpu_info().vmem_capacity_bytes)
    except Exception:
        cap = 128 * 1024 * 1024
    return max(32 * 1024 * 1024, min(cap * 3 // 4, 100 * 1024 * 1024))


def _cparams(n_axes):
    return pltpu.CompilerParams(
        dimension_semantics=("parallel",) * n_axes,   # independent grid points
        vmem_limit_bytes=_vmem_limit_bytes(),
    )


def _full(shape, n_grid):
    zeros = (0,) * len(shape)
    if n_grid == 1:
        return pl.BlockSpec(shape, lambda n: zeros)
    return pl.BlockSpec(shape, lambda n, t: zeros)


def _spatial_tile(hw, max_tile=8192):
    """Largest multiple-of-128 divisor of hw that is <= max_tile."""
    if hw % 128 != 0:
        return hw
    if hw <= max_tile:
        return hw
    t = max_tile - (max_tile % 128)
    while t >= 128:
        if hw % t == 0:
            return t
        t -= 128
    return 128


# --------------------------------------------------------------------------
# In-kernel elementwise / tap helpers (VPU + EUP + XLU only)
# --------------------------------------------------------------------------
def _erf(x):
    # Abramowitz & Stegun 7.1.26 (max abs err ~1.5e-7)
    p = 0.3275911
    a1, a2, a3, a4, a5 = 0.254829592, -0.284496736, 1.421413741, -1.453152027, 1.061405429
    s = jnp.where(x >= 0.0, 1.0, -1.0)
    z = jnp.abs(x)
    t = 1.0 / (1.0 + p * z)
    poly = t * (a1 + t * (a2 + t * (a3 + t * (a4 + t * a5))))
    return s * (1.0 - poly * jnp.exp(-z * z))


def _gelu(x):
    if EXACT_GELU:
        return 0.5 * x * (1.0 + _erf(x * _SQRT1_2))
    # tanh approximation: transcendental runs on the EUP slot, ~8 fewer VPU ops/elem
    return 0.5 * x * (1.0 + jnp.tanh(_GELU_C * (x + 0.044715 * (x * x * x))))


def _silu(x):
    if APPROX_RECIP:
        return x * pl.reciprocal(1.0 + jnp.exp(-x), approx=True)
    return x / (1.0 + jnp.exp(-x))


def _rolled_tap(a, k, width):
    """Shifted copy of (C, HW) for tap k = kh*3+kw of a 'same' 3x3 conv (XLU roll)."""
    kh, kw = k // 3, k % 3
    s = (kh - 1) * width + (kw - 1)
    if s == 0:
        return a
    return pltpu.roll(a, shift=(-s) % a.shape[1], axis=1)


def _stack_taps(a, m, width):
    """(C, HW) -> (9C, HW): masked shifted taps stacked on the contraction axis.

    The per-tap validity mask m (9, HW) zeroes out-of-image source pixels => in-kernel
    zero padding.  NOTE: the mask must stay on the operand (not the matmul result).
    """
    return jnp.concatenate(
        [_rolled_tap(a, k, width) * m[k:k + 1, :] for k in range(9)], axis=0)


def _dw_conv3(a, m, w_dw, width):
    """Depthwise 'same' 3x3 conv: per-channel multiply-accumulate over the 9 taps."""
    acc = a * m[0:1, :] * w_dw[:, 0:1] if False else None  # placeholder, built below
    acc = _rolled_tap(a, 0, width) * m[0:1, :] * w_dw[:, 0:1]
    for k in range(1, 9):
        acc = acc + _rolled_tap(a, k, width) * m[k:k + 1, :] * w_dw[:, k:k + 1]
    return acc


# --------------------------------------------------------------------------
# Kernels
# --------------------------------------------------------------------------
def _pw_multi_bn_silu_kernel(n_ops, *refs):
    """1x1 conv over the (virtual) channel-concat of n_ops operands -> BN -> SiLU."""
    a_refs = refs[:n_ops]
    w_refs = refs[n_ops:2 * n_ops]
    sc_ref, sh_ref, o_ref = refs[2 * n_ops], refs[2 * n_ops + 1], refs[2 * n_ops + 2]
    y = jnp.dot(w_refs[0][...], a_refs[0][0].astype(jnp.float32),
                preferred_element_type=jnp.float32)
    for a_ref, w_ref in zip(a_refs[1:], w_refs[1:]):
        y = y + jnp.dot(w_ref[...], a_ref[0].astype(jnp.float32),
                        preferred_element_type=jnp.float32)
    y = y * sc_ref[...] + sh_ref[...]
    o_ref[0] = _silu(y).astype(o_ref.dtype)


def _bottleneck_fused_kernel(width, shortcut,
                             x_ref, m_ref,
                             wc1_ref, sc1_ref, sh1_ref,
                             wdw_ref, bdw_ref, scd_ref, shd_ref,
                             w1_ref, b1_ref, s1_ref, h1_ref,
                             w2_ref, b2_ref, s2_ref, h2_ref,
                             wup_ref, scu_ref, shu_ref,
                             o_ref):
    """Entire Bottleneck_CMUNeXtB(c, c, shortcut, e=1.0) for one image, fully in VMEM."""
    x = x_ref[0].astype(jnp.float32)                 # (c, HW)
    m = m_ref[...].astype(jnp.float32)               # (9, HW) tap validity masks

    # cv1: 3x3 'same' conv -> BN -> SiLU  (single stacked-contraction MXU matmul)
    y = jnp.dot(wc1_ref[...], _stack_taps(x, m, width),
                preferred_element_type=jnp.float32)
    y = _silu(y * sc1_ref[...] + sh1_ref[...])

    # CMUNeXt block: Residual(dw3x3 + bias -> GELU -> BN)
    d = _dw_conv3(y, m, wdw_ref[...], width)
    z = _gelu(d + bdw_ref[...]) * scd_ref[...] + shd_ref[...] + y

    # pw1: 1x1 c -> 4c (+bias) -> GELU -> BN   (the (4c, HW) tensor lives only in VMEM)
    u = jnp.dot(w1_ref[...], z, preferred_element_type=jnp.float32) + b1_ref[...]
    u = _gelu(u) * s1_ref[...] + h1_ref[...]
    # pw2: 1x1 4c -> c (+bias) -> GELU -> BN
    v = jnp.dot(w2_ref[...], u, preferred_element_type=jnp.float32) + b2_ref[...]
    v = _gelu(v) * s2_ref[...] + h2_ref[...]

    # up: 3x3 'same' conv -> BN -> SiLU  (+ optional bottleneck shortcut)
    o = jnp.dot(wup_ref[...], _stack_taps(v, m, width),
                preferred_element_type=jnp.float32)
    o = _silu(o * scu_ref[...] + shu_ref[...])
    if shortcut:
        o = o + x
    o_ref[0] = o.astype(o_ref.dtype)


# --------------------------------------------------------------------------
# pallas_call wrappers
# --------------------------------------------------------------------------
def pw_concat_conv_bn_silu(operands, weights, scale, shift, out_dtype):
    """1x1 conv over channel-concat(operands) -> BN -> SiLU, split-weight (no concat).

    operands[i]: (N, C_i, HWp);  weights[i]: (Cout, C_i) f32.
    """
    n_ops = len(operands)
    N, _, HWp = operands[0].shape
    Cout = weights[0].shape[0]
    cin_total = sum(int(a.shape[1]) for a in operands)
    T = _spatial_tile(HWp)

    in_specs = [pl.BlockSpec((1, int(a.shape[1]), T), lambda n, t: (n, 0, t))
                for a in operands]
    in_specs += [_full(tuple(w.shape), 2) for w in weights]
    in_specs += [_full((Cout, 1), 2), _full((Cout, 1), 2)]

    act_bytes = sum(int(a.size) * a.dtype.itemsize for a in operands)
    return pl.pallas_call(
        functools.partial(_pw_multi_bn_silu_kernel, n_ops),
        out_shape=jax.ShapeDtypeStruct((N, Cout, HWp), out_dtype),
        grid=(N, HWp // T),
        in_specs=in_specs,
        out_specs=pl.BlockSpec((1, Cout, T), lambda n, t: (n, 0, t)),
        compiler_params=_cparams(2),
        cost_estimate=pl.CostEstimate(
            flops=int(2 * N * HWp * cin_total * Cout),
            transcendentals=int(2 * N * HWp * Cout),
            bytes_accessed=int(act_bytes
                               + N * Cout * HWp * jnp.dtype(out_dtype).itemsize
                               + 4 * Cout * (cin_total + 2))),
    )(*operands, *weights, scale, shift)


def bottleneck_fused(src, chan_blk, masks, p, width, shortcut):
    """Run one fused Bottleneck_CMUNeXtB over src[:, chan_blk*C:(chan_blk+1)*C, :]."""
    N, _, HWp = src.shape
    C = p["cv1_scale"].shape[0]
    C4 = p["w_pw1"].shape[0]
    kernel = functools.partial(_bottleneck_fused_kernel, width, shortcut)

    in_specs = [
        pl.BlockSpec((1, C, HWp), lambda n: (n, chan_blk, 0)),   # channel-offset read
        _full((9, HWp), 1),
        _full((C, 9 * C), 1), _full((C, 1), 1), _full((C, 1), 1),
        _full((C, 9), 1), _full((C, 1), 1), _full((C, 1), 1), _full((C, 1), 1),
        _full((C4, C), 1), _full((C4, 1), 1), _full((C4, 1), 1), _full((C4, 1), 1),
        _full((C, C4), 1), _full((C, 1), 1), _full((C, 1), 1), _full((C, 1), 1),
        _full((C, 9 * C), 1), _full((C, 1), 1), _full((C, 1), 1),
    ]
    act_b = jnp.dtype(src.dtype).itemsize
    return pl.pallas_call(
        kernel,
        out_shape=jax.ShapeDtypeStruct((N, C, HWp), src.dtype),
        grid=(N,),
        in_specs=in_specs,
        out_specs=pl.BlockSpec((1, C, HWp), lambda n: (n, 0, 0)),
        compiler_params=_cparams(1),
        cost_estimate=pl.CostEstimate(
            flops=int(N * HWp * (36 * C * C + 18 * C + 4 * C * C4)),
            transcendentals=int(N * HWp * (6 * C + 2 * C4)),
            bytes_accessed=int(2 * N * C * HWp * act_b + 9 * HWp * act_b
                               + 4 * (18 * C * C + 2 * C * C4 + 22 * C + 3 * C4))),
    )(src, masks,
      p["w_cv1"], p["cv1_scale"], p["cv1_shift"],
      p["w_dw"], p["b_dw"], p["dw_scale"], p["dw_shift"],
      p["w_pw1"], p["b_pw1"], p["pw1_scale"], p["pw1_shift"],
      p["w_pw2"], p["b_pw2"], p["pw2_scale"], p["pw2_shift"],
      p["w_up"], p["up_scale"], p["up_shift"])


# --------------------------------------------------------------------------
# Module forward (C2f_CMUNeXtB, inference mode; BatchNorms folded to affine)
# --------------------------------------------------------------------------
def _make_tap_masks(H, W, HWp, dtype):
    HW = H * W
    hh = jnp.arange(HW, dtype=jnp.int32) // W
    ww = jnp.arange(HW, dtype=jnp.int32) % W
    taps = []
    for dh in (-1, 0, 1):
        for dw in (-1, 0, 1):
            taps.append((hh + dh >= 0) & (hh + dh < H) & (ww + dw >= 0) & (ww + dw < W))
    m = jnp.stack(taps).astype(dtype)                # (9, HW), k = kh*3+kw
    if HWp != HW:
        m = jnp.pad(m, ((0, 0), (0, HWp - HW)))      # padded tail: all taps invalid
    return m


def c2f_cmunextb_forward(x_nchw, params, shortcut=False):
    N, C1, H, W = x_nchw.shape
    HW = H * W
    HWp = -(-HW // 128) * 128                        # lane-dense spatial padding
    c = params["cv1_scale"].shape[0] // 2

    xf = x_nchw.reshape(N, C1, HW)
    if HWp != HW:
        xf = jnp.pad(xf, ((0, 0), (0, 0), (0, HWp - HW)))
    xf = xf.astype(ACT_DTYPE)
    masks = _make_tap_masks(H, W, HWp, ACT_DTYPE)

    # C2f.cv1: 1x1 -> 2c -> BN -> SiLU ; chunk(2, dim=1) is handled by BlockSpec offset
    y01 = pw_concat_conv_bn_silu([xf], [params["w_cv1"]],
                                 params["cv1_scale"], params["cv1_shift"],
                                 out_dtype=ACT_DTYPE)

    outs = []
    for i, mp in enumerate(params["m"]):
        if i == 0:
            if c % 8 == 0:          # read channels [c, 2c) of y01 directly (no copy)
                src, blk = y01, 1
            else:                   # fallback: materialize the slice
                src, blk = y01[:, c:, :], 0
        else:
            src, blk = outs[-1], 0
        outs.append(bottleneck_fused(src, blk, masks, mp, W, shortcut))

    # C2f.cv2: 1x1 over concat([y0, y1, m1, ..., mn]) -> BN -> SiLU, split-weight.
    # y01 already holds [y0 | y1] contiguously, so it is operand 0 with the first 2c
    # weight columns; each bottleneck output is a further operand.
    w_cv2 = params["w_cv2"]
    operands = [y01] + outs
    weights = [w_cv2[:, :2 * c]] + [w_cv2[:, (2 + i) * c:(3 + i) * c]
                                    for i in range(len(outs))]
    out = pw_concat_conv_bn_silu(operands, weights,
                                 params["cv2_scale"], params["cv2_shift"],
                                 out_dtype=x_nchw.dtype)
    if HWp != HW:
        out = out[:, :, :HW]
    return out.reshape(N, -1, H, W)


# --------------------------------------------------------------------------
# Deterministic synthetic parameters (shapes follow the PyTorch __init__)
#
# Weight packing (from PyTorch layouts):
#   standard 3x3 Conv2d weight (Cout, Cin, 3, 3) -> w.permute(0,2,3,1).reshape(Cout, 9*Cin)
#   depthwise 3x3 Conv2d weight (C, 1, 3, 3)     -> w.reshape(C, 9)
#   BatchNorm (inference) -> scale = gamma/sqrt(var+eps), shift = beta - mean*scale
# --------------------------------------------------------------------------
def init_params(key, c1, c2, n=1, e=0.5):
    c = int(c2 * e)
    keys = iter(jax.random.split(key, 64 + 64 * n))

    def nrm(shape, s=0.1):
        return (s * jax.random.normal(next(keys), shape)).astype(jnp.float32)

    def bn(ch, eps=1e-5):
        gamma = 1.0 + nrm((ch, 1))
        beta = nrm((ch, 1))
        mean = nrm((ch, 1))
        var = 0.5 + jax.random.uniform(next(keys), (ch, 1), dtype=jnp.float32)
        scale = gamma / jnp.sqrt(var + eps)
        shift = beta - mean * scale
        return scale, shift

    p = {}
    p["w_cv1"] = nrm((2 * c, c1))                       # Conv2d(c1, 2c, 1, bias=False)
    p["cv1_scale"], p["cv1_shift"] = bn(2 * c)
    p["w_cv2"] = nrm((c2, (2 + n) * c))                 # Conv2d((2+n)c, c2, 1, bias=False)
    p["cv2_scale"], p["cv2_shift"] = bn(c2)

    ms = []
    for _ in range(n):                                  # Bottleneck_CMUNeXtB(c, c, e=1.0)
        mp = {}
        mp["w_cv1"] = nrm((c, 9 * c))                   # Conv(c, c, 3), packed taps
        mp["cv1_scale"], mp["cv1_shift"] = bn(c)
        mp["w_dw"] = nrm((c, 9))                        # Conv2d(c, c, 3, groups=c) + bias
        mp["b_dw"] = nrm((c, 1))
        mp["dw_scale"], mp["dw_shift"] = bn(c)
        mp["w_pw1"] = nrm((4 * c, c))                   # Conv2d(c, 4c, 1) + bias
        mp["b_pw1"] = nrm((4 * c, 1))
        mp["pw1_scale"], mp["pw1_shift"] = bn(4 * c)
        mp["w_pw2"] = nrm((c, 4 * c))                   # Conv2d(4c, c, 1) + bias
        mp["b_pw2"] = nrm((c, 1))
        mp["pw2_scale"], mp["pw2_shift"] = bn(c)
        mp["w_up"] = nrm((c, 9 * c))                    # up: Conv(c, c, 3), packed taps
        mp["up_scale"], mp["up_shift"] = bn(c)
        ms.append(mp)
    p["m"] = ms
    return p


if __name__ == "__main__":
    # c1 = c2 = 16 -> hidden width c = 8; bottleneck runs at c and 4c = 32 channels.
    N, C, H, W = 2, 16, 16, 16
    key = jax.random.PRNGKey(0)
    kx, kp = jax.random.split(key)
    x = jax.random.normal(kx, (N, C, H, W), dtype=jnp.float32)
    params = init_params(kp, C, C, n=1, e=0.5)

    fwd = jax.jit(functools.partial(c2f_cmunextb_forward, shortcut=False))
    out = jax.block_until_ready(fwd(x, params))
    assert out.shape == (N, C, H, W) and out.dtype == jnp.float32
    assert bool(jnp.all(jnp.isfinite(out)))

    # bottleneck-shortcut variant (exercises the in-kernel residual add)
    out_s = jax.block_until_ready(
        jax.jit(functools.partial(c2f_cmunextb_forward, shortcut=True))(x, params))
    assert out_s.shape == (N, C, H, W)
    assert bool(jnp.all(jnp.isfinite(out_s)))

    # n=2: chained fused bottlenecks + 3-operand split-weight cv2 (concat never built)
    params2 = init_params(jax.random.PRNGKey(1), C, C, n=2, e=0.5)
    out2 = jax.block_until_ready(
        jax.jit(functools.partial(c2f_cmunextb_forward, shortcut=False))(x, params2))
    assert out2.shape == (N, C, H, W)
    assert bool(jnp.all(jnp.isfinite(out2)))

    print("KERNEL_OK")
</pallas_src>

<mosaic_0001>
module attributes {stable_mosaic.version = 11 : i64} {
  func.func @_pw_multi_bn_silu_kernel(%arg0: i32, %arg1: i32, %arg2: memref<1x16x256xbf16, #tpu.memory_space<vmem>>, %arg3: memref<16x16xf32, #tpu.memory_space<vmem>>, %arg4: memref<16x1xf32, #tpu.memory_space<vmem>>, %arg5: memref<16x1xf32, #tpu.memory_space<vmem>>, %arg6: memref<1x16x256xbf16, #tpu.memory_space<vmem>>) attributes {dimension_semantics = [#tpu.dimension_semantics<parallel>, #tpu.dimension_semantics<parallel>], iteration_bounds = array<i64: 2, 1>, scalar_prefetch = 0 : i64, scratch_operands = 0 : i64, tpu.core_type = #tpu.core_type<tc>, window_params = [{transform_indices = @transform_0, window_bounds = array<i64: 1, 16, 256>}, {pipeline_mode = #tpu.pipeline_mode<synchronous>, transform_indices = @transform_1, window_bounds = array<i64: 16, 16>}, {pipeline_mode = #tpu.pipeline_mode<synchronous>, transform_indices = @transform_2, window_bounds = array<i64: 16, 1>}, {pipeline_mode = #tpu.pipeline_mode<synchronous>, transform_indices = @transform_3, window_bounds = array<i64: 16, 1>}, {transform_indices = @transform_4, window_bounds = array<i64: 1, 16, 256>}]} {
    %c0 = arith.constant 0 : index
    %c0_0 = arith.constant 0 : index
    %0 = vector.load %arg3[%c0, %c0_0] : memref<16x16xf32, #tpu.memory_space<vmem>>, vector<16x16xf32>
    %c0_1 = arith.constant 0 : index
    %c0_2 = arith.constant 0 : index
    %c0_3 = arith.constant 0 : index
    %1 = vector.load %arg2[%c0_1, %c0_2, %c0_3] : memref<1x16x256xbf16, #tpu.memory_space<vmem>>, vector<1x16x256xbf16>
    %2 = vector.shape_cast %1 : vector<1x16x256xbf16> to vector<16x256xbf16>
    %3 = arith.extf %2 : vector<16x256xbf16> to vector<16x256xf32>
    %cst = arith.constant dense<0.000000e+00> : vector<16x256xf32>
    %4 = tpu.matmul %0, %3, %cst {dimension_numbers = #tpu.dot_dimension_numbers<[1], [0], [0], [1], [0, 0, 1, 1], [], []>} : vector<16x16xf32>, vector<16x256xf32>, vector<16x256xf32> -> vector<16x256xf32>
    %c0_4 = arith.constant 0 : index
    %c0_5 = arith.constant 0 : index
    %5 = vector.load %arg4[%c0_4, %c0_5] : memref<16x1xf32, #tpu.memory_space<vmem>>, vector<16x1xf32>
    %6 = vector.broadcast %5 : vector<16x1xf32> to vector<16x256xf32>
    %7 = arith.mulf %4, %6 : vector<16x256xf32>
    %c0_6 = arith.constant 0 : index
    %c0_7 = arith.constant 0 : index
    %8 = vector.load %arg5[%c0_6, %c0_7] : memref<16x1xf32, #tpu.memory_space<vmem>>, vector<16x1xf32>
    %9 = vector.broadcast %8 : vector<16x1xf32> to vector<16x256xf32>
    %10 = arith.addf %7, %9 : vector<16x256xf32>
    %cst_8 = arith.constant 0.000000e+00 : f32
    %11 = vector.broadcast %cst_8 : f32 to vector<16x256xf32>
    %12 = arith.subf %11, %10 : vector<16x256xf32>
    %13 = math.exp %12 : vector<16x256xf32>
    %cst_9 = arith.constant 1.000000e+00 : f32
    %14 = vector.broadcast %cst_9 : f32 to vector<16x256xf32>
    %15 = arith.addf %14, %13 : vector<16x256xf32>
    %16 = tpu.reciprocal %15 {approx = true} : vector<16x256xf32> -> vector<16x256xf32>
    %17 = arith.mulf %10, %16 : vector<16x256xf32>
    %18 = arith.truncf %17 : vector<16x256xf32> to vector<16x256xbf16>
    %c0_10 = arith.constant 0 : index
    %c0_11 = arith.constant 0 : index
    %c0_12 = arith.constant 0 : index
    %19 = vector.load %arg6[%c0_10, %c0_11, %c0_12] : memref<1x16x256xbf16, #tpu.memory_space<vmem>>, vector<1x16x256xbf16>
    %20 = vector.shape_cast %19 : vector<1x16x256xbf16> to vector<16x256xbf16>
    %21 = vector.shape_cast %18 : vector<16x256xbf16> to vector<1x16x256xbf16>
    tpu.vector_store %arg6[%c0_10, %c0_11, %c0_12], %21 {strides = array<i32>} : memref<1x16x256xbf16, #tpu.memory_space<vmem>>, vector<1x16x256xbf16>,
    return
  }
  func.func @transform_0(%arg0: i32, %arg1: i32) -> (i32, i32, i32) {
    %c0_i32 = arith.constant 0 : i32
    %c0_i32_0 = arith.constant 0 : i32
    return %arg0, %c0_i32, %arg1 : i32, i32, i32
  }
  func.func @transform_1(%arg0: i32, %arg1: i32) -> (i32, i32) {
    %c0_i32 = arith.constant 0 : i32
    %c0_i32_0 = arith.constant 0 : i32
    %c0_i32_1 = arith.constant 0 : i32
    return %c0_i32, %c0_i32_0 : i32, i32
  }
  func.func @transform_2(%arg0: i32, %arg1: i32) -> (i32, i32) {
    %c0_i32 = arith.constant 0 : i32
    %c0_i32_0 = arith.constant 0 : i32
    %c0_i32_1 = arith.constant 0 : i32
    return %c0_i32, %c0_i32_0 : i32, i32
  }
  func.func @transform_3(%arg0: i32, %arg1: i32) -> (i32, i32) {
    %c0_i32 = arith.constant 0 : i32
    %c0_i32_0 = arith.constant 0 : i32
    %c0_i32_1 = arith.constant 0 : i32
    return %c0_i32, %c0_i32_0 : i32, i32
  }
  func.func @transform_4(%arg0: i32, %arg1: i32) -> (i32, i32, i32) {
    %c0_i32 = arith.constant 0 : i32
    %c0_i32_0 = arith.constant 0 : i32
    return %arg0, %c0_i32, %arg1 : i32, i32, i32
  }
}

module attributes {stable_mosaic.version = 11 : i64} {
  func.func @_bottleneck_fused_kernel(%arg0: i32, %arg1: memref<1x8x256xbf16, #tpu.memory_space<vmem>>, %arg2: memref<9x256xbf16, #tpu.memory_space<vmem>>, %arg3: memref<8x72xf32, #tpu.memory_space<vmem>>, %arg4: memref<8x1xf32, #tpu.memory_space<vmem>>, %arg5: memref<8x1xf32, #tpu.memory_space<vmem>>, %arg6: memref<8x9xf32, #tpu.memory_space<vmem>>, %arg7: memref<8x1xf32, #tpu.memory_space<vmem>>, %arg8: memref<8x1xf32, #tpu.memory_space<vmem>>, %arg9: memref<8x1xf32, #tpu.memory_space<vmem>>, %arg10: memref<32x8xf32, #tpu.memory_space<vmem>>, %arg11: memref<32x1xf32, #tpu.memory_space<vmem>>, %arg12: memref<32x1xf32, #tpu.memory_space<vmem>>, %arg13: memref<32x1xf32, #tpu.memory_space<vmem>>, %arg14: memref<8x32xf32, #tpu.memory_space<vmem>>, %arg15: memref<8x1xf32, #tpu.memory_space<vmem>>, %arg16: memref<8x1xf32, #tpu.memory_space<vmem>>, %arg17: memref<8x1xf32, #tpu.memory_space<vmem>>, %arg18: memref<8x72xf32, #tpu.memory_space<vmem>>, %arg19: memref<8x1xf32, #tpu.memory_space<vmem>>, %arg20: memref<8x1xf32, #tpu.memory_space<vmem>>, %arg21: memref<1x8x256xbf16, #tpu.memory_space<vmem>>) attributes {dimension_semantics = [#tpu.dimension_semantics<parallel>], iteration_bounds = array<i64: 2>, scalar_prefetch = 0 : i64, scratch_operands = 0 : i64, tpu.core_type = #tpu.core_type<tc>, window_params = [{transform_indices = @transform_0, window_bounds = array<i64: 1, 8, 256>}, {pipeline_mode = #tpu.pipeline_mode<synchronous>, transform_indices = @transform_1, window_bounds = array<i64: 9, 256>}, {pipeline_mode = #tpu.pipeline_mode<synchronous>, transform_indices = @transform_2, window_bounds = array<i64: 8, 72>}, {pipeline_mode = #tpu.pipeline_mode<synchronous>, transform_indices = @transform_3, window_bounds = array<i64: 8, 1>}, {pipeline_mode = #tpu.pipeline_mode<synchronous>, transform_indices = @transform_4, window_bounds = array<i64: 8, 1>}, {pipeline_mode = #tpu.pipeline_mode<synchronous>, transform_indices = @transform_5, window_bounds = array<i64: 8, 9>}, {pipeline_mode = #tpu.pipeline_mode<synchronous>, transform_indices = @transform_6, window_bounds = array<i64: 8, 1>}, {pipeline_mode = #tpu.pipeline_mode<synchronous>, transform_indices = @transform_7, window_bounds = array<i64: 8, 1>}, {pipeline_mode = #tpu.pipeline_mode<synchronous>, transform_indices = @transform_8, window_bounds = array<i64: 8, 1>}, {pipeline_mode = #tpu.pipeline_mode<synchronous>, transform_indices = @transform_9, window_bounds = array<i64: 32, 8>}, {pipeline_mode = #tpu.pipeline_mode<synchronous>, transform_indices = @transform_10, window_bounds = array<i64: 32, 1>}, {pipeline_mode = #tpu.pipeline_mode<synchronous>, transform_indices = @transform_11, window_bounds = array<i64: 32, 1>}, {pipeline_mode = #tpu.pipeline_mode<synchronous>, transform_indices = @transform_12, window_bounds = array<i64: 32, 1>}, {pipeline_mode = #tpu.pipeline_mode<synchronous>, transform_indices = @transform_13, window_bounds = array<i64: 8, 32>}, {pipeline_mode = #tpu.pipeline_mode<synchronous>, transform_indices = @transform_14, window_bounds = array<i64: 8, 1>}, {pipeline_mode = #tpu.pipeline_mode<synchronous>, transform_indices = @transform_15, window_bounds = array<i64: 8, 1>}, {pipeline_mode = #tpu.pipeline_mode<synchronous>, transform_indices = @transform_16, window_bounds = array<i64: 8, 1>}, {pipeline_mode = #tpu.pipeline_mode<synchronous>, transform_indices = @transform_17, window_bounds = array<i64: 8, 72>}, {pipeline_mode = #tpu.pipeline_mode<synchronous>, transform_indices = @transform_18, window_bounds = array<i64: 8, 1>}, {pipeline_mode = #tpu.pipeline_mode<synchronous>, transform_indices = @transform_19, window_bounds = array<i64: 8, 1>}, {transform_indices = @transform_20, window_bounds = array<i64: 1, 8, 256>}]} {
    %c0 = arith.constant 0 : index
    %c0_0 = arith.constant 0 : index
    %c0_1 = arith.constant 0 : index
    %0 = vector.load %arg1[%c0, %c0_0, %c0_1] : memref<1x8x256xbf16, #tpu.memory_space<vmem>>, vector<1x8x256xbf16>
    %1 = vector.shape_cast %0 : vector<1x8x256xbf16> to vector<8x256xbf16>
    %2 = arith.extf %1 : vector<8x256xbf16> to vector<8x256xf32>
    %c0_2 = arith.constant 0 : index
    %c0_3 = arith.constant 0 : index
    %3 = vector.load %arg2[%c0_2, %c0_3] : memref<9x256xbf16, #tpu.memory_space<vmem>>, vector<9x256xbf16>
    %4 = arith.extf %3 : vector<9x256xbf16> to vector<9x256xf32>
    %c0_4 = arith.constant 0 : index
    %c0_5 = arith.constant 0 : index
    %5 = vector.load %arg3[%c0_4, %c0_5] : memref<8x72xf32, #tpu.memory_space<vmem>>, vector<8x72xf32>
    %c17_i32 = arith.constant 17 : i32
    %6 = tpu.dynamic_rotate %2 by %c17_i32 dim 1 : vector<8x256xf32>, i32 -> vector<8x256xf32>
    %7 = vector.extract_strided_slice %4 {offsets = [0, 0], sizes = [1, 256], strides = [1, 1]} : vector<9x256xf32> to vector<1x256xf32>
    %8 = vector.broadcast %7 : vector<1x256xf32> to vector<8x256xf32>
    %9 = arith.mulf %6, %8 : vector<8x256xf32>
    %c16_i32 = arith.constant 16 : i32
    %10 = tpu.dynamic_rotate %2 by %c16_i32 dim 1 : vector<8x256xf32>, i32 -> vector<8x256xf32>
    %11 = vector.extract_strided_slice %4 {offsets = [1, 0], sizes = [1, 256], strides = [1, 1]} : vector<9x256xf32> to vector<1x256xf32>
    %12 = vector.broadcast %11 : vector<1x256xf32> to vector<8x256xf32>
    %13 = arith.mulf %10, %12 : vector<8x256xf32>
    %c15_i32 = arith.constant 15 : i32
    %14 = tpu.dynamic_rotate %2 by %c15_i32 dim 1 : vector<8x256xf32>, i32 -> vector<8x256xf32>
    %15 = vector.extract_strided_slice %4 {offsets = [2, 0], sizes = [1, 256], strides = [1, 1]} : vector<9x256xf32> to vector<1x256xf32>
    %16 = vector.broadcast %15 : vector<1x256xf32> to vector<8x256xf32>
    %17 = arith.mulf %14, %16 : vector<8x256xf32>
    %c1_i32 = arith.constant 1 : i32
    %18 = tpu.dynamic_rotate %2 by %c1_i32 dim 1 : vector<8x256xf32>, i32 -> vector<8x256xf32>
    %19 = vector.extract_strided_slice %4 {offsets = [3, 0], sizes = [1, 256], strides = [1, 1]} : vector<9x256xf32> to vector<1x256xf32>
    %20 = vector.broadcast %19 : vector<1x256xf32> to vector<8x256xf32>
    %21 = arith.mulf %18, %20 : vector<8x256xf32>
    %22 = vector.extract_strided_slice %4 {offsets = [4, 0], sizes = [1, 256], strides = [1, 1]} : vector<9x256xf32> to vector<1x256xf32>
    %23 = vector.broadcast %22 : vector<1x256xf32> to vector<8x256xf32>
    %24 = arith.mulf %2, %23 : vector<8x256xf32>
    %c255_i32 = arith.constant 255 : i32
    %25 = tpu.dynamic_rotate %2 by %c255_i32 dim 1 : vector<8x256xf32>, i32 -> vector<8x256xf32>
    %26 = vector.extract_strided_slice %4 {offsets = [5, 0], sizes = [1, 256], strides = [1, 1]} : vector<9x256xf32> to vector<1x256xf32>
    %27 = vector.broadcast %26 : vector<1x256xf32> to vector<8x256xf32>
    %28 = arith.mulf %25, %27 : vector<8x256xf32>
    %c241_i32 = arith.constant 241 : i32
    %29 = tpu.dynamic_rotate %2 by %c241_i32 dim 1 : vector<8x256xf32>, i32 -> vector<8x256xf32>
    %30 = vector.extract_strided_slice %4 {offsets = [6, 0], sizes = [1, 256], strides = [1, 1]} : vector<9x256xf32> to vector<1x256xf32>
    %31 = vector.broadcast %30 : vector<1x256xf32> to vector<8x256xf32>
    %32 = arith.mulf %29, %31 : vector<8x256xf32>
    %c240_i32 = arith.constant 240 : i32
    %33 = tpu.dynamic_rotate %2 by %c240_i32 dim 1 : vector<8x256xf32>, i32 -> vector<8x256xf32>
    %34 = vector.extract_strided_slice %4 {offsets = [7, 0], sizes = [1, 256], strides = [1, 1]} : vector<9x256xf32> to vector<1x256xf32>
    %35 = vector.broadcast %34 : vector<1x256xf32> to vector<8x256xf32>
    %36 = arith.mulf %33, %35 : vector<8x256xf32>
    %c239_i32 = arith.constant 239 : i32
    %37 = tpu.dynamic_rotate %2 by %c239_i32 dim 1 : vector<8x256xf32>, i32 -> vector<8x256xf32>
    %38 = vector.extract_strided_slice %4 {offsets = [8, 0], sizes = [1, 256], strides = [1, 1]} : vector<9x256xf32> to vector<1x256xf32>
    %39 = vector.broadcast %38 : vector<1x256xf32> to vector<8x256xf32>
    %40 = arith.mulf %37, %39 : vector<8x256xf32>
    %41 = tpu.concatenate %9, %13, %17, %21, %24, %28, %32, %36, %40 in 0 : vector<8x256xf32>, vector<8x256xf32>, vector<8x256xf32>, vector<8x256xf32>, vector<8x256xf32>, vector<8x256xf32>, vector<8x256xf32>, vector<8x256xf32>, vector<8x256xf32> -> vector<72x256xf32>
    %cst = arith.constant dense<0.000000e+00> : vector<8x256xf32>
    %42 = tpu.matmul %5, %41, %cst {dimension_numbers = #tpu.dot_dimension_numbers<[1], [0], [0], [1], [0, 0, 1, 1], [], []>} : vector<8x72xf32>, vector<72x256xf32>, vector<8x256xf32> -> vector<8x256xf32>
    %c0_6 = arith.constant 0 : index
    %c0_7 = arith.constant 0 : index
    %43 = vector.load %arg4[%c0_6, %c0_7] : memref<8x1xf32, #tpu.memory_space<vmem>>, vector<8x1xf32>
    %44 = vector.broadcast %43 : vector<8x1xf32> to vector<8x256xf32>
    %45 = arith.mulf %42, %44 : vector<8x256xf32>
    %c0_8 = arith.constant 0 : index
    %c0_9 = arith.constant 0 : index
    %46 = vector.load %arg5[%c0_8, %c0_9] : memref<8x1xf32, #tpu.memory_space<vmem>>, vector<8x1xf32>
    %47 = vector.broadcast %46 : vector<8x1xf32> to vector<8x256xf32>
    %48 = arith.addf %45, %47 : vector<8x256xf32>
    %cst_10 = arith.constant 0.000000e+00 : f32
    %49 = vector.broadcast %cst_10 : f32 to vector<8x256xf32>
    %50 = arith.subf %49, %48 : vector<8x256xf32>
    %51 = math.exp %50 : vector<8x256xf32>
    %cst_11 = arith.constant 1.000000e+00 : f32
    %52 = vector.broadcast %cst_11 : f32 to vector<8x256xf32>
    %53 = arith.addf %52, %51 : vector<8x256xf32>
    %54 = tpu.reciprocal %53 {approx = true} : vector<8x256xf32> -> vector<8x256xf32>
    %55 = arith.mulf %48, %54 : vector<8x256xf32>
    %c0_12 = arith.constant 0 : index
    %c0_13 = arith.constant 0 : index
    %56 = vector.load %arg6[%c0_12, %c0_13] : memref<8x9xf32, #tpu.memory_space<vmem>>, vector<8x9xf32>
    %c17_i32_14 = arith.constant 17 : i32
    %57 = tpu.dynamic_rotate %55 by %c17_i32_14 dim 1 : vector<8x256xf32>, i32 -> vector<8x256xf32>
    %58 = vector.extract_strided_slice %4 {offsets = [0, 0], sizes = [1, 256], strides = [1, 1]} : vector<9x256xf32> to vector<1x256xf32>
    %59 = vector.broadcast %58 : vector<1x256xf32> to vector<8x256xf32>
    %60 = arith.mulf %57, %59 : vector<8x256xf32>
    %61 = vector.extract_strided_slice %56 {offsets = [0, 0], sizes = [8, 1], strides = [1, 1]} : vector<8x9xf32> to vector<8x1xf32>
    %62 = vector.broadcast %61 : vector<8x1xf32> to vector<8x256xf32>
    %63 = arith.mulf %60, %62 : vector<8x256xf32>
    %c16_i32_15 = arith.constant 16 : i32
    %64 = tpu.dynamic_rotate %55 by %c16_i32_15 dim 1 : vector<8x256xf32>, i32 -> vector<8x256xf32>
    %65 = vector.extract_strided_slice %4 {offsets = [1, 0], sizes = [1, 256], strides = [1, 1]} : vector<9x256xf32> to vector<1x256xf32>
    %66 = vector.broadcast %65 : vector<1x256xf32> to vector<8x256xf32>
    %67 = arith.mulf %64, %66 : vector<8x256xf32>
    %68 = vector.extract_strided_slice %56 {offsets = [0, 1], sizes = [8, 1], strides = [1, 1]} : vector<8x9xf32> to vector<8x1xf32>
    %69 = vector.broadcast %68 : vector<8x1xf32> to vector<8x256xf32>
    %70 = arith.mulf %67, %69 : vector<8x256xf32>
    %71 = arith.addf %63, %70 : vector<8x256xf32>
    %c15_i32_16 = arith.constant 15 : i32
    %72 = tpu.dynamic_rotate %55 by %c15_i32_16 dim 1 : vector<8x256xf32>, i32 -> vector<8x256xf32>
    %73 = vector.extract_strided_slice %4 {offsets = [2, 0], sizes = [1, 256], strides = [1, 1]} : vector<9x256xf32> to vector<1x256xf32>
    %74 = vector.broadcast %73 : vector<1x256xf32> to vector<8x256xf32>
    %75 = arith.mulf %72, %74 : vector<8x256xf32>
    %76 = vector.extract_strided_slice %56 {offsets = [0, 2], sizes = [8, 1], strides = [1, 1]} : vector<8x9xf32> to vector<8x1xf32>
    %77 = vector.broadcast %76 : vector<8x1xf32> to vector<8x256xf32>
    %78 = arith.mulf %75, %77 : vector<8x256xf32>
    %79 = arith.addf %71, %78 : vector<8x256xf32>
    %c1_i32_17 = arith.constant 1 : i32
    %80 = tpu.dynamic_rotate %55 by %c1_i32_17 dim 1 : vector<8x256xf32>, i32 -> vector<8x256xf32>
    %81 = vector.extract_strided_slice %4 {offsets = [3, 0], sizes = [1, 256], strides = [1, 1]} : vector<9x256xf32> to vector<1x256xf32>
    %82 = vector.broadcast %81 : vector<1x256xf32> to vector<8x256xf32>
    %83 = arith.mulf %80, %82 : vector<8x256xf32>
    %84 = vector.extract_strided_slice %56 {offsets = [0, 3], sizes = [8, 1], strides = [1, 1]} : vector<8x9xf32> to vector<8x1xf32>
    %85 = vector.broadcast %84 : vector<8x1xf32> to vector<8x256xf32>
    %86 = arith.mulf %83, %85 : vector<8x256xf32>
    %87 = arith.addf %79, %86 : vector<8x256xf32>
    %88 = vector.extract_strided_slice %4 {offsets = [4, 0], sizes = [1, 256], strides = [1, 1]} : vector<9x256xf32> to vector<1x256xf32>
    %89 = vector.broadcast %88 : vector<1x256xf32> to vector<8x256xf32>
    %90 = arith.mulf %55, %89 : vector<8x256xf32>
    %91 = vector.extract_strided_slice %56 {offsets = [0, 4], sizes = [8, 1], strides = [1, 1]} : vector<8x9xf32> to vector<8x1xf32>
    %92 = vector.broadcast %91 : vector<8x1xf32> to vector<8x256xf32>
    %93 = arith.mulf %90, %92 : vector<8x256xf32>
    %94 = arith.addf %87, %93 : vector<8x256xf32>
    %c255_i32_18 = arith.constant 255 : i32
    %95 = tpu.dynamic_rotate %55 by %c255_i32_18 dim 1 : vector<8x256xf32>, i32 -> vector<8x256xf32>
    %96 = vector.extract_strided_slice %4 {offsets = [5, 0], sizes = [1, 256], strides = [1, 1]} : vector<9x256xf32> to vector<1x256xf32>
    %97 = vector.broadcast %96 : vector<1x256xf32> to vector<8x256xf32>
    %98 = arith.mulf %95, %97 : vector<8x256xf32>
    %99 = vector.extract_strided_slice %56 {offsets = [0, 5], sizes = [8, 1], strides = [1, 1]} : vector<8x9xf32> to vector<8x1xf32>
    %100 = vector.broadcast %99 : vector<8x1xf32> to vector<8x256xf32>
    %101 = arith.mulf %98, %100 : vector<8x256xf32>
    %102 = arith.addf %94, %101 : vector<8x256xf32>
    %c241_i32_19 = arith.constant 241 : i32
    %103 = tpu.dynamic_rotate %55 by %c241_i32_19 dim 1 : vector<8x256xf32>, i32 -> vector<8x256xf32>
    %104 = vector.extract_strided_slice %4 {offsets = [6, 0], sizes = [1, 256], strides = [1, 1]} : vector<9x256xf32> to vector<1x256xf32>
    %105 = vector.broadcast %104 : vector<1x256xf32> to vector<8x256xf32>
    %106 = arith.mulf %103, %105 : vector<8x256xf32>
    %107 = vector.extract_strided_slice %56 {offsets = [0, 6], sizes = [8, 1], strides = [1, 1]} : vector<8x9xf32> to vector<8x1xf32>
    %108 = vector.broadcast %107 : vector<8x1xf32> to vector<8x256xf32>
    %109 = arith.mulf %106, %108 : vector<8x256xf32>
    %110 = arith.addf %102, %109 : vector<8x256xf32>
    %c240_i32_20 = arith.constant 240 : i32
    %111 = tpu.dynamic_rotate %55 by %c240_i32_20 dim 1 : vector<8x256xf32>, i32 -> vector<8x256xf32>
    %112 = vector.extract_strided_slice %4 {offsets = [7, 0], sizes = [1, 256], strides = [1, 1]} : vector<9x256xf32> to vector<1x256xf32>
    %113 = vector.broadcast %112 : vector<1x256xf32> to vector<8x256xf32>
    %114 = arith.mulf %111, %113 : vector<8x256xf32>
    %115 = vector.extract_strided_slice %56 {offsets = [0, 7], sizes = [8, 1], strides = [1, 1]} : vector<8x9xf32> to vector<8x1xf32>
    %116 = vector.broadcast %115 : vector<8x1xf32> to vector<8x256xf32>
    %117 = arith.mulf %114, %116 : vector<8x256xf32>
    %118 = arith.addf %110, %117 : vector<8x256xf32>
    %c239_i32_21 = arith.constant 239 : i32
    %119 = tpu.dynamic_rotate %55 by %c239_i32_21 dim 1 : vector<8x256xf32>, i32 -> vector<8x256xf32>
    %120 = vector.extract_strided_slice %4 {offsets = [8, 0], sizes = [1, 256], strides = [1, 1]} : vector<9x256xf32> to vector<1x256xf32>
    %121 = vector.broadcast %120 : vector<1x256xf32> to vector<8x256xf32>
    %122 = arith.mulf %119, %121 : vector<8x256xf32>
    %123 = vector.extract_strided_slice %56 {offsets = [0, 8], sizes = [8, 1], strides = [1, 1]} : vector<8x9xf32> to vector<8x1xf32>
    %124 = vector.broadcast %123 : vector<8x1xf32> to vector<8x256xf32>
    %125 = arith.mulf %122, %124 : vector<8x256xf32>
    %126 = arith.addf %118, %125 : vector<8x256xf32>
    %c0_22 = arith.constant 0 : index
    %c0_23 = arith.constant 0 : index
    %127 = vector.load %arg7[%c0_22, %c0_23] : memref<8x1xf32, #tpu.memory_space<vmem>>, vector<8x1xf32>
    %128 = vector.broadcast %127 : vector<8x1xf32> to vector<8x256xf32>
    %129 = arith.addf %126, %128 : vector<8x256xf32>
    %cst_24 = arith.constant 5.000000e-01 : f32
    %130 = vector.broadcast %cst_24 : f32 to vector<8x256xf32>
    %131 = arith.mulf %130, %129 : vector<8x256xf32>
    %132 = arith.mulf %129, %129 : vector<8x256xf32>
    %133 = arith.mulf %132, %129 : vector<8x256xf32>
    %cst_25 = arith.constant 4.471500e-02 : f32
    %134 = vector.broadcast %cst_25 : f32 to vector<8x256xf32>
    %135 = arith.mulf %134, %133 : vector<8x256xf32>
    %136 = arith.addf %129, %135 : vector<8x256xf32>
    %cst_26 = arith.constant 0.797884583 : f32
    %137 = vector.broadcast %cst_26 : f32 to vector<8x256xf32>
    %138 = arith.mulf %137, %136 : vector<8x256xf32>
    %139 = math.tanh %138 : vector<8x256xf32>
    %cst_27 = arith.constant 1.000000e+00 : f32
    %140 = vector.broadcast %cst_27 : f32 to vector<8x256xf32>
    %141 = arith.addf %140, %139 : vector<8x256xf32>
    %142 = arith.mulf %131, %141 : vector<8x256xf32>
    %c0_28 = arith.constant 0 : index
    %c0_29 = arith.constant 0 : index
    %143 = vector.load %arg8[%c0_28, %c0_29] : memref<8x1xf32, #tpu.memory_space<vmem>>, vector<8x1xf32>
    %144 = vector.broadcast %143 : vector<8x1xf32> to vector<8x256xf32>
    %145 = arith.mulf %142, %144 : vector<8x256xf32>
    %c0_30 = arith.constant 0 : index
    %c0_31 = arith.constant 0 : index
    %146 = vector.load %arg9[%c0_30, %c0_31] : memref<8x1xf32, #tpu.memory_space<vmem>>, vector<8x1xf32>
    %147 = vector.broadcast %146 : vector<8x1xf32> to vector<8x256xf32>
    %148 = arith.addf %145, %147 : vector<8x256xf32>
    %149 = arith.addf %148, %55 : vector<8x256xf32>
    %c0_32 = arith.constant 0 : index
    %c0_33 = arith.constant 0 : index
    %150 = vector.load %arg10[%c0_32, %c0_33] : memref<32x8xf32, #tpu.memory_space<vmem>>, vector<32x8xf32>
    %cst_34 = arith.constant dense<0.000000e+00> : vector<32x256xf32>
    %151 = tpu.matmul %150, %149, %cst_34 {dimension_numbers = #tpu.dot_dimension_numbers<[1], [0], [0], [1], [0, 0, 1, 1], [], []>} : vector<32x8xf32>, vector<8x256xf32>, vector<32x256xf32> -> vector<32x256xf32>
    %c0_35 = arith.constant 0 : index
    %c0_36 = arith.constant 0 : index
    %152 = vector.load %arg11[%c0_35, %c0_36] : memref<32x1xf32, #tpu.memory_space<vmem>>, vector<32x1xf32>
    %153 = vector.broadcast %152 : vector<32x1xf32> to vector<32x256xf32>
    %154 = arith.addf %151, %153 : vector<32x256xf32>
    %cst_37 = arith.constant 5.000000e-01 : f32
    %155 = vector.broadcast %cst_37 : f32 to vector<32x256xf32>
    %156 = arith.mulf %155, %154 : vector<32x256xf32>
    %157 = arith.mulf %154, %154 : vector<32x256xf32>
    %158 = arith.mulf %157, %154 : vector<32x256xf32>
    %cst_38 = arith.constant 4.471500e-02 : f32
    %159 = vector.broadcast %cst_38 : f32 to vector<32x256xf32>
    %160 = arith.mulf %159, %158 : vector<32x256xf32>
    %161 = arith.addf %154, %160 : vector<32x256xf32>
    %cst_39 = arith.constant 0.797884583 : f32
    %162 = vector.broadcast %cst_39 : f32 to vector<32x256xf32>
    %163 = arith.mulf %162, %161 : vector<32x256xf32>
    %164 = math.tanh %163 : vector<32x256xf32>
    %cst_40 = arith.constant 1.000000e+00 : f32
    %165 = vector.broadcast %cst_40 : f32 to vector<32x256xf32>
    %166 = arith.addf %165, %164 : vector<32x256xf32>
    %167 = arith.mulf %156, %166 : vector<32x256xf32>
    %c0_41 = arith.constant 0 : index
    %c0_42 = arith.constant 0 : index
    %168 = vector.load %arg12[%c0_41, %c0_42] : memref<32x1xf32, #tpu.memory_space<vmem>>, vector<32x1xf32>
    %169 = vector.broadcast %168 : vector<32x1xf32> to vector<32x256xf32>
    %170 = arith.mulf %167, %169 : vector<32x256xf32>
    %c0_43 = arith.constant 0 : index
    %c0_44 = arith.constant 0 : index
    %171 = vector.load %arg13[%c0_43, %c0_44] : memref<32x1xf32, #tpu.memory_space<vmem>>, vector<32x1xf32>
    %172 = vector.broadcast %171 : vector<32x1xf32> to vector<32x256xf32>
    %173 = arith.addf %170, %172 : vector<32x256xf32>
    %c0_45 = arith.constant 0 : index
    %c0_46 = arith.constant 0 : index
    %174 = vector.load %arg14[%c0_45, %c0_46] : memref<8x32xf32, #tpu.memory_space<vmem>>, vector<8x32xf32>
    %cst_47 = arith.constant dense<0.000000e+00> : vector<8x256xf32>
    %175 = tpu.matmul %174, %173, %cst_47 {dimension_numbers = #tpu.dot_dimension_numbers<[1], [0], [0], [1], [0, 0, 1, 1], [], []>} : vector<8x32xf32>, vector<32x256xf32>, vector<8x256xf32> -> vector<8x256xf32>
    %c0_48 = arith.constant 0 : index
    %c0_49 = arith.constant 0 : index
    %176 = vector.load %arg15[%c0_48, %c0_49] : memref<8x1xf32, #tpu.memory_space<vmem>>, vector<8x1xf32>
    %177 = vector.broadcast %176 : vector<8x1xf32> to vector<8x256xf32>
    %178 = arith.addf %175, %177 : vector<8x256xf32>
    %cst_50 = arith.constant 5.000000e-01 : f32
    %179 = vector.broadcast %cst_50 : f32 to vector<8x256xf32>
    %180 = arith.mulf %179, %178 : vector<8x256xf32>
    %181 = arith.mulf %178, %178 : vector<8x256xf32>
    %182 = arith.mulf %181, %178 : vector<8x256xf32>
    %cst_51 = arith.constant 4.471500e-02 : f32
    %183 = vector.broadcast %cst_51 : f32 to vector<8x256xf32>
    %184 = arith.mulf %183, %182 : vector<8x256xf32>
    %185 = arith.addf %178, %184 : vector<8x256xf32>
    %cst_52 = arith.constant 0.797884583 : f32
    %186 = vector.broadcast %cst_52 : f32 to vector<8x256xf32>
    %187 = arith.mulf %186, %185 : vector<8x256xf32>
    %188 = math.tanh %187 : vector<8x256xf32>
    %cst_53 = arith.constant 1.000000e+00 : f32
    %189 = vector.broadcast %cst_53 : f32 to vector<8x256xf32>
    %190 = arith.addf %189, %188 : vector<8x256xf32>
    %191 = arith.mulf %180, %190 : vector<8x256xf32>
    %c0_54 = arith.constant 0 : index
    %c0_55 = arith.constant 0 : index
    %192 = vector.load %arg16[%c0_54, %c0_55] : memref<8x1xf32, #tpu.memory_space<vmem>>, vector<8x1xf32>
    %193 = vector.broadcast %192 : vector<8x1xf32> to vector<8x256xf32>
    %194 = arith.mulf %191, %193 : vector<8x256xf32>
    %c0_56 = arith.constant 0 : index
    %c0_57 = arith.constant 0 : index
    %195 = vector.load %arg17[%c0_56, %c0_57] : memref<8x1xf32, #tpu.memory_space<vmem>>, vector<8x1xf32>
    %196 = vector.broadcast %195 : vector<8x1xf32> to vector<8x256xf32>
    %197 = arith.addf %194, %196 : vector<8x256xf32>
    %c0_58 = arith.constant 0 : index
    %c0_59 = arith.constant 0 : index
    %198 = vector.load %arg18[%c0_58, %c0_59] : memref<8x72xf32, #tpu.memory_space<vmem>>, vector<8x72xf32>
    %c17_i32_60 = arith.constant 17 : i32
    %199 = tpu.dynamic_rotate %197 by %c17_i32_60 dim 1 : vector<8x256xf32>, i32 -> vector<8x256xf32>
    %200 = vector.extract_strided_slice %4 {offsets = [0, 0], sizes = [1, 256], strides = [1, 1]} : vector<9x256xf32> to vector<1x256xf32>
    %201 = vector.broadcast %200 : vector<1x256xf32> to vector<8x256xf32>
    %202 = arith.mulf %199, %201 : vector<8x256xf32>
    %c16_i32_61 = arith.constant 16 : i32
    %203 = tpu.dynamic_rotate %197 by %c16_i32_61 dim 1 : vector<8x256xf32>, i32 -> vector<8x256xf32>
    %204 = vector.extract_strided_slice %4 {offsets = [1, 0], sizes = [1, 256], strides = [1, 1]} : vector<9x256xf32> to vector<1x256xf32>
    %205 = vector.broadcast %204 : vector<1x256xf32> to vector<8x256xf32>
    %206 = arith.mulf %203, %205 : vector<8x256xf32>
    %c15_i32_62 = arith.constant 15 : i32
    %207 = tpu.dynamic_rotate %197 by %c15_i32_62 dim 1 : vector<8x256xf32>, i32 -> vector<8x256xf32>
    %208 = vector.extract_strided_slice %4 {offsets = [2, 0], sizes = [1, 256], strides = [1, 1]} : vector<9x256xf32> to vector<1x256xf32>
    %209 = vector.broadcast %208 : vector<1x256xf32> to vector<8x256xf32>
    %210 = arith.mulf %207, %209 : vector<8x256xf32>
    %c1_i32_63 = arith.constant 1 : i32
    %211 = tpu.dynamic_rotate %197 by %c1_i32_63 dim 1 : vector<8x256xf32>, i32 -> vector<8x256xf32>
    %212 = vector.extract_strided_slice %4 {offsets = [3, 0], sizes = [1, 256], strides = [1, 1]} : vector<9x256xf32> to vector<1x256xf32>
    %213 = vector.broadcast %212 : vector<1x256xf32> to vector<8x256xf32>
    %214 = arith.mulf %211, %213 : vector<8x256xf32>
    %215 = vector.extract_strided_slice %4 {offsets = [4, 0], sizes = [1, 256], strides = [1, 1]} : vector<9x256xf32> to vector<1x256xf32>
    %216 = vector.broadcast %215 : vector<1x256xf32> to vector<8x256xf32>
    %217 = arith.mulf %197, %216 : vector<8x256xf32>
    %c255_i32_64 = arith.constant 255 : i32
    %218 = tpu.dynamic_rotate %197 by %c255_i32_64 dim 1 : vector<8x256xf32>, i32 -> vector<8x256xf32>
    %219 = vector.extract_strided_slice %4 {offsets = [5, 0], sizes = [1, 256], strides = [1, 1]} : vector<9x256xf32> to vector<1x256xf32>
    %220 = vector.broadcast %219 : vector<1x256xf32> to vector<8x256xf32>
    %221 = arith.mulf %218, %220 : vector<8x256xf32>
    %c241_i32_65 = arith.constant 241 : i32
    %222 = tpu.dynamic_rotate %197 by %c241_i32_65 dim 1 : vector<8x256xf32>, i32 -> vector<8x256xf32>
    %223 = vector.extract_strided_slice %4 {offsets = [6, 0], sizes = [1, 256], strides = [1, 1]} : vector<9x256xf32> to vector<1x256xf32>
    %224 = vector.broadcast %223 : vector<1x256xf32> to vector<8x256xf32>
    %225 = arith.mulf %222, %224 : vector<8x256xf32>
    %c240_i32_66 = arith.constant 240 : i32
    %226 = tpu.dynamic_rotate %197 by %c240_i32_66 dim 1 : vector<8x256xf32>, i32 -> vector<8x256xf32>
    %227 = vector.extract_strided_slice %4 {offsets = [7, 0], sizes = [1, 256], strides = [1, 1]} : vector<9x256xf32> to vector<1x256xf32>
    %228 = vector.broadcast %227 : vector<1x256xf32> to vector<8x256xf32>
    %229 = arith.mulf %226, %228 : vector<8x256xf32>
    %c239_i32_67 = arith.constant 239 : i32
    %230 = tpu.dynamic_rotate %197 by %c239_i32_67 dim 1 : vector<8x256xf32>, i32 -> vector<8x256xf32>
    %231 = vector.extract_strided_slice %4 {offsets = [8, 0], sizes = [1, 256], strides = [1, 1]} : vector<9x256xf32> to vector<1x256xf32>
    %232 = vector.broadcast %231 : vector<1x256xf32> to vector<8x256xf32>
    %233 = arith.mulf %230, %232 : vector<8x256xf32>
    %234 = tpu.concatenate %202, %206, %210, %214, %217, %221, %225, %229, %233 in 0 : vector<8x256xf32>, vector<8x256xf32>, vector<8x256xf32>, vector<8x256xf32>, vector<8x256xf32>, vector<8x256xf32>, vector<8x256xf32>, vector<8x256xf32>, vector<8x256xf32> -> vector<72x256xf32>
    %cst_68 = arith.constant dense<0.000000e+00> : vector<8x256xf32>
    %235 = tpu.matmul %198, %234, %cst_68 {dimension_numbers = #tpu.dot_dimension_numbers<[1], [0], [0], [1], [0, 0, 1, 1], [], []>} : vector<8x72xf32>, vector<72x256xf32>, vector<8x256xf32> -> vector<8x256xf32>
    %c0_69 = arith.constant 0 : index
    %c0_70 = arith.constant 0 : index
    %236 = vector.load %arg19[%c0_69, %c0_70] : memref<8x1xf32, #tpu.memory_space<vmem>>, vector<8x1xf32>
    %237 = vector.broadcast %236 : vector<8x1xf32> to vector<8x256xf32>
    %238 = arith.mulf %235, %237 : vector<8x256xf32>
    %c0_71 = arith.constant 0 : index
    %c0_72 = arith.constant 0 : index
    %239 = vector.load %arg20[%c0_71, %c0_72] : memref<8x1xf32, #tpu.memory_space<vmem>>, vector<8x1xf32>
    %240 = vector.broadcast %239 : vector<8x1xf32> to vector<8x256xf32>
    %241 = arith.addf %238, %240 : vector<8x256xf32>
    %cst_73 = arith.constant 0.000000e+00 : f32
    %242 = vector.broadcast %cst_73 : f32 to vector<8x256xf32>
    %243 = arith.subf %242, %241 : vector<8x256xf32>
    %244 = math.exp %243 : vector<8x256xf32>
    %cst_74 = arith.constant 1.000000e+00 : f32
    %245 = vector.broadcast %cst_74 : f32 to vector<8x256xf32>
    %246 = arith.addf %245, %244 : vector<8x256xf32>
    %247 = tpu.reciprocal %246 {approx = true} : vector<8x256xf32> -> vector<8x256xf32>
    %248 = arith.mulf %241, %247 : vector<8x256xf32>
    %249 = arith.truncf %248 : vector<8x256xf32> to vector<8x256xbf16>
    %c0_75 = arith.constant 0 : index
    %c0_76 = arith.constant 0 : index
    %c0_77 = arith.constant 0 : index
    %250 = vector.load %arg21[%c0_75, %c0_76, %c0_77] : memref<1x8x256xbf16, #tpu.memory_space<vmem>>, vector<1x8x256xbf16>
    %251 = vector.shape_cast %250 : vector<1x8x256xbf16> to vector<8x256xbf16>
    %252 = vector.shape_cast %249 : vector<8x256xbf16> to vector<1x8x256xbf16>
    tpu.vector_store %arg21[%c0_75, %c0_76, %c0_77], %252 {strides = array<i32>} : memref<1x8x256xbf16, #tpu.memory_space<vmem>>, vector<1x8x256xbf16>,
    return
  }
  func.func @transform_0(%arg0: i32) -> (i32, i32, i32) {
    %c1_i32 = arith.constant 1 : i32
    %c0_i32 = arith.constant 0 : i32
    %c0_i32_0 = arith.constant 0 : i32
    return %arg0, %c1_i32, %c0_i32 : i32, i32, i32
  }
  func.func @transform_1(%arg0: i32) -> (i32, i32) {
    %c0_i32 = arith.constant 0 : i32
    %c0_i32_0 = arith.constant 0 : i32
    %c0_i32_1 = arith.constant 0 : i32
    return %c0_i32, %c0_i32_0 : i32, i32
  }
  func.func @transform_2(%arg0: i32) -> (i32, i32) {
    %c0_i32 = arith.constant 0 : i32
    %c0_i32_0 = arith.constant 0 : i32
    %c0_i32_1 = arith.constant 0 : i32
    return %c0_i32, %c0_i32_0 : i32, i32
  }
  func.func @transform_3(%arg0: i32) -> (i32, i32) {
    %c0_i32 = arith.constant 0 : i32
    %c0_i32_0 = arith.constant 0 : i32
    %c0_i32_1 = arith.constant 0 : i32
    return %c0_i32, %c0_i32_0 : i32, i32
  }
  func.func @transform_4(%arg0: i32) -> (i32, i32) {
    %c0_i32 = arith.constant 0 : i32
    %c0_i32_0 = arith.constant 0 : i32
    %c0_i32_1 = arith.constant 0 : i32
    return %c0_i32, %c0_i32_0 : i32, i32
  }
  func.func @transform_5(%arg0: i32) -> (i32, i32) {
    %c0_i32 = arith.constant 0 : i32
    %c0_i32_0 = arith.constant 0 : i32
    %c0_i32_1 = arith.constant 0 : i32
    return %c0_i32, %c0_i32_0 : i32, i32
  }
  func.func @transform_6(%arg0: i32) -> (i32, i32) {
    %c0_i32 = arith.constant 0 : i32
    %c0_i32_0 = arith.constant 0 : i32
    %c0_i32_1 = arith.constant 0 : i32
    return %c0_i32, %c0_i32_0 : i32, i32
  }
  func.func @transform_7(%arg0: i32) -> (i32, i32) {
    %c0_i32 = arith.constant 0 : i32
    %c0_i32_0 = arith.constant 0 : i32
    %c0_i32_1 = arith.constant 0 : i32
    return %c0_i32, %c0_i32_0 : i32, i32
  }
  func.func @transform_8(%arg0: i32) -> (i32, i32) {
    %c0_i32 = arith.constant 0 : i32
    %c0_i32_0 = arith.constant 0 : i32
    %c0_i32_1 = arith.constant 0 : i32
    return %c0_i32, %c0_i32_0 : i32, i32
  }
  func.func @transform_9(%arg0: i32) -> (i32, i32) {
    %c0_i32 = arith.constant 0 : i32
    %c0_i32_0 = arith.constant 0 : i32
    %c0_i32_1 = arith.constant 0 : i32
    return %c0_i32, %c0_i32_0 : i32, i32
  }
  func.func @transform_10(%arg0: i32) -> (i32, i32) {
    %c0_i32 = arith.constant 0 : i32
    %c0_i32_0 = arith.constant 0 : i32
    %c0_i32_1 = arith.constant 0 : i32
    return %c0_i32, %c0_i32_0 : i32, i32
  }
  func.func @transform_11(%arg0: i32) -> (i32, i32) {
    %c0_i32 = arith.constant 0 : i32
    %c0_i32_0 = arith.constant 0 : i32
    %c0_i32_1 = arith.constant 0 : i32
    return %c0_i32, %c0_i32_0 : i32, i32
  }
  func.func @transform_12(%arg0: i32) -> (i32, i32) {
    %c0_i32 = arith.constant 0 : i32
    %c0_i32_0 = arith.constant 0 : i32
    %c0_i32_1 = arith.constant 0 : i32
    return %c0_i32, %c0_i32_0 : i32, i32
  }
  func.func @transform_13(%arg0: i32) -> (i32, i32) {
    %c0_i32 = arith.constant 0 : i32
    %c0_i32_0 = arith.constant 0 : i32
    %c0_i32_1 = arith.constant 0 : i32
    return %c0_i32, %c0_i32_0 : i32, i32
  }
  func.func @transform_14(%arg0: i32) -> (i32, i32) {
    %c0_i32 = arith.constant 0 : i32
    %c0_i32_0 = arith.constant 0 : i32
    %c0_i32_1 = arith.constant 0 : i32
    return %c0_i32, %c0_i32_0 : i32, i32
  }
  func.func @transform_15(%arg0: i32) -> (i32, i32) {
    %c0_i32 = arith.constant 0 : i32
    %c0_i32_0 = arith.constant 0 : i32
    %c0_i32_1 = arith.constant 0 : i32
    return %c0_i32, %c0_i32_0 : i32, i32
  }
  func.func @transform_16(%arg0: i32) -> (i32, i32) {
    %c0_i32 = arith.constant 0 : i32
    %c0_i32_0 = arith.constant 0 : i32
    %c0_i32_1 = arith.constant 0 : i32
    return %c0_i32, %c0_i32_0 : i32, i32
  }
  func.func @transform_17(%arg0: i32) -> (i32, i32) {
    %c0_i32 = arith.constant 0 : i32
    %c0_i32_0 = arith.constant 0 : i32
    %c0_i32_1 = arith.constant 0 : i32
    return %c0_i32, %c0_i32_0 : i32, i32
  }
  func.func @transform_18(%arg0: i32) -> (i32, i32) {
    %c0_i32 = arith.constant 0 : i32
    %c0_i32_0 = arith.constant 0 : i32
    %c0_i32_1 = arith.constant 0 : i32
    return %c0_i32, %c0_i32_0 : i32, i32
  }
  func.func @transform_19(%arg0: i32) -> (i32, i32) {
    %c0_i32 = arith.constant 0 : i32
    %c0_i32_0 = arith.constant 0 : i32
    %c0_i32_1 = arith.constant 0 : i32
    return %c0_i32, %c0_i32_0 : i32, i32
  }
  func.func @transform_20(%arg0: i32) -> (i32, i32, i32) {
    %c0_i32 = arith.constant 0 : i32
    %c0_i32_0 = arith.constant 0 : i32
    %c0_i32_1 = arith.constant 0 : i32
    return %arg0, %c0_i32, %c0_i32_0 : i32, i32, i32
  }
}

module attributes {stable_mosaic.version = 11 : i64} {
  func.func @_pw_multi_bn_silu_kernel(%arg0: i32, %arg1: i32, %arg2: memref<1x16x256xbf16, #tpu.memory_space<vmem>>, %arg3: memref<1x8x256xbf16, #tpu.memory_space<vmem>>, %arg4: memref<16x16xf32, #tpu.memory_space<vmem>>, %arg5: memref<16x8xf32, #tpu.memory_space<vmem>>, %arg6: memref<16x1xf32, #tpu.memory_space<vmem>>, %arg7: memref<16x1xf32, #tpu.memory_space<vmem>>, %arg8: memref<1x16x256xf32, #tpu.memory_space<vmem>>) attributes {dimension_semantics = [#tpu.dimension_semantics<parallel>, #tpu.dimension_semantics<parallel>], iteration_bounds = array<i64: 2, 1>, scalar_prefetch = 0 : i64, scratch_operands = 0 : i64, tpu.core_type = #tpu.core_type<tc>, window_params = [{transform_indices = @transform_0, window_bounds = array<i64: 1, 16, 256>}, {transform_indices = @transform_1, window_bounds = array<i64: 1, 8, 256>}, {pipeline_mode = #tpu.pipeline_mode<synchronous>, transform_indices = @transform_2, window_bounds = array<i64: 16, 16>}, {pipeline_mode = #tpu.pipeline_mode<synchronous>, transform_indices = @transform_3, window_bounds = array<i64: 16, 8>}, {pipeline_mode = #tpu.pipeline_mode<synchronous>, transform_indices = @transform_4, window_bounds = array<i64: 16, 1>}, {pipeline_mode = #tpu.pipeline_mode<synchronous>, transform_indices = @transform_5, window_bounds = array<i64: 16, 1>}, {transform_indices = @transform_6, window_bounds = array<i64: 1, 16, 256>}]} {
    %c0 = arith.constant 0 : index
    %c0_0 = arith.constant 0 : index
    %0 = vector.load %arg4[%c0, %c0_0] : memref<16x16xf32, #tpu.memory_space<vmem>>, vector<16x16xf32>
    %c0_1 = arith.constant 0 : index
    %c0_2 = arith.constant 0 : index
    %c0_3 = arith.constant 0 : index
    %1 = vector.load %arg2[%c0_1, %c0_2, %c0_3] : memref<1x16x256xbf16, #tpu.memory_space<vmem>>, vector<1x16x256xbf16>
    %2 = vector.shape_cast %1 : vector<1x16x256xbf16> to vector<16x256xbf16>
    %3 = arith.extf %2 : vector<16x256xbf16> to vector<16x256xf32>
    %cst = arith.constant dense<0.000000e+00> : vector<16x256xf32>
    %4 = tpu.matmul %0, %3, %cst {dimension_numbers = #tpu.dot_dimension_numbers<[1], [0], [0], [1], [0, 0, 1, 1], [], []>} : vector<16x16xf32>, vector<16x256xf32>, vector<16x256xf32> -> vector<16x256xf32>
    %c0_4 = arith.constant 0 : index
    %c0_5 = arith.constant 0 : index
    %5 = vector.load %arg5[%c0_4, %c0_5] : memref<16x8xf32, #tpu.memory_space<vmem>>, vector<16x8xf32>
    %c0_6 = arith.constant 0 : index
    %c0_7 = arith.constant 0 : index
    %c0_8 = arith.constant 0 : index
    %6 = vector.load %arg3[%c0_6, %c0_7, %c0_8] : memref<1x8x256xbf16, #tpu.memory_space<vmem>>, vector<1x8x256xbf16>
    %7 = vector.shape_cast %6 : vector<1x8x256xbf16> to vector<8x256xbf16>
    %8 = arith.extf %7 : vector<8x256xbf16> to vector<8x256xf32>
    %cst_9 = arith.constant dense<0.000000e+00> : vector<16x256xf32>
    %9 = tpu.matmul %5, %8, %cst_9 {dimension_numbers = #tpu.dot_dimension_numbers<[1], [0], [0], [1], [0, 0, 1, 1], [], []>} : vector<16x8xf32>, vector<8x256xf32>, vector<16x256xf32> -> vector<16x256xf32>
    %10 = arith.addf %4, %9 : vector<16x256xf32>
    %c0_10 = arith.constant 0 : index
    %c0_11 = arith.constant 0 : index
    %11 = vector.load %arg6[%c0_10, %c0_11] : memref<16x1xf32, #tpu.memory_space<vmem>>, vector<16x1xf32>
    %12 = vector.broadcast %11 : vector<16x1xf32> to vector<16x256xf32>
    %13 = arith.mulf %10, %12 : vector<16x256xf32>
    %c0_12 = arith.constant 0 : index
    %c0_13 = arith.constant 0 : index
    %14 = vector.load %arg7[%c0_12, %c0_13] : memref<16x1xf32, #tpu.memory_space<vmem>>, vector<16x1xf32>
    %15 = vector.broadcast %14 : vector<16x1xf32> to vector<16x256xf32>
    %16 = arith.addf %13, %15 : vector<16x256xf32>
    %cst_14 = arith.constant 0.000000e+00 : f32
    %17 = vector.broadcast %cst_14 : f32 to vector<16x256xf32>
    %18 = arith.subf %17, %16 : vector<16x256xf32>
    %19 = math.exp %18 : vector<16x256xf32>
    %cst_15 = arith.constant 1.000000e+00 : f32
    %20 = vector.broadcast %cst_15 : f32 to vector<16x256xf32>
    %21 = arith.addf %20, %19 : vector<16x256xf32>
    %22 = tpu.reciprocal %21 {approx = true} : vector<16x256xf32> -> vector<16x256xf32>
    %23 = arith.mulf %16, %22 : vector<16x256xf32>
    %c0_16 = arith.constant 0 : index
    %c0_17 = arith.constant 0 : index
    %c0_18 = arith.constant 0 : index
    %24 = vector.load %arg8[%c0_16, %c0_17, %c0_18] : memref<1x16x256xf32, #tpu.memory_space<vmem>>, vector<1x16x256xf32>
    %25 = vector.shape_cast %24 : vector<1x16x256xf32> to vector<16x256xf32>
    %26 = vector.shape_cast %23 : vector<16x256xf32> to vector<1x16x256xf32>
    tpu.vector_store %arg8[%c0_16, %c0_17, %c0_18], %26 {strides = array<i32>} : memref<1x16x256xf32, #tpu.memory_space<vmem>>, vector<1x16x256xf32>,
    return
  }
  func.func @transform_0(%arg0: i32, %arg1: i32) -> (i32, i32, i32) {
    %c0_i32 = arith.constant 0 : i32
    %c0_i32_0 = arith.constant 0 : i32
    return %arg0, %c0_i32, %arg1 : i32, i32, i32
  }
  func.func @transform_1(%arg0: i32, %arg1: i32) -> (i32, i32, i32) {
    %c0_i32 = arith.constant 0 : i32
    %c0_i32_0 = arith.constant 0 : i32
    return %arg0, %c0_i32, %arg1 : i32, i32, i32
  }
  func.func @transform_2(%arg0: i32, %arg1: i32) -> (i32, i32) {
    %c0_i32 = arith.constant 0 : i32
    %c0_i32_0 = arith.constant 0 : i32
    %c0_i32_1 = arith.constant 0 : i32
    return %c0_i32, %c0_i32_0 : i32, i32
  }
  func.func @transform_3(%arg0: i32, %arg1: i32) -> (i32, i32) {
    %c0_i32 = arith.constant 0 : i32
    %c0_i32_0 = arith.constant 0 : i32
    %c0_i32_1 = arith.constant 0 : i32
    return %c0_i32, %c0_i32_0 : i32, i32
  }
  func.func @transform_4(%arg0: i32, %arg1: i32) -> (i32, i32) {
    %c0_i32 = arith.constant 0 : i32
    %c0_i32_0 = arith.constant 0 : i32
    %c0_i32_1 = arith.constant 0 : i32
    return %c0_i32, %c0_i32_0 : i32, i32
  }
  func.func @transform_5(%arg0: i32, %arg1: i32) -> (i32, i32) {
    %c0_i32 = arith.constant 0 : i32
    %c0_i32_0 = arith.constant 0 : i32
    %c0_i32_1 = arith.constant 0 : i32
    return %c0_i32, %c0_i32_0 : i32, i32
  }
  func.func @transform_6(%arg0: i32, %arg1: i32) -> (i32, i32, i32) {
    %c0_i32 = arith.constant 0 : i32
    %c0_i32_0 = arith.constant 0 : i32
    return %arg0, %c0_i32, %arg1 : i32, i32, i32
  }
}

</mosaic_0001>

<llo_original>
// kernel: c2f_cmunextb_forward.3
$region0: #{c2f_cmunextb_forward.3}
  #allocation0 [shape = 'u32[]', space=smem, size = 0x4, offset = 0x4, fixed_abs, tag = 'smem constant byte address 0x4 - core index']
  #allocation1 [shape = 'u32[144,128]{1,0:T(1,128)}', space=vmem, size = 0x12000, scoped, tag = 'internal scratch']
  %s0 = inlined_call_operand.vmem [shape: bf16[2,16,256], index: 0, kind: input, shape index: {}]
  %s1 = inlined_call_operand.vmem [shape: f32[16,16], index: 1, kind: input, shape index: {}]
  %s2 = inlined_call_operand.vmem [shape: f32[16,1], index: 2, kind: input, shape index: {}]
  %s3 = inlined_call_operand.vmem [shape: f32[16,1], index: 3, kind: input, shape index: {}]
  %s4 = inlined_call_operand.vmem [shape: bf16[2,16,256], index: 4, kind: output, shape index: {}]
  %s5 = sld [smem:[#allocation0]]
  $region49: #{c2f_cmunextb_forward.3} parent=0
    _
  %s7 = ssub.s32 1, %s5
  %s8 = scalar_select 0, %s7, %s5
  loop: start=0, step=1, limit=4
  $region2: #{c2f_cmunextb_forward.3} parent=0 // loop_pre_header
    _
  $region3: #{c2f_cmunextb_forward.3} parent=0 // loop_header
    %s10 = sphi 0, %s14
    %p11 = scmp.ge.s32.totalorder %s10, 4
    %s17 = sphi 0, %s29
    %s18 = sphi 0, %s25
    %s19 = sphi 0, %s17
    %s20 = sphi 0, %s18
    %s21 = sphi 0, %s19
    %s22 = sphi 0, %s20
    %s34 = sphi 0, %s36
    %s37 = sphi 0, %s34
    %s38 = sphi 0, %s37
    %s54 = sphi 0, %s38
    %s58 = sphi 0, %s58
    %s60 = sphi 0, %s58
    %s61 = sphi 0, %s60
    %s75 = sphi 0, %s61
    %s79 = sphi 0, %s79
    %s81 = sphi 0, %s79
    %s82 = sphi 0, %s81
    %s96 = sphi 0, %s82
    %s100 = sphi 0, %s100
    %s102 = sphi 0, %s100
    %s103 = sphi 0, %s102
    %s117 = sphi 0, %s103
    %s125 = sphi 0, %s127
    %s128 = sphi 0, %s125
    %s129 = sphi 0, %s128
    %s145 = sphi 0, %s129
  $region4: #{c2f_cmunextb_forward.3} parent=0 // loop_header_branch
    %13 = sbr.rel (%p11) target = $region8
  $region5: #{c2f_cmunextb_forward.3} parent=0 // loop_body
    %s15 = ssub.s32 %s10, 1
    %s16 = ssub.s32 %s10, 2
    %s23 = sadd.s32 1, %s18
    %p24 = scmp.ge.s32.totalorder %s23, 1
    %s25 = scalar_select %p24, 0, %s23
    %s26 = sadd.s32 1, %s17
    %s27 = scalar_select %p24, %s26, %s17
    %p28 = scmp.ge.s32.totalorder %s27, 2
    %s29 = scalar_select %p28, 0, %s27
    %s30 = ssub.s32 %s17, %s29
    %s31 = ssub.s32 %s18, %s25
    %s32 = sor.u32 %s30, %s31
    %p33 = scmp.eq.s32.totalorder %s32, 0
    %s35 = sadd.s32 %s34, 1
    %s36 = scalar_select %p33, %s34, %s35
    %p39 = pneg %p33
    %p40 = scmp.eq.s32.totalorder %s10, 1
    %p41 = por %p39, %p40
    %p42 = scmp.ne.s32.totalorder %s34, %s37
    %p43 = scmp.eq.s32.totalorder %s10, 0
    %p44 = por %p42, %p43
    %p45 = scmp.ne.s32.totalorder %s34, %s37
    %p46 = scmp.eq.s32.totalorder %s15, 1
    %p47 = por %p45, %p46
    %p48 = scmp.ne.s32.totalorder %s37, %s38
    %p49 = scmp.eq.s32.totalorder %s15, 0
    %p50 = por %p48, %p49
    %p51 = scmp.ne.s32.totalorder %s37, %s38
    %p52 = scmp.eq.s32.totalorder %s16, 1
    %p53 = por %p51, %p52
    %p55 = scmp.ne.s32.totalorder %s38, %s54
    %p56 = scmp.eq.s32.totalorder %s16, 0
    %p57 = por %p55, %p56
    %s59 = sadd.s32 %s58, 1
    %p62 = scmp.eq.s32.totalorder %s10, 1
    %p63 = scmp.ne.s32.totalorder %s58, %s60
    %p64 = scmp.eq.s32.totalorder %s10, 0
    %p65 = por %p63, %p64
    %p66 = scmp.ne.s32.totalorder %s58, %s60
    %p67 = scmp.eq.s32.totalorder %s15, 1
    %p68 = por %p66, %p67
    %p69 = scmp.ne.s32.totalorder %s60, %s61
    %p70 = scmp.eq.s32.totalorder %s15, 0
    %p71 = por %p69, %p70
    %p72 = scmp.ne.s32.totalorder %s60, %s61
    %p73 = scmp.eq.s32.totalorder %s16, 1
    %p74 = por %p72, %p73
    %p76 = scmp.ne.s32.totalorder %s61, %s75
    %p77 = scmp.eq.s32.totalorder %s16, 0
    %p78 = por %p76, %p77
    %s80 = sadd.s32 %s79, 1
    %p83 = scmp.eq.s32.totalorder %s10, 1
    %p84 = scmp.ne.s32.totalorder %s79, %s81
    %p85 = scmp.eq.s32.totalorder %s10, 0
    %p86 = por %p84, %p85
    %p87 = scmp.ne.s32.totalorder %s79, %s81
    %p88 = scmp.eq.s32.totalorder %s15, 1
    %p89 = por %p87, %p88
    %p90 = scmp.ne.s32.totalorder %s81, %s82
    %p91 = scmp.eq.s32.totalorder %s15, 0
    %p92 = por %p90, %p91
    %p93 = scmp.ne.s32.totalorder %s81, %s82
    %p94 = scmp.eq.s32.totalorder %s16, 1
    %p95 = por %p93, %p94
    %p97 = scmp.ne.s32.totalorder %s82, %s96
    %p98 = scmp.eq.s32.totalorder %s16, 0
    %p99 = por %p97, %p98
    %s101 = sadd.s32 %s100, 1
    %p104 = scmp.eq.s32.totalorder %s10, 1
    %p105 = scmp.ne.s32.totalorder %s100, %s102
    %p106 = scmp.eq.s32.totalorder %s10, 0
    %p107 = por %p105, %p106
    %p108 = scmp.ne.s32.totalorder %s100, %s102
    %p109 = scmp.eq.s32.totalorder %s15, 1
    %p110 = por %p108, %p109
    %p111 = scmp.ne.s32.totalorder %s102, %s103
    %p112 = scmp.eq.s32.totalorder %s15, 0
    %p113 = por %p111, %p112
    %p114 = scmp.ne.s32.totalorder %s102, %s103
    %p115 = scmp.eq.s32.totalorder %s16, 1
    %p116 = por %p114, %p115
    %p118 = scmp.ne.s32.totalorder %s103, %s117
    %p119 = scmp.eq.s32.totalorder %s16, 0
    %p120 = por %p118, %p119
    %s121 = ssub.s32 %s17, %s29
    %s122 = ssub.s32 %s18, %s25
    %s123 = sor.u32 %s121, %s122
    %p124 = scmp.eq.s32.totalorder %s123, 0
    %s126 = sadd.s32 %s125, 1
    %s127 = scalar_select %p124, %s125, %s126
    %p130 = pneg %p124
    %p131 = scmp.eq.s32.totalorder %s10, 1
    %p132 = por %p130, %p131
    %p133 = scmp.ne.s32.totalorder %s125, %s128
    %p134 = scmp.eq.s32.totalorder %s10, 0
    %p135 = por %p133, %p134
    %p136 = scmp.ne.s32.totalorder %s125, %s128
    %p137 = scmp.eq.s32.totalorder %s15, 1
    %p138 = por %p136, %p137
    %p139 = scmp.ne.s32.totalorder %s128, %s129
    %p140 = scmp.eq.s32.totalorder %s15, 0
    %p141 = por %p139, %p140
    %p142 = scmp.ne.s32.totalorder %s128, %s129
    %p143 = scmp.eq.s32.totalorder %s16, 1
    %p144 = por %p142, %p143
    %p146 = scmp.ne.s32.totalorder %s129, %s145
    %p147 = scmp.eq.s32.totalorder %s16, 0
    %p148 = por %p146, %p147
    %p149 = scmp.le.s32.totalorder 1, %s10
    %p150 = scmp.lt.s32.totalorder %s10, 3
    %p151 = pnand %p149, %p150
    %p152 = pneg %p151
    // Predicated region
    $region9: #{c2f_cmunextb_forward.3} parent=5 // pred_check
      _
    $region10: #{c2f_cmunextb_forward.3} parent=5 // pred_check_branch
      %154 = sbr.rel (%p151) target = $region12
    $region11: #{c2f_cmunextb_forward.3} parent=5 // pred_region
      %s155 = ssub.s32 %s10, 1
      // Predicated region
      $region13: #{c2f_cmunextb_forward.3} parent=11 // pred_check
        %p156 = pneg %p71
      $region14: #{c2f_cmunextb_forward.3} parent=11 // pred_check_branch
        %158 = sbr.rel (%p156) target = $region16
      $region15: #{c2f_cmunextb_forward.3} parent=11 // pred_region
        _
      $region16: #{c2f_cmunextb_forward.3} parent=11 // pred_fallthru
        _
      // Predicated region
      $region17: #{c2f_cmunextb_forward.3} parent=11 // pred_check
        %p159 = pneg %p92
      $region18: #{c2f_cmunextb_forward.3} parent=11 // pred_check_branch
        %161 = sbr.rel (%p159) target = $region20
      $region19: #{c2f_cmunextb_forward.3} parent=11 // pred_region
        _
      $region20: #{c2f_cmunextb_forward.3} parent=11 // pred_fallthru
        _
      // Predicated region
      $region21: #{c2f_cmunextb_forward.3} parent=11 // pred_check
        %p162 = pneg %p113
      $region22: #{c2f_cmunextb_forward.3} parent=11 // pred_check_branch
        %164 = sbr.rel (%p162) target = $region24
      $region23: #{c2f_cmunextb_forward.3} parent=11 // pred_region
        _
      $region24: #{c2f_cmunextb_forward.3} parent=11 // pred_fallthru
        _
    $region12: #{c2f_cmunextb_forward.3} parent=5 // pred_fallthru
      _
    %p165 = scmp.lt.s32.totalorder %s10, 2
    // Predicated region
    $region25: #{c2f_cmunextb_forward.3} parent=5 // pred_check
      %p166 = pneg %p165
    $region26: #{c2f_cmunextb_forward.3} parent=5 // pred_check_branch
      %168 = sbr.rel (%p166) target = $region28
    $region27: #{c2f_cmunextb_forward.3} parent=5 // pred_region
      // Predicated region
      $region29: #{c2f_cmunextb_forward.3} parent=27 // pred_check
        %p169 = pneg %p44
      $region30: #{c2f_cmunextb_forward.3} parent=27 // pred_check_branch
        %171 = sbr.rel (%p169) target = $region32
      $region31: #{c2f_cmunextb_forward.3} parent=27 // pred_region
        %s172 = smul.u32 2, %s18
        %p173 = scmp.lt.s32.totalorder %s17, 1
        %s174 = scalar_select %p173, %s17, 1
        %p175 = scmp.lt.s32.totalorder %s172, 1
        %s176 = scalar_select %p175, %s172, 1
        %s177 = smul.addr %s174, 4
        %s178 = sadd.s32 %s176, %s177
        %s179 = smul.addr %s178, 4
        %s180 = scalar_lea.vmem %s0, %s179
        %s181 = smul.u32 2, %s18
      $region32: #{c2f_cmunextb_forward.3} parent=27 // pred_fallthru
        _
    $region28: #{c2f_cmunextb_forward.3} parent=5 // pred_fallthru
      _
    %p182 = scmp.le.s32.totalorder 1, %s10
    %p183 = scmp.lt.s32.totalorder %s10, 3
    %p184 = pnand %p182, %p183
    %p185 = pneg %p184
    // Predicated region
    $region33: #{c2f_cmunextb_forward.3} parent=5 // pred_check
      _
    $region34: #{c2f_cmunextb_forward.3} parent=5 // pred_check_branch
      %187 = sbr.rel (%p184) target = $region36
    $region35: #{c2f_cmunextb_forward.3} parent=5 // pred_region
      %s188 = ssub.s32 %s10, 1
      %s189 = smul.u32 2, %s20
      %p190 = scmp.lt.s32.totalorder %s19, 1
      %s191 = scalar_select %p190, %s19, 1
      %p192 = scmp.lt.s32.totalorder %s189, 1
      %s193 = scalar_select %p192, %s189, 1
      %s194 = smul.addr %s191, 4
      %s195 = sadd.s32 %s193, %s194
      %s196 = smul.addr %s195, 4
      %s197 = scalar_lea.vmem %s0, %s196
      %p198 = pneg %p50
      %p199 = pneg %p47
      %p200 = pneg %p71
      %p201 = pneg %p68
      %p202 = pneg %p92
      %p203 = pneg %p89
      %p204 = pneg %p113
      %p205 = pneg %p110
      %p206 = pneg %p141
      %p207 = pneg %p138
      %s208 = smul.u32 2, %s20
      %p209 = scmp.lt.s32.totalorder %s19, 1
      %s210 = scalar_select %p209, %s19, 1
      %p211 = scmp.lt.s32.totalorder %s208, 1
      %s212 = scalar_select %p211, %s208, 1
      %s213 = smul.addr %s210, 4
      %s214 = sadd.s32 %s212, %s213
      %s215 = smul.addr %s214, 4
      %s216 = scalar_lea.vmem %s4, %s215
      %s217 = smul.u32 2, %s20
      %p218 = scmp.lt.s32.totalorder %s19, 1
      %s219 = scalar_select %p218, %s19, 1
      %p220 = scmp.lt.s32.totalorder %s217, 1
      %s221 = scalar_select %p220, %s217, 1
      %s222 = smul.addr %s219, 4
      %s223 = sadd.s32 %s221, %s222
      %s224 = smul.addr %s223, 4
      %s225 = scalar_lea.vmem %s0, %s224
      %s226 = smul.u32 2, %s20
      %s227 = smul.u32 2, %s20
      %p228 = scmp.lt.s32.totalorder %s19, 1
      %s229 = scalar_select %p228, %s19, 1
      %p230 = scmp.lt.s32.totalorder %s227, 1
      %s231 = scalar_select %p230, %s227, 1
      %s232 = smul.addr %s229, 4
      %s233 = sadd.s32 %s231, %s232
      %s234 = smul.addr %s233, 4
      %s235 = scalar_lea.vmem %s4, %s234
      %s236 = smul.u32 2, %s20
      %v237 = vld [vmem:[%s1] sm:$0xff]
      %v238 = vld [vmem:[%s1 + $0x8] sm:$0xff]
      %v239 = vld [vmem:[%s225] sm:$0xff]
      %v240 = vld [vmem:[%s225 + $0x8] sm:$0xff]
      %v241 = vunpack.c.l.bf16 %v239
      %v242 = vunpack.c.h.bf16 %v239
      %v243 = vunpack.c.l.bf16 %v240
      %v244 = vunpack.c.h.bf16 %v240
      %vm245 = vcmask 130048
      %v247 = vsel %vm245, %v237, 0
      %v250 = vsel %vm245, %v238, 0
      %252 = vmatprep.subr.mxu0 0.0
      %253 = vmatpush1.msra.mxu0 0.0
      %254 = vmatprep.subr.mxu0 0.0
      %255 = vmatpush1.msra.mxu0 0.0
      %256 = vmatprep.subr.mxu0 0.0
      %257 = vmatpush1.msra.mxu0 0.0
      %258 = vmatprep.subr.mxu0 0.0
      %259 = vmatpush1.msra.mxu0 0.0
      %260 = vmatprep.subr.mxu0 0.0
      %261 = vmatpush1.msra.mxu0 0.0
      %262 = vmatprep.subr.mxu0 0.0
      %263 = vmatpush1.msra.mxu0 0.0
      %264 = vmatprep.subr.mxu0 0.0
      %265 = vmatpush1.msra.mxu0 0.0
      %266 = vmatprep.subr.mxu0 0.0
      %267 = vmatpush1.msra.mxu0 0.0
      %268 = vmatprep.subr.mxu0 0.0
      %269 = vmatpush1.msra.mxu0 0.0
      %270 = vmatprep.subr.mxu0 0.0
      %271 = vmatpush1.msra.mxu0 0.0
      %272 = vmatprep.subr.mxu0 0.0
      %273 = vmatpush1.msra.mxu0 0.0
      %274 = vmatprep.subr.mxu0 0.0
      %275 = vmatpush1.msra.mxu0 0.0
      %276 = vmatprep.subr.mxu0 0.0
      %277 = vmatpush1.msra.mxu0 0.0
      %278 = vmatprep.subr.mxu0 0.0
      %279 = vmatpush1.msra.mxu0 0.0
      %280 = vmatprep.subr.mxu0 %v244
      %281 = vmatpush1.msra.mxu0 %v243
      %282 = vmatprep.subr.mxu0 %v242
      %283 = vmatpush1.msra.mxu0 %v241
      %284 = vmatprep.subr.mxu0 0.0
      %285 = vmatpush2.msra.mxu0 0.0
      %286 = vmatprep.subr.mxu0 0.0
      %287 = vmatpush2.msra.mxu0 0.0
      %288 = vmatprep.subr.mxu0 0.0
      %289 = vmatpush2.msra.mxu0 0.0
      %290 = vmatprep.subr.mxu0 0.0
      %291 = vmatpush2.msra.mxu0 0.0
      %292 = vmatprep.subr.mxu0 0.0
      %293 = vmatpush2.msra.mxu0 0.0
      %294 = vmatprep.subr.mxu0 0.0
      %295 = vmatpush2.msra.mxu0 0.0
      %296 = vmatprep.subr.mxu0 0.0
      %297 = vmatpush2.msra.mxu0 0.0
      %298 = vmatprep.subr.mxu0 0.0
      %299 = vmatpush2.msra.mxu0 0.0
      %300 = vmatprep.subr.mxu0 0.0
      %301 = vmatpush2.msra.mxu0 0.0
      %302 = vmatprep.subr.mxu0 0.0
      %303 = vmatpush2.msra.mxu0 0.0
      %304 = vmatprep.subr.mxu0 0.0
      %305 = vmatpush2.msra.mxu0 0.0
      %306 = vmatprep.subr.mxu0 0.0
      %307 = vmatpush2.msra.mxu0 0.0
      %308 = vmatprep.subr.mxu0 0.0
      %309 = vmatpush2.msra.mxu0 0.0
      %310 = vmatprep.subr.mxu0 0.0
      %311 = vmatpush2.msra.mxu0 0.0
      %312 = vmatprep.subr.mxu0 0.0
      %313 = vmatpush2.msra.mxu0 0.0
      %314 = vmatprep.subr.mxu0 0.0
      %315 = vmatpush2.msra.mxu0 0.0
      %316 = vmatprep.mubr.f32.mxu0 0.0
      %317 = vmatmul.mubr.f32.gmra.mxu0 %v247
      %v318 = vpop.f32.mrf.mxu0
      %v319 = vadd.f32 0.0, %v318
      %v320 = vpop.f32.mrf.mxu0
      %v321 = vadd.f32 0.0, %v320
      %322 = vmatprep.mubr.f32.mxu0 0.0
      %323 = vmatmul.mubr.f32.gmra.mxu0 %v250
      %v324 = vpop.f32.mrf.mxu0
      %v325 = vadd.f32 0.0, %v324
      %v326 = vpop.f32.mrf.mxu0
      %v327 = vadd.f32 0.0, %v326
      %328 = vdwg.mxu0
      %v329 = vld [vmem:[%s2] sm:$0xff]
      %v330 = vld [vmem:[%s2 + $0x8] sm:$0xff]
      %332 = vset.pattern.permute.xlu0 0
      %333 = vperm.xlu0 %332, %v329
      %v334 = vpop.permute.xlu0 %333
      %337 = vset.pattern.permute.xlu0 0
      %338 = vperm.xlu0 %337, %v330
      %v339 = vpop.permute.xlu0 %338
      %v341 = vmul.f32 %v319, %v334
      %v342 = vmul.f32 %v321, %v334
      %v343 = vmul.f32 %v325, %v339
      %v344 = vmul.f32 %v327, %v339
      %v345 = vld [vmem:[%s3] sm:$0xff]
      %v346 = vld [vmem:[%s3 + $0x8] sm:$0xff]
      %348 = vset.pattern.permute.xlu0 0
      %349 = vperm.xlu0 %348, %v345
      %v350 = vpop.permute.xlu0 %349
      %353 = vset.pattern.permute.xlu0 0
      %354 = vperm.xlu0 %353, %v346
      %v355 = vpop.permute.xlu0 %354
      %v357 = vadd.f32 %v341, %v350
      %v358 = vadd.f32 %v342, %v350
      %v359 = vadd.f32 %v343, %v355
      %v360 = vadd.f32 %v344, %v355
      %v361 = vsub.f32 0.0, %v357
      %v362 = vsub.f32 0.0, %v358
      %v363 = vsub.f32 0.0, %v359
      %v364 = vsub.f32 0.0, %v360
      %v365 = vmul.f32 %v361, 1.442695
      %v366 = vpow.pop %v365
      %v367 = vmul.f32 %v362, 1.442695
      %v368 = vpow.pop %v367
      %v369 = vmul.f32 %v363, 1.442695
      %v370 = vpow.pop %v369
      %v371 = vmul.f32 %v364, 1.442695
      %v372 = vpow.pop %v371
      %v373 = vadd.f32 %v366, 1.0
      %v374 = vadd.f32 %v368, 1.0
      %v375 = vadd.f32 %v370, 1.0
      %v376 = vadd.f32 %v372, 1.0
      %v377 = vrcp.pop %v373
      %v378 = vrcp.pop %v374
      %v379 = vrcp.pop %v375
      %v380 = vrcp.pop %v376
      %v381 = vmul.f32 %v357, %v377
      %v382 = vmul.f32 %v358, %v378
      %v383 = vmul.f32 %v359, %v379
      %v384 = vmul.f32 %v360, %v380
      %v385 = vpack.c.bf16 %v383, %v381
      %v386 = vpack.c.bf16 %v384, %v382
      %v389 = vunpack.c.l.b16 %v385
      %v390 = vunpack.c.l.b16 %v386
      %v391 = vunpack.c.h.b16 %v385
      %v392 = vunpack.c.h.b16 %v386
      %v393 = vpack.c.b16 %v390, %v389
      %v394 = vpack.c.b16 %v392, %v391
      %397 = vst [vmem:[%s235] sm:$0xff] %v393
      %398 = vst [vmem:[%s235 + $0x8] sm:$0xff] %v394
      %s399 = smul.u32 2, %s20
      %p400 = scmp.lt.s32.totalorder %s19, 1
      %s401 = scalar_select %p400, %s19, 1
      %p402 = scmp.lt.s32.totalorder %s399, 1
      %s403 = scalar_select %p402, %s399, 1
      %s404 = smul.addr %s401, 4
      %s405 = sadd.s32 %s403, %s404
      %s406 = smul.addr %s405, 4
      %s407 = scalar_lea.vmem %s4, %s406
      // Predicated region
      $region37: #{c2f_cmunextb_forward.3} parent=35 // pred_check
        %p408 = pneg %p138
      $region38: #{c2f_cmunextb_forward.3} parent=35 // pred_check_branch
        %410 = sbr.rel (%p408) target = $region40
      $region39: #{c2f_cmunextb_forward.3} parent=35 // pred_region
        %s411 = smul.u32 2, %s20
      $region40: #{c2f_cmunextb_forward.3} parent=35 // pred_fallthru
        _
    $region36: #{c2f_cmunextb_forward.3} parent=5 // pred_fallthru
      _
    %p412 = scmp.le.s32.totalorder 2, %s10
    // Predicated region
    $region41: #{c2f_cmunextb_forward.3} parent=5 // pred_check
      %p413 = pneg %p412
    $region42: #{c2f_cmunextb_forward.3} parent=5 // pred_check_branch
      %415 = sbr.rel (%p413) target = $region44
    $region43: #{c2f_cmunextb_forward.3} parent=5 // pred_region
      %s416 = ssub.s32 %s10, 2
      // Predicated region
      $region45: #{c2f_cmunextb_forward.3} parent=43 // pred_check
        %p417 = pneg %p144
      $region46: #{c2f_cmunextb_forward.3} parent=43 // pred_check_branch
        %419 = sbr.rel (%p417) target = $region48
      $region47: #{c2f_cmunextb_forward.3} parent=43 // pred_region
        %s420 = smul.u32 2, %s22
        %p421 = scmp.lt.s32.totalorder %s21, 1
        %s422 = scalar_select %p421, %s21, 1
        %p423 = scmp.lt.s32.totalorder %s420, 1
        %s424 = scalar_select %p423, %s420, 1
        %s425 = smul.addr %s422, 4
        %s426 = sadd.s32 %s424, %s425
        %s427 = smul.addr %s426, 4
        %s428 = scalar_lea.vmem %s4, %s427
      $region48: #{c2f_cmunextb_forward.3} parent=43 // pred_fallthru
        _
    $region44: #{c2f_cmunextb_forward.3} parent=5 // pred_fallthru
      _
  $region6: #{c2f_cmunextb_forward.3} parent=0 // loop_footer
    %s14 = sadd.s32 1, %s10
  $region7: #{c2f_cmunextb_forward.3} parent=0 // loop_footer_branch
    %9 = sbr.rel target = $region3
  $region8: #{c2f_cmunextb_forward.3} parent=0 // loop_exit
    _

// kernel: c2f_cmunextb_forward.5
$region0: #{c2f_cmunextb_forward.5}
  #allocation0 [shape = 'u32[]', space=smem, size = 0x4, offset = 0x4, fixed_abs, tag = 'smem constant byte address 0x4 - core index']
  #allocation1 [shape = 'u32[144,128]{1,0:T(1,128)}', space=vmem, size = 0x12000, scoped, tag = 'internal scratch']
  %s0 = inlined_call_operand.vmem [shape: bf16[2,16,256], index: 0, kind: input, shape index: {}]
  %s1 = inlined_call_operand.vmem [shape: bf16[2,8,256], index: 1, kind: input, shape index: {}]
  %s2 = inlined_call_operand.vmem [shape: f32[16,16], index: 2, kind: input, shape index: {}]
  %s3 = inlined_call_operand.vmem [shape: f32[16,8], index: 3, kind: input, shape index: {}]
  %s4 = inlined_call_operand.vmem [shape: f32[16,1], index: 4, kind: input, shape index: {}]
  %s5 = inlined_call_operand.vmem [shape: f32[16,1], index: 5, kind: input, shape index: {}]
  %s6 = inlined_call_operand.vmem [shape: f32[2,16,256], index: 6, kind: output, shape index: {}]
  %s7 = sld [smem:[#allocation0]]
  $region57: #{c2f_cmunextb_forward.5} parent=0
    _
  %s9 = ssub.s32 1, %s7
  %s10 = scalar_select 0, %s9, %s7
  loop: start=0, step=1, limit=4
  $region2: #{c2f_cmunextb_forward.5} parent=0 // loop_pre_header
    _
  $region3: #{c2f_cmunextb_forward.5} parent=0 // loop_header
    %s12 = sphi 0, %s16
    %p13 = scmp.ge.s32.totalorder %s12, 4
    %s19 = sphi 0, %s31
    %s20 = sphi 0, %s27
    %s21 = sphi 0, %s19
    %s22 = sphi 0, %s20
    %s23 = sphi 0, %s21
    %s24 = sphi 0, %s22
    %s36 = sphi 0, %s38
    %s39 = sphi 0, %s36
    %s40 = sphi 0, %s39
    %s56 = sphi 0, %s40
    %s64 = sphi 0, %s66
    %s67 = sphi 0, %s64
    %s68 = sphi 0, %s67
    %s84 = sphi 0, %s68
    %s88 = sphi 0, %s88
    %s90 = sphi 0, %s88
    %s91 = sphi 0, %s90
    %s105 = sphi 0, %s91
    %s109 = sphi 0, %s109
    %s111 = sphi 0, %s109
    %s112 = sphi 0, %s111
    %s126 = sphi 0, %s112
    %s130 = sphi 0, %s130
    %s132 = sphi 0, %s130
    %s133 = sphi 0, %s132
    %s147 = sphi 0, %s133
    %s151 = sphi 0, %s151
    %s153 = sphi 0, %s151
    %s154 = sphi 0, %s153
    %s168 = sphi 0, %s154
    %s176 = sphi 0, %s178
    %s179 = sphi 0, %s176
    %s180 = sphi 0, %s179
    %s196 = sphi 0, %s180
  $region4: #{c2f_cmunextb_forward.5} parent=0 // loop_header_branch
    %15 = sbr.rel (%p13) target = $region8
  $region5: #{c2f_cmunextb_forward.5} parent=0 // loop_body
    %s17 = ssub.s32 %s12, 1
    %s18 = ssub.s32 %s12, 2
    %s25 = sadd.s32 1, %s20
    %p26 = scmp.ge.s32.totalorder %s25, 1
    %s27 = scalar_select %p26, 0, %s25
    %s28 = sadd.s32 1, %s19
    %s29 = scalar_select %p26, %s28, %s19
    %p30 = scmp.ge.s32.totalorder %s29, 2
    %s31 = scalar_select %p30, 0, %s29
    %s32 = ssub.s32 %s19, %s31
    %s33 = ssub.s32 %s20, %s27
    %s34 = sor.u32 %s32, %s33
    %p35 = scmp.eq.s32.totalorder %s34, 0
    %s37 = sadd.s32 %s36, 1
    %s38 = scalar_select %p35, %s36, %s37
    %p41 = pneg %p35
    %p42 = scmp.eq.s32.totalorder %s12, 1
    %p43 = por %p41, %p42
    %p44 = scmp.ne.s32.totalorder %s36, %s39
    %p45 = scmp.eq.s32.totalorder %s12, 0
    %p46 = por %p44, %p45
    %p47 = scmp.ne.s32.totalorder %s36, %s39
    %p48 = scmp.eq.s32.totalorder %s17, 1
    %p49 = por %p47, %p48
    %p50 = scmp.ne.s32.totalorder %s39, %s40
    %p51 = scmp.eq.s32.totalorder %s17, 0
    %p52 = por %p50, %p51
    %p53 = scmp.ne.s32.totalorder %s39, %s40
    %p54 = scmp.eq.s32.totalorder %s18, 1
    %p55 = por %p53, %p54
    %p57 = scmp.ne.s32.totalorder %s40, %s56
    %p58 = scmp.eq.s32.totalorder %s18, 0
    %p59 = por %p57, %p58
    %s60 = ssub.s32 %s19, %s31
    %s61 = ssub.s32 %s20, %s27
    %s62 = sor.u32 %s60, %s61
    %p63 = scmp.eq.s32.totalorder %s62, 0
    %s65 = sadd.s32 %s64, 1
    %s66 = scalar_select %p63, %s64, %s65
    %p69 = pneg %p63
    %p70 = scmp.eq.s32.totalorder %s12, 1
    %p71 = por %p69, %p70
    %p72 = scmp.ne.s32.totalorder %s64, %s67
    %p73 = scmp.eq.s32.totalorder %s12, 0
    %p74 = por %p72, %p73
    %p75 = scmp.ne.s32.totalorder %s64, %s67
    %p76 = scmp.eq.s32.totalorder %s17, 1
    %p77 = por %p75, %p76
    %p78 = scmp.ne.s32.totalorder %s67, %s68
    %p79 = scmp.eq.s32.totalorder %s17, 0
    %p80 = por %p78, %p79
    %p81 = scmp.ne.s32.totalorder %s67, %s68
    %p82 = scmp.eq.s32.totalorder %s18, 1
    %p83 = por %p81, %p82
    %p85 = scmp.ne.s32.totalorder %s68, %s84
    %p86 = scmp.eq.s32.totalorder %s18, 0
    %p87 = por %p85, %p86
    %s89 = sadd.s32 %s88, 1
    %p92 = scmp.eq.s32.totalorder %s12, 1
    %p93 = scmp.ne.s32.totalorder %s88, %s90
    %p94 = scmp.eq.s32.totalorder %s12, 0
    %p95 = por %p93, %p94
    %p96 = scmp.ne.s32.totalorder %s88, %s90
    %p97 = scmp.eq.s32.totalorder %s17, 1
    %p98 = por %p96, %p97
    %p99 = scmp.ne.s32.totalorder %s90, %s91
    %p100 = scmp.eq.s32.totalorder %s17, 0
    %p101 = por %p99, %p100
    %p102 = scmp.ne.s32.totalorder %s90, %s91
    %p103 = scmp.eq.s32.totalorder %s18, 1
    %p104 = por %p102, %p103
    %p106 = scmp.ne.s32.totalorder %s91, %s105
    %p107 = scmp.eq.s32.totalorder %s18, 0
    %p108 = por %p106, %p107
    %s110 = sadd.s32 %s109, 1
    %p113 = scmp.eq.s32.totalorder %s12, 1
    %p114 = scmp.ne.s32.totalorder %s109, %s111
    %p115 = scmp.eq.s32.totalorder %s12, 0
    %p116 = por %p114, %p115
    %p117 = scmp.ne.s32.totalorder %s109, %s111
    %p118 = scmp.eq.s32.totalorder %s17, 1
    %p119 = por %p117, %p118
    %p120 = scmp.ne.s32.totalorder %s111, %s112
    %p121 = scmp.eq.s32.totalorder %s17, 0
    %p122 = por %p120, %p121
    %p123 = scmp.ne.s32.totalorder %s111, %s112
    %p124 = scmp.eq.s32.totalorder %s18, 1
    %p125 = por %p123, %p124
    %p127 = scmp.ne.s32.totalorder %s112, %s126
    %p128 = scmp.eq.s32.totalorder %s18, 0
    %p129 = por %p127, %p128
    %s131 = sadd.s32 %s130, 1
    %p134 = scmp.eq.s32.totalorder %s12, 1
    %p135 = scmp.ne.s32.totalorder %s130, %s132
    %p136 = scmp.eq.s32.totalorder %s12, 0
    %p137 = por %p135, %p136
    %p138 = scmp.ne.s32.totalorder %s130, %s132
    %p139 = scmp.eq.s32.totalorder %s17, 1
    %p140 = por %p138, %p139
    %p141 = scmp.ne.s32.totalorder %s132, %s133
    %p142 = scmp.eq.s32.totalorder %s17, 0
    %p143 = por %p141, %p142
    %p144 = scmp.ne.s32.totalorder %s132, %s133
    %p145 = scmp.eq.s32.totalorder %s18, 1
    %p146 = por %p144, %p145
    %p148 = scmp.ne.s32.totalorder %s133, %s147
    %p149 = scmp.eq.s32.totalorder %s18, 0
    %p150 = por %p148, %p149
    %s152 = sadd.s32 %s151, 1
    %p155 = scmp.eq.s32.totalorder %s12, 1
    %p156 = scmp.ne.s32.totalorder %s151, %s153
    %p157 = scmp.eq.s32.totalorder %s12, 0
    %p158 = por %p156, %p157
    %p159 = scmp.ne.s32.totalorder %s151, %s153
    %p160 = scmp.eq.s32.totalorder %s17, 1
    %p161 = por %p159, %p160
    %p162 = scmp.ne.s32.totalorder %s153, %s154
    %p163 = scmp.eq.s32.totalorder %s17, 0
    %p164 = por %p162, %p163
    %p165 = scmp.ne.s32.totalorder %s153, %s154
    %p166 = scmp.eq.s32.totalorder %s18, 1
    %p167 = por %p165, %p166
    %p169 = scmp.ne.s32.totalorder %s154, %s168
    %p170 = scmp.eq.s32.totalorder %s18, 0
    %p171 = por %p169, %p170
    %s172 = ssub.s32 %s19, %s31
    %s173 = ssub.s32 %s20, %s27
    %s174 = sor.u32 %s172, %s173
    %p175 = scmp.eq.s32.totalorder %s174, 0
    %s177 = sadd.s32 %s176, 1
    %s178 = scalar_select %p175, %s176, %s177
    %p181 = pneg %p175
    %p182 = scmp.eq.s32.totalorder %s12, 1
    %p183 = por %p181, %p182
    %p184 = scmp.ne.s32.totalorder %s176, %s179
    %p185 = scmp.eq.s32.totalorder %s12, 0
    %p186 = por %p184, %p185
    %p187 = scmp.ne.s32.totalorder %s176, %s179
    %p188 = scmp.eq.s32.totalorder %s17, 1
    %p189 = por %p187, %p188
    %p190 = scmp.ne.s32.totalorder %s179, %s180
    %p191 = scmp.eq.s32.totalorder %s17, 0
    %p192 = por %p190, %p191
    %p193 = scmp.ne.s32.totalorder %s179, %s180
    %p194 = scmp.eq.s32.totalorder %s18, 1
    %p195 = por %p193, %p194
    %p197 = scmp.ne.s32.totalorder %s180, %s196
    %p198 = scmp.eq.s32.totalorder %s18, 0
    %p199 = por %p197, %p198
    %p200 = scmp.le.s32.totalorder 1, %s12
    %p201 = scmp.lt.s32.totalorder %s12, 3
    %p202 = pnand %p200, %p201
    %p203 = pneg %p202
    // Predicated region
    $region9: #{c2f_cmunextb_forward.5} parent=5 // pred_check
      _
    $region10: #{c2f_cmunextb_forward.5} parent=5 // pred_check_branch
      %205 = sbr.rel (%p202) target = $region12
    $region11: #{c2f_cmunextb_forward.5} parent=5 // pred_region
      %s206 = ssub.s32 %s12, 1
      // Predicated region
      $region13: #{c2f_cmunextb_forward.5} parent=11 // pred_check
        %p207 = pneg %p101
      $region14: #{c2f_cmunextb_forward.5} parent=11 // pred_check_branch
        %209 = sbr.rel (%p207) target = $region16
      $region15: #{c2f_cmunextb_forward.5} parent=11 // pred_region
        _
      $region16: #{c2f_cmunextb_forward.5} parent=11 // pred_fallthru
        _
      // Predicated region
      $region17: #{c2f_cmunextb_forward.5} parent=11 // pred_check
        %p210 = pneg %p122
      $region18: #{c2f_cmunextb_forward.5} parent=11 // pred_check_branch
        %212 = sbr.rel (%p210) target = $region20
      $region19: #{c2f_cmunextb_forward.5} parent=11 // pred_region
        _
      $region20: #{c2f_cmunextb_forward.5} parent=11 // pred_fallthru
        _
      // Predicated region
      $region21: #{c2f_cmunextb_forward.5} parent=11 // pred_check
        %p213 = pneg %p143
      $region22: #{c2f_cmunextb_forward.5} parent=11 // pred_check_branch
        %215 = sbr.rel (%p213) target = $region24
      $region23: #{c2f_cmunextb_forward.5} parent=11 // pred_region
        _
      $region24: #{c2f_cmunextb_forward.5} parent=11 // pred_fallthru
        _
      // Predicated region
      $region25: #{c2f_cmunextb_forward.5} parent=11 // pred_check
        %p216 = pneg %p164
      $region26: #{c2f_cmunextb_forward.5} parent=11 // pred_check_branch
        %218 = sbr.rel (%p216) target = $region28
      $region27: #{c2f_cmunextb_forward.5} parent=11 // pred_region
        _
      $region28: #{c2f_cmunextb_forward.5} parent=11 // pred_fallthru
        _
    $region12: #{c2f_cmunextb_forward.5} parent=5 // pred_fallthru
      _
    %p219 = scmp.lt.s32.totalorder %s12, 2
    // Predicated region
    $region29: #{c2f_cmunextb_forward.5} parent=5 // pred_check
      %p220 = pneg %p219
    $region30: #{c2f_cmunextb_forward.5} parent=5 // pred_check_branch
      %222 = sbr.rel (%p220) target = $region32
    $region31: #{c2f_cmunextb_forward.5} parent=5 // pred_region
      // Predicated region
      $region33: #{c2f_cmunextb_forward.5} parent=31 // pred_check
        %p223 = pneg %p46
      $region34: #{c2f_cmunextb_forward.5} parent=31 // pred_check_branch
        %225 = sbr.rel (%p223) target = $region36
      $region35: #{c2f_cmunextb_forward.5} parent=31 // pred_region
        %s226 = smul.u32 2, %s20
        %p227 = scmp.lt.s32.totalorder %s19, 1
        %s228 = scalar_select %p227, %s19, 1
        %p229 = scmp.lt.s32.totalorder %s226, 1
        %s230 = scalar_select %p229, %s226, 1
        %s231 = smul.addr %s228, 4
        %s232 = sadd.s32 %s230, %s231
        %s233 = smul.addr %s232, 4
        %s234 = scalar_lea.vmem %s0, %s233
        %s235 = smul.u32 2, %s20
      $region36: #{c2f_cmunextb_forward.5} parent=31 // pred_fallthru
        _
      // Predicated region
      $region37: #{c2f_cmunextb_forward.5} parent=31 // pred_check
        %p236 = pneg %p74
      $region38: #{c2f_cmunextb_forward.5} parent=31 // pred_check_branch
        %238 = sbr.rel (%p236) target = $region40
      $region39: #{c2f_cmunextb_forward.5} parent=31 // pred_region
        %s239 = smul.u32 2, %s20
        %p240 = scmp.lt.s32.totalorder %s19, 1
        %s241 = scalar_select %p240, %s19, 1
        %p242 = scmp.lt.s32.totalorder %s239, 1
        %s243 = scalar_select %p242, %s239, 1
        %s244 = smul.addr %s241, 2
        %s245 = sadd.s32 %s243, %s244
        %s246 = smul.addr %s245, 4
        %s247 = scalar_lea.vmem %s1, %s246
        %s248 = smul.u32 2, %s20
      $region40: #{c2f_cmunextb_forward.5} parent=31 // pred_fallthru
        _
    $region32: #{c2f_cmunextb_forward.5} parent=5 // pred_fallthru
      _
    %p249 = scmp.le.s32.totalorder 1, %s12
    %p250 = scmp.lt.s32.totalorder %s12, 3
    %p251 = pnand %p249, %p250
    %p252 = pneg %p251
    // Predicated region
    $region41: #{c2f_cmunextb_forward.5} parent=5 // pred_check
      _
    $region42: #{c2f_cmunextb_forward.5} parent=5 // pred_check_branch
      %254 = sbr.rel (%p251) target = $region44
    $region43: #{c2f_cmunextb_forward.5} parent=5 // pred_region
      %s255 = ssub.s32 %s12, 1
      %s256 = smul.u32 2, %s22
      %p257 = scmp.lt.s32.totalorder %s21, 1
      %s258 = scalar_select %p257, %s21, 1
      %p259 = scmp.lt.s32.totalorder %s256, 1
      %s260 = scalar_select %p259, %s256, 1
      %s261 = smul.addr %s258, 4
      %s262 = sadd.s32 %s260, %s261
      %s263 = smul.addr %s262, 4
      %s264 = scalar_lea.vmem %s0, %s263
      %p265 = pneg %p52
      %p266 = pneg %p49
      %s267 = smul.u32 2, %s22
      %p268 = scmp.lt.s32.totalorder %s21, 1
      %s269 = scalar_select %p268, %s21, 1
      %p270 = scmp.lt.s32.totalorder %s267, 1
      %s271 = scalar_select %p270, %s267, 1
      %s272 = smul.addr %s269, 2
      %s273 = sadd.s32 %s271, %s272
      %s274 = smul.addr %s273, 4
      %s275 = scalar_lea.vmem %s1, %s274
      %p276 = pneg %p80
      %p277 = pneg %p77
      %p278 = pneg %p101
      %p279 = pneg %p98
      %p280 = pneg %p122
      %p281 = pneg %p119
      %p282 = pneg %p143
      %p283 = pneg %p140
      %p284 = pneg %p164
      %p285 = pneg %p161
      %p286 = pneg %p192
      %p287 = pneg %p189
      %s288 = smul.u32 2, %s22
      %p289 = scmp.lt.s32.totalorder %s21, 1
      %s290 = scalar_select %p289, %s21, 1
      %p291 = scmp.lt.s32.totalorder %s288, 1
      %s292 = scalar_select %p291, %s288, 1
      %s293 = smul.addr %s290, 4
      %s294 = sadd.s32 %s292, %s293
      %s295 = smul.addr %s294, 8
      %s296 = scalar_lea.vmem %s6, %s295
      %s297 = smul.u32 2, %s22
      %p298 = scmp.lt.s32.totalorder %s21, 1
      %s299 = scalar_select %p298, %s21, 1
      %p300 = scmp.lt.s32.totalorder %s297, 1
      %s301 = scalar_select %p300, %s297, 1
      %s302 = smul.addr %s299, 4
      %s303 = sadd.s32 %s301, %s302
      %s304 = smul.addr %s303, 4
      %s305 = scalar_lea.vmem %s0, %s304
      %s306 = smul.u32 2, %s22
      %s307 = smul.u32 2, %s22
      %p308 = scmp.lt.s32.totalorder %s21, 1
      %s309 = scalar_select %p308, %s21, 1
      %p310 = scmp.lt.s32.totalorder %s307, 1
      %s311 = scalar_select %p310, %s307, 1
      %s312 = smul.addr %s309, 2
      %s313 = sadd.s32 %s311, %s312
      %s314 = smul.addr %s313, 4
      %s315 = scalar_lea.vmem %s1, %s314
      %s316 = smul.u32 2, %s22
      %s317 = smul.u32 2, %s22
      %p318 = scmp.lt.s32.totalorder %s21, 1
      %s319 = scalar_select %p318, %s21, 1
      %p320 = scmp.lt.s32.totalorder %s317, 1
      %s321 = scalar_select %p320, %s317, 1
      %s322 = smul.addr %s319, 4
      %s323 = sadd.s32 %s321, %s322
      %s324 = smul.addr %s323, 8
      %s325 = scalar_lea.vmem %s6, %s324
      %s326 = smul.u32 2, %s22
      %v327 = vld [vmem:[%s2] sm:$0xff]
      %v328 = vld [vmem:[%s2 + $0x8] sm:$0xff]
      %v329 = vld [vmem:[%s305] sm:$0xff]
      %v330 = vld [vmem:[%s305 + $0x8] sm:$0xff]
      %v331 = vunpack.c.l.bf16 %v329
      %v332 = vunpack.c.h.bf16 %v329
      %v333 = vunpack.c.l.bf16 %v330
      %v334 = vunpack.c.h.bf16 %v330
      %v335 = vld [vmem:[%s3] sm:$0xff]
      %v336 = vld [vmem:[%s3 + $0x8] sm:$0xff]
      %v337 = vld [vmem:[%s315] sm:$0xff]
      %v338 = vunpack.c.l.bf16 %v337
      %v339 = vunpack.c.h.bf16 %v337
      %vm340 = vcmask 64512
      %v342 = vsel %vm340, %v335, 0
      %v345 = vsel %vm340, %v336, 0
      %347 = vmatprep.subr.mxu0 0.0
      %348 = vmatpush1.msra.mxu0 0.0
      %349 = vmatprep.subr.mxu0 0.0
      %350 = vmatpush1.msra.mxu0 0.0
      %351 = vmatprep.subr.mxu0 0.0
      %352 = vmatpush1.msra.mxu0 0.0
      %353 = vmatprep.subr.mxu0 0.0
      %354 = vmatpush1.msra.mxu0 0.0
      %355 = vmatprep.subr.mxu0 0.0
      %356 = vmatpush1.msra.mxu0 0.0
      %357 = vmatprep.subr.mxu0 0.0
      %358 = vmatpush1.msra.mxu0 0.0
      %359 = vmatprep.subr.mxu0 0.0
      %360 = vmatpush1.msra.mxu0 0.0
      %361 = vmatprep.subr.mxu0 0.0
      %362 = vmatpush1.msra.mxu0 0.0
      %363 = vmatprep.subr.mxu0 0.0
      %364 = vmatpush1.msra.mxu0 0.0
      %365 = vmatprep.subr.mxu0 0.0
      %366 = vmatpush1.msra.mxu0 0.0
      %367 = vmatprep.subr.mxu0 0.0
      %368 = vmatpush1.msra.mxu0 0.0
      %369 = vmatprep.subr.mxu0 0.0
      %370 = vmatpush1.msra.mxu0 0.0
      %371 = vmatprep.subr.mxu0 0.0
      %372 = vmatpush1.msra.mxu0 0.0
      %373 = vmatprep.subr.mxu0 0.0
      %374 = vmatpush1.msra.mxu0 0.0
      %375 = vmatprep.subr.mxu0 0.0
      %376 = vmatpush1.msra.mxu0 0.0
      %377 = vmatprep.subr.mxu0 %v339
      %378 = vmatpush1.msra.mxu0 %v338
      %379 = vmatprep.subr.mxu0 0.0
      %380 = vmatpush2.msra.mxu0 0.0
      %381 = vmatprep.subr.mxu0 0.0
      %382 = vmatpush2.msra.mxu0 0.0
      %383 = vmatprep.subr.mxu0 0.0
      %384 = vmatpush2.msra.mxu0 0.0
      %385 = vmatprep.subr.mxu0 0.0
      %386 = vmatpush2.msra.mxu0 0.0
      %387 = vmatprep.subr.mxu0 0.0
      %388 = vmatpush2.msra.mxu0 0.0
      %389 = vmatprep.subr.mxu0 0.0
      %390 = vmatpush2.msra.mxu0 0.0
      %391 = vmatprep.subr.mxu0 0.0
      %392 = vmatpush2.msra.mxu0 0.0
      %393 = vmatprep.subr.mxu0 0.0
      %394 = vmatpush2.msra.mxu0 0.0
      %395 = vmatprep.subr.mxu0 0.0
      %396 = vmatpush2.msra.mxu0 0.0
      %397 = vmatprep.subr.mxu0 0.0
      %398 = vmatpush2.msra.mxu0 0.0
      %399 = vmatprep.subr.mxu0 0.0
      %400 = vmatpush2.msra.mxu0 0.0
      %401 = vmatprep.subr.mxu0 0.0
      %402 = vmatpush2.msra.mxu0 0.0
      %403 = vmatprep.subr.mxu0 0.0
      %404 = vmatpush2.msra.mxu0 0.0
      %405 = vmatprep.subr.mxu0 0.0
      %406 = vmatpush2.msra.mxu0 0.0
      %407 = vmatprep.subr.mxu0 0.0
      %408 = vmatpush2.msra.mxu0 0.0
      %409 = vmatprep.subr.mxu0 0.0
      %410 = vmatpush2.msra.mxu0 0.0
      %411 = vmatprep.mubr.f32.mxu0 0.0
      %412 = vmatmul.mubr.f32.gmra.mxu0 %v342
      %v413 = vpop.f32.mrf.mxu0
      %v414 = vadd.f32 0.0, %v413
      %v415 = vpop.f32.mrf.mxu0
      %v416 = vadd.f32 0.0, %v415
      %417 = vmatprep.mubr.f32.mxu0 0.0
      %418 = vmatmul.mubr.f32.gmra.mxu0 %v345
      %v419 = vpop.f32.mrf.mxu0
      %v420 = vadd.f32 0.0, %v419
      %v421 = vpop.f32.mrf.mxu0
      %v422 = vadd.f32 0.0, %v421
      %423 = vdwg.mxu0
      %vm424 = vcmask 130048
      %v426 = vsel %vm424, %v327, 0
      %v429 = vsel %vm424, %v328, 0
      %431 = vmatprep.subr.mxu0 0.0
      %432 = vmatpush1.msra.mxu0 0.0
      %433 = vmatprep.subr.mxu0 0.0
      %434 = vmatpush1.msra.mxu0 0.0
      %435 = vmatprep.subr.mxu0 0.0
      %436 = vmatpush1.msra.mxu0 0.0
      %437 = vmatprep.subr.mxu0 0.0
      %438 = vmatpush1.msra.mxu0 0.0
      %439 = vmatprep.subr.mxu0 0.0
      %440 = vmatpush1.msra.mxu0 0.0
      %441 = vmatprep.subr.mxu0 0.0
      %442 = vmatpush1.msra.mxu0 0.0
      %443 = vmatprep.subr.mxu0 0.0
      %444 = vmatpush1.msra.mxu0 0.0
      %445 = vmatprep.subr.mxu0 0.0
      %446 = vmatpush1.msra.mxu0 0.0
      %447 = vmatprep.subr.mxu0 0.0
      %448 = vmatpush1.msra.mxu0 0.0
      %449 = vmatprep.subr.mxu0 0.0
      %450 = vmatpush1.msra.mxu0 0.0
      %451 = vmatprep.subr.mxu0 0.0
      %452 = vmatpush1.msra.mxu0 0.0
      %453 = vmatprep.subr.mxu0 0.0
      %454 = vmatpush1.msra.mxu0 0.0
      %455 = vmatprep.subr.mxu0 0.0
      %456 = vmatpush1.msra.mxu0 0.0
      %457 = vmatprep.subr.mxu0 0.0
      %458 = vmatpush1.msra.mxu0 0.0
      %459 = vmatprep.subr.mxu0 %v334
      %460 = vmatpush1.msra.mxu0 %v333
      %461 = vmatprep.subr.mxu0 %v332
      %462 = vmatpush1.msra.mxu0 %v331
      %463 = vmatprep.subr.mxu0 0.0
      %464 = vmatpush2.msra.mxu0 0.0
      %465 = vmatprep.subr.mxu0 0.0
      %466 = vmatpush2.msra.mxu0 0.0
      %467 = vmatprep.subr.mxu0 0.0
      %468 = vmatpush2.msra.mxu0 0.0
      %469 = vmatprep.subr.mxu0 0.0
      %470 = vmatpush2.msra.mxu0 0.0
      %471 = vmatprep.subr.mxu0 0.0
      %472 = vmatpush2.msra.mxu0 0.0
      %473 = vmatprep.subr.mxu0 0.0
      %474 = vmatpush2.msra.mxu0 0.0
      %475 = vmatprep.subr.mxu0 0.0
      %476 = vmatpush2.msra.mxu0 0.0
      %477 = vmatprep.subr.mxu0 0.0
      %478 = vmatpush2.msra.mxu0 0.0
      %479 = vmatprep.subr.mxu0 0.0
      %480 = vmatpush2.msra.mxu0 0.0
      %481 = vmatprep.subr.mxu0 0.0
      %482 = vmatpush2.msra.mxu0 0.0
      %483 = vmatprep.subr.mxu0 0.0
      %484 = vmatpush2.msra.mxu0 0.0
      %485 = vmatprep.subr.mxu0 0.0
      %486 = vmatpush2.msra.mxu0 0.0
      %487 = vmatprep.subr.mxu0 0.0
      %488 = vmatpush2.msra.mxu0 0.0
      %489 = vmatprep.subr.mxu0 0.0
      %490 = vmatpush2.msra.mxu0 0.0
      %491 = vmatprep.subr.mxu0 0.0
      %492 = vmatpush2.msra.mxu0 0.0
      %493 = vmatprep.subr.mxu0 0.0
      %494 = vmatpush2.msra.mxu0 0.0
      %495 = vmatprep.mubr.f32.mxu0 0.0
      %496 = vmatmul.mubr.f32.gmra.mxu0 %v426
      %v497 = vpop.f32.mrf.mxu0
      %v498 = vadd.f32 %v414, %v497
      %v499 = vpop.f32.mrf.mxu0
      %v500 = vadd.f32 %v416, %v499
      %501 = vmatprep.mubr.f32.mxu0 0.0
      %502 = vmatmul.mubr.f32.gmra.mxu0 %v429
      %v503 = vpop.f32.mrf.mxu0
      %v504 = vadd.f32 %v420, %v503
      %v505 = vpop.f32.mrf.mxu0
      %v506 = vadd.f32 %v422, %v505
      %507 = vdwg.mxu0
      %v508 = vld [vmem:[%s4] sm:$0xff]
      %v509 = vld [vmem:[%s4 + $0x8] sm:$0xff]
      %511 = vset.pattern.permute.xlu0 0
      %512 = vperm.xlu0 %511, %v508
      %v513 = vpop.permute.xlu0 %512
      %516 = vset.pattern.permute.xlu0 0
      %517 = vperm.xlu0 %516, %v509
      %v518 = vpop.permute.xlu0 %517
      %v520 = vmul.f32 %v498, %v513
      %v521 = vmul.f32 %v500, %v513
      %v522 = vmul.f32 %v504, %v518
      %v523 = vmul.f32 %v506, %v518
      %v524 = vld [vmem:[%s5] sm:$0xff]
      %v525 = vld [vmem:[%s5 + $0x8] sm:$0xff]
      %527 = vset.pattern.permute.xlu0 0
      %528 = vperm.xlu0 %527, %v524
      %v529 = vpop.permute.xlu0 %528
      %532 = vset.pattern.permute.xlu0 0
      %533 = vperm.xlu0 %532, %v525
      %v534 = vpop.permute.xlu0 %533
      %v536 = vadd.f32 %v520, %v529
      %v537 = vadd.f32 %v521, %v529
      %v538 = vadd.f32 %v522, %v534
      %v539 = vadd.f32 %v523, %v534
      %v540 = vsub.f32 0.0, %v536
      %v541 = vsub.f32 0.0, %v537
      %v542 = vsub.f32 0.0, %v538
      %v543 = vsub.f32 0.0, %v539
      %v544 = vmul.f32 %v540, 1.442695
      %v545 = vpow.pop %v544
      %v546 = vmul.f32 %v541, 1.442695
      %v547 = vpow.pop %v546
      %v548 = vmul.f32 %v542, 1.442695
      %v549 = vpow.pop %v548
      %v550 = vmul.f32 %v543, 1.442695
      %v551 = vpow.pop %v550
      %v552 = vadd.f32 %v545, 1.0
      %v553 = vadd.f32 %v547, 1.0
      %v554 = vadd.f32 %v549, 1.0
      %v555 = vadd.f32 %v551, 1.0
      %v556 = vrcp.pop %v552
      %v557 = vrcp.pop %v553
      %v558 = vrcp.pop %v554
      %v559 = vrcp.pop %v555
      %v560 = vmul.f32 %v536, %v556
      %v561 = vmul.f32 %v537, %v557
      %v562 = vmul.f32 %v538, %v558
      %v563 = vmul.f32 %v539, %v559
      %564 = vst [vmem:[%s325] sm:$0xff] %v560
      %565 = vst [vmem:[%s325 + $0x8] sm:$0xff] %v561
      %566 = vst [vmem:[%s325 + $0x10] sm:$0xff] %v562
      %567 = vst [vmem:[%s325 + $0x18] sm:$0xff] %v563
      %s568 = smul.u32 2, %s22
      %p569 = scmp.lt.s32.totalorder %s21, 1
      %s570 = scalar_select %p569, %s21, 1
      %p571 = scmp.lt.s32.totalorder %s568, 1
      %s572 = scalar_select %p571, %s568, 1
      %s573 = smul.addr %s570, 4
      %s574 = sadd.s32 %s572, %s573
      %s575 = smul.addr %s574, 8
      %s576 = scalar_lea.vmem %s6, %s575
      // Predicated region
      $region45: #{c2f_cmunextb_forward.5} parent=43 // pred_check
        %p577 = pneg %p189
      $region46: #{c2f_cmunextb_forward.5} parent=43 // pred_check_branch
        %579 = sbr.rel (%p577) target = $region48
      $region47: #{c2f_cmunextb_forward.5} parent=43 // pred_region
        %s580 = smul.u32 2, %s22
      $region48: #{c2f_cmunextb_forward.5} parent=43 // pred_fallthru
        _
    $region44: #{c2f_cmunextb_forward.5} parent=5 // pred_fallthru
      _
    %p581 = scmp.le.s32.totalorder 2, %s12
    // Predicated region
    $region49: #{c2f_cmunextb_forward.5} parent=5 // pred_check
      %p582 = pneg %p581
    $region50: #{c2f_cmunextb_forward.5} parent=5 // pred_check_branch
      %584 = sbr.rel (%p582) target = $region52
    $region51: #{c2f_cmunextb_forward.5} parent=5 // pred_region
      %s585 = ssub.s32 %s12, 2
      // Predicated region
      $region53: #{c2f_cmunextb_forward.5} parent=51 // pred_check
        %p586 = pneg %p195
      $region54: #{c2f_cmunextb_forward.5} parent=51 // pred_check_branch
        %588 = sbr.rel (%p586) target = $region56
      $region55: #{c2f_cmunextb_forward.5} parent=51 // pred_region
        %s589 = smul.u32 2, %s24
        %p590 = scmp.lt.s32.totalorder %s23, 1
        %s591 = scalar_select %p590, %s23, 1
        %p592 = scmp.lt.s32.totalorder %s589, 1
        %s593 = scalar_select %p592, %s589, 1
        %s594 = smul.addr %s591, 4
        %s595 = sadd.s32 %s593, %s594
        %s596 = smul.addr %s595, 8
        %s597 = scalar_lea.vmem %s6, %s596
      $region56: #{c2f_cmunextb_forward.5} parent=51 // pred_fallthru
        _
    $region52: #{c2f_cmunextb_forward.5} parent=5 // pred_fallthru
      _
  $region6: #{c2f_cmunextb_forward.5} parent=0 // loop_footer
    %s16 = sadd.s32 1, %s12
  $region7: #{c2f_cmunextb_forward.5} parent=0 // loop_footer_branch
    %11 = sbr.rel target = $region3
  $region8: #{c2f_cmunextb_forward.5} parent=0 // loop_exit
    _

// kernel: c2f_cmunextb_forward.4
$region0: #{c2f_cmunextb_forward.4}
  #allocation0 [shape = 'u32[]', space=smem, size = 0x4, offset = 0x4, fixed_abs, tag = 'smem constant byte address 0x4 - core index']
  #allocation1 [shape = 'u32[144,128]{1,0:T(1,128)}', space=vmem, size = 0x12000, scoped, tag = 'internal scratch']
  %s0 = inlined_call_operand.vmem [shape: bf16[2,16,256], index: 0, kind: input, shape index: {}]
  %s1 = inlined_call_operand.vmem [shape: bf16[9,256], index: 1, kind: input, shape index: {}]
  %s2 = inlined_call_operand.vmem [shape: f32[8,72], index: 2, kind: input, shape index: {}]
  %s3 = inlined_call_operand.vmem [shape: f32[8,1], index: 3, kind: input, shape index: {}]
  %s4 = inlined_call_operand.vmem [shape: f32[8,1], index: 4, kind: input, shape index: {}]
  %s5 = inlined_call_operand.vmem [shape: f32[8,9], index: 5, kind: input, shape index: {}]
  %s6 = inlined_call_operand.vmem [shape: f32[8,1], index: 6, kind: input, shape index: {}]
  %s7 = inlined_call_operand.vmem [shape: f32[8,1], index: 7, kind: input, shape index: {}]
  %s8 = inlined_call_operand.vmem [shape: f32[8,1], index: 8, kind: input, shape index: {}]
  %s9 = inlined_call_operand.vmem [shape: f32[32,8], index: 9, kind: input, shape index: {}]
  %s10 = inlined_call_operand.vmem [shape: f32[32,1], index: 10, kind: input, shape index: {}]
  %s11 = inlined_call_operand.vmem [shape: f32[32,1], index: 11, kind: input, shape index: {}]
  %s12 = inlined_call_operand.vmem [shape: f32[32,1], index: 12, kind: input, shape index: {}]
  %s13 = inlined_call_operand.vmem [shape: f32[8,32], index: 13, kind: input, shape index: {}]
  %s14 = inlined_call_operand.vmem [shape: f32[8,1], index: 14, kind: input, shape index: {}]
  %s15 = inlined_call_operand.vmem [shape: f32[8,1], index: 15, kind: input, shape index: {}]
  %s16 = inlined_call_operand.vmem [shape: f32[8,1], index: 16, kind: input, shape index: {}]
  %s17 = inlined_call_operand.vmem [shape: f32[8,72], index: 17, kind: input, shape index: {}]
  %s18 = inlined_call_operand.vmem [shape: f32[8,1], index: 18, kind: input, shape index: {}]
  %s19 = inlined_call_operand.vmem [shape: f32[8,1], index: 19, kind: input, shape index: {}]
  %s20 = inlined_call_operand.vmem [shape: bf16[2,8,256], index: 20, kind: output, shape index: {}]
  %s21 = sld [smem:[#allocation0]]
  $region113: #{c2f_cmunextb_forward.4} parent=0
    _
  %s23 = ssub.s32 1, %s21
  %s24 = scalar_select 0, %s23, %s21
  loop: start=0, step=1, limit=4
  $region2: #{c2f_cmunextb_forward.4} parent=0 // loop_pre_header
    _
  $region3: #{c2f_cmunextb_forward.4} parent=0 // loop_header
    %s26 = sphi 0, %s30
    %p27 = scmp.ge.s32.totalorder %s26, 4
    %s36 = sphi 0, %s38
    %s39 = sphi 0, %s36
    %s40 = sphi 0, %s39
    %s56 = sphi 0, %s40
    %s60 = sphi 0, %s60
    %s62 = sphi 0, %s60
    %s63 = sphi 0, %s62
    %s77 = sphi 0, %s63
    %s81 = sphi 0, %s81
    %s83 = sphi 0, %s81
    %s84 = sphi 0, %s83
    %s98 = sphi 0, %s84
    %s102 = sphi 0, %s102
    %s104 = sphi 0, %s102
    %s105 = sphi 0, %s104
    %s119 = sphi 0, %s105
    %s123 = sphi 0, %s123
    %s125 = sphi 0, %s123
    %s126 = sphi 0, %s125
    %s140 = sphi 0, %s126
    %s144 = sphi 0, %s144
    %s146 = sphi 0, %s144
    %s147 = sphi 0, %s146
    %s161 = sphi 0, %s147
    %s165 = sphi 0, %s165
    %s167 = sphi 0, %s165
    %s168 = sphi 0, %s167
    %s182 = sphi 0, %s168
    %s186 = sphi 0, %s186
    %s188 = sphi 0, %s186
    %s189 = sphi 0, %s188
    %s203 = sphi 0, %s189
    %s207 = sphi 0, %s207
    %s209 = sphi 0, %s207
    %s210 = sphi 0, %s209
    %s224 = sphi 0, %s210
    %s228 = sphi 0, %s228
    %s230 = sphi 0, %s228
    %s231 = sphi 0, %s230
    %s245 = sphi 0, %s231
    %s249 = sphi 0, %s249
    %s251 = sphi 0, %s249
    %s252 = sphi 0, %s251
    %s266 = sphi 0, %s252
    %s270 = sphi 0, %s270
    %s272 = sphi 0, %s270
    %s273 = sphi 0, %s272
    %s287 = sphi 0, %s273
    %s291 = sphi 0, %s291
    %s293 = sphi 0, %s291
    %s294 = sphi 0, %s293
    %s308 = sphi 0, %s294
    %s312 = sphi 0, %s312
    %s314 = sphi 0, %s312
    %s315 = sphi 0, %s314
    %s329 = sphi 0, %s315
    %s333 = sphi 0, %s333
    %s335 = sphi 0, %s333
    %s336 = sphi 0, %s335
    %s350 = sphi 0, %s336
    %s354 = sphi 0, %s354
    %s356 = sphi 0, %s354
    %s357 = sphi 0, %s356
    %s371 = sphi 0, %s357
    %s375 = sphi 0, %s375
    %s377 = sphi 0, %s375
    %s378 = sphi 0, %s377
    %s392 = sphi 0, %s378
    %s396 = sphi 0, %s396
    %s398 = sphi 0, %s396
    %s399 = sphi 0, %s398
    %s413 = sphi 0, %s399
    %s417 = sphi 0, %s417
    %s419 = sphi 0, %s417
    %s420 = sphi 0, %s419
    %s434 = sphi 0, %s420
    %s438 = sphi 0, %s438
    %s440 = sphi 0, %s438
    %s441 = sphi 0, %s440
    %s455 = sphi 0, %s441
    %s461 = sphi 0, %s463
    %s464 = sphi 0, %s461
    %s465 = sphi 0, %s464
    %s481 = sphi 0, %s465
  $region4: #{c2f_cmunextb_forward.4} parent=0 // loop_header_branch
    %29 = sbr.rel (%p27) target = $region8
  $region5: #{c2f_cmunextb_forward.4} parent=0 // loop_body
    %s31 = ssub.s32 %s26, 1
    %s32 = ssub.s32 %s26, 2
    %s33 = sadd.s32 %s26, 1
    %s34 = ssub.s32 %s26, %s33
    %p35 = scmp.eq.s32.totalorder %s34, 0
    %s37 = sadd.s32 %s36, 1
    %s38 = scalar_select %p35, %s36, %s37
    %p41 = pneg %p35
    %p42 = scmp.eq.s32.totalorder %s26, 1
    %p43 = por %p41, %p42
    %p44 = scmp.ne.s32.totalorder %s36, %s39
    %p45 = scmp.eq.s32.totalorder %s26, 0
    %p46 = por %p44, %p45
    %p47 = scmp.ne.s32.totalorder %s36, %s39
    %p48 = scmp.eq.s32.totalorder %s31, 1
    %p49 = por %p47, %p48
    %p50 = scmp.ne.s32.totalorder %s39, %s40
    %p51 = scmp.eq.s32.totalorder %s31, 0
    %p52 = por %p50, %p51
    %p53 = scmp.ne.s32.totalorder %s39, %s40
    %p54 = scmp.eq.s32.totalorder %s32, 1
    %p55 = por %p53, %p54
    %p57 = scmp.ne.s32.totalorder %s40, %s56
    %p58 = scmp.eq.s32.totalorder %s32, 0
    %p59 = por %p57, %p58
    %s61 = sadd.s32 %s60, 1
    %p64 = scmp.eq.s32.totalorder %s26, 1
    %p65 = scmp.ne.s32.totalorder %s60, %s62
    %p66 = scmp.eq.s32.totalorder %s26, 0
    %p67 = por %p65, %p66
    %p68 = scmp.ne.s32.totalorder %s60, %s62
    %p69 = scmp.eq.s32.totalorder %s31, 1
    %p70 = por %p68, %p69
    %p71 = scmp.ne.s32.totalorder %s62, %s63
    %p72 = scmp.eq.s32.totalorder %s31, 0
    %p73 = por %p71, %p72
    %p74 = scmp.ne.s32.totalorder %s62, %s63
    %p75 = scmp.eq.s32.totalorder %s32, 1
    %p76 = por %p74, %p75
    %p78 = scmp.ne.s32.totalorder %s63, %s77
    %p79 = scmp.eq.s32.totalorder %s32, 0
    %p80 = por %p78, %p79
    %s82 = sadd.s32 %s81, 1
    %p85 = scmp.eq.s32.totalorder %s26, 1
    %p86 = scmp.ne.s32.totalorder %s81, %s83
    %p87 = scmp.eq.s32.totalorder %s26, 0
    %p88 = por %p86, %p87
    %p89 = scmp.ne.s32.totalorder %s81, %s83
    %p90 = scmp.eq.s32.totalorder %s31, 1
    %p91 = por %p89, %p90
    %p92 = scmp.ne.s32.totalorder %s83, %s84
    %p93 = scmp.eq.s32.totalorder %s31, 0
    %p94 = por %p92, %p93
    %p95 = scmp.ne.s32.totalorder %s83, %s84
    %p96 = scmp.eq.s32.totalorder %s32, 1
    %p97 = por %p95, %p96
    %p99 = scmp.ne.s32.totalorder %s84, %s98
    %p100 = scmp.eq.s32.totalorder %s32, 0
    %p101 = por %p99, %p100
    %s103 = sadd.s32 %s102, 1
    %p106 = scmp.eq.s32.totalorder %s26, 1
    %p107 = scmp.ne.s32.totalorder %s102, %s104
    %p108 = scmp.eq.s32.totalorder %s26, 0
    %p109 = por %p107, %p108
    %p110 = scmp.ne.s32.totalorder %s102, %s104
    %p111 = scmp.eq.s32.totalorder %s31, 1
    %p112 = por %p110, %p111
    %p113 = scmp.ne.s32.totalorder %s104, %s105
    %p114 = scmp.eq.s32.totalorder %s31, 0
    %p115 = por %p113, %p114
    %p116 = scmp.ne.s32.totalorder %s104, %s105
    %p117 = scmp.eq.s32.totalorder %s32, 1
    %p118 = por %p116, %p117
    %p120 = scmp.ne.s32.totalorder %s105, %s119
    %p121 = scmp.eq.s32.totalorder %s32, 0
    %p122 = por %p120, %p121
    %s124 = sadd.s32 %s123, 1
    %p127 = scmp.eq.s32.totalorder %s26, 1
    %p128 = scmp.ne.s32.totalorder %s123, %s125
    %p129 = scmp.eq.s32.totalorder %s26, 0
    %p130 = por %p128, %p129
    %p131 = scmp.ne.s32.totalorder %s123, %s125
    %p132 = scmp.eq.s32.totalorder %s31, 1
    %p133 = por %p131, %p132
    %p134 = scmp.ne.s32.totalorder %s125, %s126
    %p135 = scmp.eq.s32.totalorder %s31, 0
    %p136 = por %p134, %p135
    %p137 = scmp.ne.s32.totalorder %s125, %s126
    %p138 = scmp.eq.s32.totalorder %s32, 1
    %p139 = por %p137, %p138
    %p141 = scmp.ne.s32.totalorder %s126, %s140
    %p142 = scmp.eq.s32.totalorder %s32, 0
    %p143 = por %p141, %p142
    %s145 = sadd.s32 %s144, 1
    %p148 = scmp.eq.s32.totalorder %s26, 1
    %p149 = scmp.ne.s32.totalorder %s144, %s146
    %p150 = scmp.eq.s32.totalorder %s26, 0
    %p151 = por %p149, %p150
    %p152 = scmp.ne.s32.totalorder %s144, %s146
    %p153 = scmp.eq.s32.totalorder %s31, 1
    %p154 = por %p152, %p153
    %p155 = scmp.ne.s32.totalorder %s146, %s147
    %p156 = scmp.eq.s32.totalorder %s31, 0
    %p157 = por %p155, %p156
    %p158 = scmp.ne.s32.totalorder %s146, %s147
    %p159 = scmp.eq.s32.totalorder %s32, 1
    %p160 = por %p158, %p159
    %p162 = scmp.ne.s32.totalorder %s147, %s161
    %p163 = scmp.eq.s32.totalorder %s32, 0
    %p164 = por %p162, %p163
    %s166 = sadd.s32 %s165, 1
    %p169 = scmp.eq.s32.totalorder %s26, 1
    %p170 = scmp.ne.s32.totalorder %s165, %s167
    %p171 = scmp.eq.s32.totalorder %s26, 0
    %p172 = por %p170, %p171
    %p173 = scmp.ne.s32.totalorder %s165, %s167
    %p174 = scmp.eq.s32.totalorder %s31, 1
    %p175 = por %p173, %p174
    %p176 = scmp.ne.s32.totalorder %s167, %s168
    %p177 = scmp.eq.s32.totalorder %s31, 0
    %p178 = por %p176, %p177
    %p179 = scmp.ne.s32.totalorder %s167, %s168
    %p180 = scmp.eq.s32.totalorder %s32, 1
    %p181 = por %p179, %p180
    %p183 = scmp.ne.s32.totalorder %s168, %s182
    %p184 = scmp.eq.s32.totalorder %s32, 0
    %p185 = por %p183, %p184
    %s187 = sadd.s32 %s186, 1
    %p190 = scmp.eq.s32.totalorder %s26, 1
    %p191 = scmp.ne.s32.totalorder %s186, %s188
    %p192 = scmp.eq.s32.totalorder %s26, 0
    %p193 = por %p191, %p192
    %p194 = scmp.ne.s32.totalorder %s186, %s188
    %p195 = scmp.eq.s32.totalorder %s31, 1
    %p196 = por %p194, %p195
    %p197 = scmp.ne.s32.totalorder %s188, %s189
    %p198 = scmp.eq.s32.totalorder %s31, 0
    %p199 = por %p197, %p198
    %p200 = scmp.ne.s32.totalorder %s188, %s189
    %p201 = scmp.eq.s32.totalorder %s32, 1
    %p202 = por %p200, %p201
    %p204 = scmp.ne.s32.totalorder %s189, %s203
    %p205 = scmp.eq.s32.totalorder %s32, 0
    %p206 = por %p204, %p205
    %s208 = sadd.s32 %s207, 1
    %p211 = scmp.eq.s32.totalorder %s26, 1
    %p212 = scmp.ne.s32.totalorder %s207, %s209
    %p213 = scmp.eq.s32.totalorder %s26, 0
    %p214 = por %p212, %p213
    %p215 = scmp.ne.s32.totalorder %s207, %s209
    %p216 = scmp.eq.s32.totalorder %s31, 1
    %p217 = por %p215, %p216
    %p218 = scmp.ne.s32.totalorder %s209, %s210
    %p219 = scmp.eq.s32.totalorder %s31, 0
    %p220 = por %p218, %p219
    %p221 = scmp.ne.s32.totalorder %s209, %s210
    %p222 = scmp.eq.s32.totalorder %s32, 1
    %p223 = por %p221, %p222
    %p225 = scmp.ne.s32.totalorder %s210, %s224
    %p226 = scmp.eq.s32.totalorder %s32, 0
    %p227 = por %p225, %p226
    %s229 = sadd.s32 %s228, 1
    %p232 = scmp.eq.s32.totalorder %s26, 1
    %p233 = scmp.ne.s32.totalorder %s228, %s230
    %p234 = scmp.eq.s32.totalorder %s26, 0
    %p235 = por %p233, %p234
    %p236 = scmp.ne.s32.totalorder %s228, %s230
    %p237 = scmp.eq.s32.totalorder %s31, 1
    %p238 = por %p236, %p237
    %p239 = scmp.ne.s32.totalorder %s230, %s231
    %p240 = scmp.eq.s32.totalorder %s31, 0
    %p241 = por %p239, %p240
    %p242 = scmp.ne.s32.totalorder %s230, %s231
    %p243 = scmp.eq.s32.totalorder %s32, 1
    %p244 = por %p242, %p243
    %p246 = scmp.ne.s32.totalorder %s231, %s245
    %p247 = scmp.eq.s32.totalorder %s32, 0
    %p248 = por %p246, %p247
    %s250 = sadd.s32 %s249, 1
    %p253 = scmp.eq.s32.totalorder %s26, 1
    %p254 = scmp.ne.s32.totalorder %s249, %s251
    %p255 = scmp.eq.s32.totalorder %s26, 0
    %p256 = por %p254, %p255
    %p257 = scmp.ne.s32.totalorder %s249, %s251
    %p258 = scmp.eq.s32.totalorder %s31, 1
    %p259 = por %p257, %p258
    %p260 = scmp.ne.s32.totalorder %s251, %s252
    %p261 = scmp.eq.s32.totalorder %s31, 0
    %p262 = por %p260, %p261
    %p263 = scmp.ne.s32.totalorder %s251, %s252
    %p264 = scmp.eq.s32.totalorder %s32, 1
    %p265 = por %p263, %p264
    %p267 = scmp.ne.s32.totalorder %s252, %s266
    %p268 = scmp.eq.s32.totalorder %s32, 0
    %p269 = por %p267, %p268
    %s271 = sadd.s32 %s270, 1
    %p274 = scmp.eq.s32.totalorder %s26, 1
    %p275 = scmp.ne.s32.totalorder %s270, %s272
    %p276 = scmp.eq.s32.totalorder %s26, 0
    %p277 = por %p275, %p276
    %p278 = scmp.ne.s32.totalorder %s270, %s272
    %p279 = scmp.eq.s32.totalorder %s31, 1
    %p280 = por %p278, %p279
    %p281 = scmp.ne.s32.totalorder %s272, %s273
    %p282 = scmp.eq.s32.totalorder %s31, 0
    %p283 = por %p281, %p282
    %p284 = scmp.ne.s32.totalorder %s272, %s273
    %p285 = scmp.eq.s32.totalorder %s32, 1
    %p286 = por %p284, %p285
    %p288 = scmp.ne.s32.totalorder %s273, %s287
    %p289 = scmp.eq.s32.totalorder %s32, 0
    %p290 = por %p288, %p289
    %s292 = sadd.s32 %s291, 1
    %p295 = scmp.eq.s32.totalorder %s26, 1
    %p296 = scmp.ne.s32.totalorder %s291, %s293
    %p297 = scmp.eq.s32.totalorder %s26, 0
    %p298 = por %p296, %p297
    %p299 = scmp.ne.s32.totalorder %s291, %s293
    %p300 = scmp.eq.s32.totalorder %s31, 1
    %p301 = por %p299, %p300
    %p302 = scmp.ne.s32.totalorder %s293, %s294
    %p303 = scmp.eq.s32.totalorder %s31, 0
    %p304 = por %p302, %p303
    %p305 = scmp.ne.s32.totalorder %s293, %s294
    %p306 = scmp.eq.s32.totalorder %s32, 1
    %p307 = por %p305, %p306
    %p309 = scmp.ne.s32.totalorder %s294, %s308
    %p310 = scmp.eq.s32.totalorder %s32, 0
    %p311 = por %p309, %p310
    %s313 = sadd.s32 %s312, 1
    %p316 = scmp.eq.s32.totalorder %s26, 1
    %p317 = scmp.ne.s32.totalorder %s312, %s314
    %p318 = scmp.eq.s32.totalorder %s26, 0
    %p319 = por %p317, %p318
    %p320 = scmp.ne.s32.totalorder %s312, %s314
    %p321 = scmp.eq.s32.totalorder %s31, 1
    %p322 = por %p320, %p321
    %p323 = scmp.ne.s32.totalorder %s314, %s315
    %p324 = scmp.eq.s32.totalorder %s31, 0
    %p325 = por %p323, %p324
    %p326 = scmp.ne.s32.totalorder %s314, %s315
    %p327 = scmp.eq.s32.totalorder %s32, 1
    %p328 = por %p326, %p327
    %p330 = scmp.ne.s32.totalorder %s315, %s329
    %p331 = scmp.eq.s32.totalorder %s32, 0
    %p332 = por %p330, %p331
    %s334 = sadd.s32 %s333, 1
    %p337 = scmp.eq.s32.totalorder %s26, 1
    %p338 = scmp.ne.s32.totalorder %s333, %s335
    %p339 = scmp.eq.s32.totalorder %s26, 0
    %p340 = por %p338, %p339
    %p341 = scmp.ne.s32.totalorder %s333, %s335
    %p342 = scmp.eq.s32.totalorder %s31, 1
    %p343 = por %p341, %p342
    %p344 = scmp.ne.s32.totalorder %s335, %s336
    %p345 = scmp.eq.s32.totalorder %s31, 0
    %p346 = por %p344, %p345
    %p347 = scmp.ne.s32.totalorder %s335, %s336
    %p348 = scmp.eq.s32.totalorder %s32, 1
    %p349 = por %p347, %p348
    %p351 = scmp.ne.s32.totalorder %s336, %s350
    %p352 = scmp.eq.s32.totalorder %s32, 0
    %p353 = por %p351, %p352
    %s355 = sadd.s32 %s354, 1
    %p358 = scmp.eq.s32.totalorder %s26, 1
    %p359 = scmp.ne.s32.totalorder %s354, %s356
    %p360 = scmp.eq.s32.totalorder %s26, 0
    %p361 = por %p359, %p360
    %p362 = scmp.ne.s32.totalorder %s354, %s356
    %p363 = scmp.eq.s32.totalorder %s31, 1
    %p364 = por %p362, %p363
    %p365 = scmp.ne.s32.totalorder %s356, %s357
    %p366 = scmp.eq.s32.totalorder %s31, 0
    %p367 = por %p365, %p366
    %p368 = scmp.ne.s32.totalorder %s356, %s357
    %p369 = scmp.eq.s32.totalorder %s32, 1
    %p370 = por %p368, %p369
    %p372 = scmp.ne.s32.totalorder %s357, %s371
    %p373 = scmp.eq.s32.totalorder %s32, 0
    %p374 = por %p372, %p373
    %s376 = sadd.s32 %s375, 1
    %p379 = scmp.eq.s32.totalorder %s26, 1
    %p380 = scmp.ne.s32.totalorder %s375, %s377
    %p381 = scmp.eq.s32.totalorder %s26, 0
    %p382 = por %p380, %p381
    %p383 = scmp.ne.s32.totalorder %s375, %s377
    %p384 = scmp.eq.s32.totalorder %s31, 1
    %p385 = por %p383, %p384
    %p386 = scmp.ne.s32.totalorder %s377, %s378
    %p387 = scmp.eq.s32.totalorder %s31, 0
    %p388 = por %p386, %p387
    %p389 = scmp.ne.s32.totalorder %s377, %s378
    %p390 = scmp.eq.s32.totalorder %s32, 1
    %p391 = por %p389, %p390
    %p393 = scmp.ne.s32.totalorder %s378, %s392
    %p394 = scmp.eq.s32.totalorder %s32, 0
    %p395 = por %p393, %p394
    %s397 = sadd.s32 %s396, 1
    %p400 = scmp.eq.s32.totalorder %s26, 1
    %p401 = scmp.ne.s32.totalorder %s396, %s398
    %p402 = scmp.eq.s32.totalorder %s26, 0
    %p403 = por %p401, %p402
    %p404 = scmp.ne.s32.totalorder %s396, %s398
    %p405 = scmp.eq.s32.totalorder %s31, 1
    %p406 = por %p404, %p405
    %p407 = scmp.ne.s32.totalorder %s398, %s399
    %p408 = scmp.eq.s32.totalorder %s31, 0
    %p409 = por %p407, %p408
    %p410 = scmp.ne.s32.totalorder %s398, %s399
    %p411 = scmp.eq.s32.totalorder %s32, 1
    %p412 = por %p410, %p411
    %p414 = scmp.ne.s32.totalorder %s399, %s413
    %p415 = scmp.eq.s32.totalorder %s32, 0
    %p416 = por %p414, %p415
    %s418 = sadd.s32 %s417, 1
    %p421 = scmp.eq.s32.totalorder %s26, 1
    %p422 = scmp.ne.s32.totalorder %s417, %s419
    %p423 = scmp.eq.s32.totalorder %s26, 0
    %p424 = por %p422, %p423
    %p425 = scmp.ne.s32.totalorder %s417, %s419
    %p426 = scmp.eq.s32.totalorder %s31, 1
    %p427 = por %p425, %p426
    %p428 = scmp.ne.s32.totalorder %s419, %s420
    %p429 = scmp.eq.s32.totalorder %s31, 0
    %p430 = por %p428, %p429
    %p431 = scmp.ne.s32.totalorder %s419, %s420
    %p432 = scmp.eq.s32.totalorder %s32, 1
    %p433 = por %p431, %p432
    %p435 = scmp.ne.s32.totalorder %s420, %s434
    %p436 = scmp.eq.s32.totalorder %s32, 0
    %p437 = por %p435, %p436
    %s439 = sadd.s32 %s438, 1
    %p442 = scmp.eq.s32.totalorder %s26, 1
    %p443 = scmp.ne.s32.totalorder %s438, %s440
    %p444 = scmp.eq.s32.totalorder %s26, 0
    %p445 = por %p443, %p444
    %p446 = scmp.ne.s32.totalorder %s438, %s440
    %p447 = scmp.eq.s32.totalorder %s31, 1
    %p448 = por %p446, %p447
    %p449 = scmp.ne.s32.totalorder %s440, %s441
    %p450 = scmp.eq.s32.totalorder %s31, 0
    %p451 = por %p449, %p450
    %p452 = scmp.ne.s32.totalorder %s440, %s441
    %p453 = scmp.eq.s32.totalorder %s32, 1
    %p454 = por %p452, %p453
    %p456 = scmp.ne.s32.totalorder %s441, %s455
    %p457 = scmp.eq.s32.totalorder %s32, 0
    %p458 = por %p456, %p457
    %s459 = ssub.s32 %s26, %s33
    %p460 = scmp.eq.s32.totalorder %s459, 0
    %s462 = sadd.s32 %s461, 1
    %s463 = scalar_select %p460, %s461, %s462
    %p466 = pneg %p460
    %p467 = scmp.eq.s32.totalorder %s26, 1
    %p468 = por %p466, %p467
    %p469 = scmp.ne.s32.totalorder %s461, %s464
    %p470 = scmp.eq.s32.totalorder %s26, 0
    %p471 = por %p469, %p470
    %p472 = scmp.ne.s32.totalorder %s461, %s464
    %p473 = scmp.eq.s32.totalorder %s31, 1
    %p474 = por %p472, %p473
    %p475 = scmp.ne.s32.totalorder %s464, %s465
    %p476 = scmp.eq.s32.totalorder %s31, 0
    %p477 = por %p475, %p476
    %p478 = scmp.ne.s32.totalorder %s464, %s465
    %p479 = scmp.eq.s32.totalorder %s32, 1
    %p480 = por %p478, %p479
    %p482 = scmp.ne.s32.totalorder %s465, %s481
    %p483 = scmp.eq.s32.totalorder %s32, 0
    %p484 = por %p482, %p483
    %p485 = scmp.le.s32.totalorder 1, %s26
    %p486 = scmp.lt.s32.totalorder %s26, 3
    %p487 = pnand %p485, %p486
    %p488 = pneg %p487
    // Predicated region
    $region9: #{c2f_cmunextb_forward.4} parent=5 // pred_check
      _
    $region10: #{c2f_cmunextb_forward.4} parent=5 // pred_check_branch
      %490 = sbr.rel (%p487) target = $region12
    $region11: #{c2f_cmunextb_forward.4} parent=5 // pred_region
      %s491 = ssub.s32 %s26, 1
      // Predicated region
      $region13: #{c2f_cmunextb_forward.4} parent=11 // pred_check
        %p492 = pneg %p73
      $region14: #{c2f_cmunextb_forward.4} parent=11 // pred_check_branch
        %494 = sbr.rel (%p492) target = $region16
      $region15: #{c2f_cmunextb_forward.4} parent=11 // pred_region
        _
      $region16: #{c2f_cmunextb_forward.4} parent=11 // pred_fallthru
        _
      // Predicated region
      $region17: #{c2f_cmunextb_forward.4} parent=11 // pred_check
        %p495 = pneg %p94
      $region18: #{c2f_cmunextb_forward.4} parent=11 // pred_check_branch
        %497 = sbr.rel (%p495) target = $region20
      $region19: #{c2f_cmunextb_forward.4} parent=11 // pred_region
        _
      $region20: #{c2f_cmunextb_forward.4} parent=11 // pred_fallthru
        _
      // Predicated region
      $region21: #{c2f_cmunextb_forward.4} parent=11 // pred_check
        %p498 = pneg %p115
      $region22: #{c2f_cmunextb_forward.4} parent=11 // pred_check_branch
        %500 = sbr.rel (%p498) target = $region24
      $region23: #{c2f_cmunextb_forward.4} parent=11 // pred_region
        _
      $region24: #{c2f_cmunextb_forward.4} parent=11 // pred_fallthru
        _
      // Predicated region
      $region25: #{c2f_cmunextb_forward.4} parent=11 // pred_check
        %p501 = pneg %p136
      $region26: #{c2f_cmunextb_forward.4} parent=11 // pred_check_branch
        %503 = sbr.rel (%p501) target = $region28
      $region27: #{c2f_cmunextb_forward.4} parent=11 // pred_region
        _
      $region28: #{c2f_cmunextb_forward.4} parent=11 // pred_fallthru
        _
      // Predicated region
      $region29: #{c2f_cmunextb_forward.4} parent=11 // pred_check
        %p504 = pneg %p157
      $region30: #{c2f_cmunextb_forward.4} parent=11 // pred_check_branch
        %506 = sbr.rel (%p504) target = $region32
      $region31: #{c2f_cmunextb_forward.4} parent=11 // pred_region
        _
      $region32: #{c2f_cmunextb_forward.4} parent=11 // pred_fallthru
        _
      // Predicated region
      $region33: #{c2f_cmunextb_forward.4} parent=11 // pred_check
        %p507 = pneg %p178
      $region34: #{c2f_cmunextb_forward.4} parent=11 // pred_check_branch
        %509 = sbr.rel (%p507) target = $region36
      $region35: #{c2f_cmunextb_forward.4} parent=11 // pred_region
        _
      $region36: #{c2f_cmunextb_forward.4} parent=11 // pred_fallthru
        _
      // Predicated region
      $region37: #{c2f_cmunextb_forward.4} parent=11 // pred_check
        %p510 = pneg %p199
      $region38: #{c2f_cmunextb_forward.4} parent=11 // pred_check_branch
        %512 = sbr.rel (%p510) target = $region40
      $region39: #{c2f_cmunextb_forward.4} parent=11 // pred_region
        _
      $region40: #{c2f_cmunextb_forward.4} parent=11 // pred_fallthru
        _
      // Predicated region
      $region41: #{c2f_cmunextb_forward.4} parent=11 // pred_check
        %p513 = pneg %p220
      $region42: #{c2f_cmunextb_forward.4} parent=11 // pred_check_branch
        %515 = sbr.rel (%p513) target = $region44
      $region43: #{c2f_cmunextb_forward.4} parent=11 // pred_region
        _
      $region44: #{c2f_cmunextb_forward.4} parent=11 // pred_fallthru
        _
      // Predicated region
      $region45: #{c2f_cmunextb_forward.4} parent=11 // pred_check
        %p516 = pneg %p241
      $region46: #{c2f_cmunextb_forward.4} parent=11 // pred_check_branch
        %518 = sbr.rel (%p516) target = $region48
      $region47: #{c2f_cmunextb_forward.4} parent=11 // pred_region
        _
      $region48: #{c2f_cmunextb_forward.4} parent=11 // pred_fallthru
        _
      // Predicated region
      $region49: #{c2f_cmunextb_forward.4} parent=11 // pred_check
        %p519 = pneg %p262
      $region50: #{c2f_cmunextb_forward.4} parent=11 // pred_check_branch
        %521 = sbr.rel (%p519) target = $region52
      $region51: #{c2f_cmunextb_forward.4} parent=11 // pred_region
        _
      $region52: #{c2f_cmunextb_forward.4} parent=11 // pred_fallthru
        _
      // Predicated region
      $region53: #{c2f_cmunextb_forward.4} parent=11 // pred_check
        %p522 = pneg %p283
      $region54: #{c2f_cmunextb_forward.4} parent=11 // pred_check_branch
        %524 = sbr.rel (%p522) target = $region56
      $region55: #{c2f_cmunextb_forward.4} parent=11 // pred_region
        _
      $region56: #{c2f_cmunextb_forward.4} parent=11 // pred_fallthru
        _
      // Predicated region
      $region57: #{c2f_cmunextb_forward.4} parent=11 // pred_check
        %p525 = pneg %p304
      $region58: #{c2f_cmunextb_forward.4} parent=11 // pred_check_branch
        %527 = sbr.rel (%p525) target = $region60
      $region59: #{c2f_cmunextb_forward.4} parent=11 // pred_region
        _
      $region60: #{c2f_cmunextb_forward.4} parent=11 // pred_fallthru
        _
      // Predicated region
      $region61: #{c2f_cmunextb_forward.4} parent=11 // pred_check
        %p528 = pneg %p325
      $region62: #{c2f_cmunextb_forward.4} parent=11 // pred_check_branch
        %530 = sbr.rel (%p528) target = $region64
      $region63: #{c2f_cmunextb_forward.4} parent=11 // pred_region
        _
      $region64: #{c2f_cmunextb_forward.4} parent=11 // pred_fallthru
        _
      // Predicated region
      $region65: #{c2f_cmunextb_forward.4} parent=11 // pred_check
        %p531 = pneg %p346
      $region66: #{c2f_cmunextb_forward.4} parent=11 // pred_check_branch
        %533 = sbr.rel (%p531) target = $region68
      $region67: #{c2f_cmunextb_forward.4} parent=11 // pred_region
        _
      $region68: #{c2f_cmunextb_forward.4} parent=11 // pred_fallthru
        _
      // Predicated region
      $region69: #{c2f_cmunextb_forward.4} parent=11 // pred_check
        %p534 = pneg %p367
      $region70: #{c2f_cmunextb_forward.4} parent=11 // pred_check_branch
        %536 = sbr.rel (%p534) target = $region72
      $region71: #{c2f_cmunextb_forward.4} parent=11 // pred_region
        _
      $region72: #{c2f_cmunextb_forward.4} parent=11 // pred_fallthru
        _
      // Predicated region
      $region73: #{c2f_cmunextb_forward.4} parent=11 // pred_check
        %p537 = pneg %p388
      $region74: #{c2f_cmunextb_forward.4} parent=11 // pred_check_branch
        %539 = sbr.rel (%p537) target = $region76
      $region75: #{c2f_cmunextb_forward.4} parent=11 // pred_region
        _
      $region76: #{c2f_cmunextb_forward.4} parent=11 // pred_fallthru
        _
      // Predicated region
      $region77: #{c2f_cmunextb_forward.4} parent=11 // pred_check
        %p540 = pneg %p409
      $region78: #{c2f_cmunextb_forward.4} parent=11 // pred_check_branch
        %542 = sbr.rel (%p540) target = $region80
      $region79: #{c2f_cmunextb_forward.4} parent=11 // pred_region
        _
      $region80: #{c2f_cmunextb_forward.4} parent=11 // pred_fallthru
        _
      // Predicated region
      $region81: #{c2f_cmunextb_forward.4} parent=11 // pred_check
        %p543 = pneg %p430
      $region82: #{c2f_cmunextb_forward.4} parent=11 // pred_check_branch
        %545 = sbr.rel (%p543) target = $region84
      $region83: #{c2f_cmunextb_forward.4} parent=11 // pred_region
        _
      $region84: #{c2f_cmunextb_forward.4} parent=11 // pred_fallthru
        _
      // Predicated region
      $region85: #{c2f_cmunextb_forward.4} parent=11 // pred_check
        %p546 = pneg %p451
      $region86: #{c2f_cmunextb_forward.4} parent=11 // pred_check_branch
        %548 = sbr.rel (%p546) target = $region88
      $region87: #{c2f_cmunextb_forward.4} parent=11 // pred_region
        _
      $region88: #{c2f_cmunextb_forward.4} parent=11 // pred_fallthru
        _
    $region12: #{c2f_cmunextb_forward.4} parent=5 // pred_fallthru
      _
    %p549 = scmp.lt.s32.totalorder %s26, 2
    // Predicated region
    $region89: #{c2f_cmunextb_forward.4} parent=5 // pred_check
      %p550 = pneg %p549
    $region90: #{c2f_cmunextb_forward.4} parent=5 // pred_check_branch
      %552 = sbr.rel (%p550) target = $region92
    $region91: #{c2f_cmunextb_forward.4} parent=5 // pred_region
      // Predicated region
      $region93: #{c2f_cmunextb_forward.4} parent=91 // pred_check
        %p553 = pneg %p46
      $region94: #{c2f_cmunextb_forward.4} parent=91 // pred_check_branch
        %555 = sbr.rel (%p553) target = $region96
      $region95: #{c2f_cmunextb_forward.4} parent=91 // pred_region
        %p556 = scmp.lt.s32.totalorder %s26, 1
        %s557 = scalar_select %p556, %s26, 1
        %s558 = smul.addr %s557, 4
        %s559 = sadd.s32 2, %s558
        %s560 = smul.addr %s559, 4
        %s561 = scalar_lea.vmem %s0, %s560
      $region96: #{c2f_cmunextb_forward.4} parent=91 // pred_fallthru
        _
    $region92: #{c2f_cmunextb_forward.4} parent=5 // pred_fallthru
      _
    %p562 = scmp.le.s32.totalorder 1, %s26
    %p563 = scmp.lt.s32.totalorder %s26, 3
    %p564 = pnand %p562, %p563
    %p565 = pneg %p564
    // Predicated region
    $region97: #{c2f_cmunextb_forward.4} parent=5 // pred_check
      _
    $region98: #{c2f_cmunextb_forward.4} parent=5 // pred_check_branch
      %567 = sbr.rel (%p564) target = $region100
    $region99: #{c2f_cmunextb_forward.4} parent=5 // pred_region
      %s568 = ssub.s32 %s26, 1
      %p569 = scmp.lt.s32.totalorder %s31, 1
      %s570 = scalar_select %p569, %s31, 1
      %s571 = smul.addr %s570, 4
      %s572 = sadd.s32 2, %s571
      %s573 = smul.addr %s572, 4
      %s574 = scalar_lea.vmem %s0, %s573
      %p575 = pneg %p52
      %p576 = pneg %p49
      %p577 = pneg %p73
      %p578 = pneg %p70
      %p579 = pneg %p94
      %p580 = pneg %p91
      %p581 = pneg %p115
      %p582 = pneg %p112
      %p583 = pneg %p136
      %p584 = pneg %p133
      %p585 = pneg %p157
      %p586 = pneg %p154
      %p587 = pneg %p178
      %p588 = pneg %p175
      %p589 = pneg %p199
      %p590 = pneg %p196
      %p591 = pneg %p220
      %p592 = pneg %p217
      %p593 = pneg %p241
      %p594 = pneg %p238
      %p595 = pneg %p262
      %p596 = pneg %p259
      %p597 = pneg %p283
      %p598 = pneg %p280
      %p599 = pneg %p304
      %p600 = pneg %p301
      %p601 = pneg %p325
      %p602 = pneg %p322
      %p603 = pneg %p346
      %p604 = pneg %p343
      %p605 = pneg %p367
      %p606 = pneg %p364
      %p607 = pneg %p388
      %p608 = pneg %p385
      %p609 = pneg %p409
      %p610 = pneg %p406
      %p611 = pneg %p430
      %p612 = pneg %p427
      %p613 = pneg %p451
      %p614 = pneg %p448
      %p615 = pneg %p477
      %p616 = pneg %p474
      %p617 = scmp.lt.s32.totalorder %s31, 1
      %s618 = scalar_select %p617, %s31, 1
      %s619 = smul.addr %s618, 2
      %s620 = smul.addr %s619, 4
      %s621 = scalar_lea.vmem %s20, %s620
      %p622 = scmp.lt.s32.totalorder %s31, 1
      %s623 = scalar_select %p622, %s31, 1
      %s624 = smul.addr %s623, 4
      %s625 = sadd.s32 2, %s624
      %s626 = smul.addr %s625, 4
      %s627 = scalar_lea.vmem %s0, %s626
      %p628 = scmp.lt.s32.totalorder %s31, 1
      %s629 = scalar_select %p628, %s31, 1
      %s630 = smul.addr %s629, 2
      %s631 = smul.addr %s630, 4
      %s632 = scalar_lea.vmem %s20, %s631
      %v633 = vld [vmem:[%s627] sm:$0xff]
      %v634 = vunpack.c.l.bf16 %v633
      %v635 = vunpack.c.h.bf16 %v633
      %v636 = vld [vmem:[%s1] sm:$0xff]
      %v637 = vld [vmem:[%s1 + $0x8] sm:$0x11]
      %v638 = vunpack.c.l.bf16 %v636
      %v639 = vunpack.c.h.bf16 %v636
      %v640 = vunpack.c.l.bf16 %v637
      %v641 = vunpack.c.h.bf16 %v637
      %v642 = vld [vmem:[%s2] sm:$0xff]
      %643 = vrot.lane.b32.xlu0 %v634, 17
      %v644 = vpop.permute.xlu0 %643
      %645 = vrot.lane.b32.xlu0 %v635, 17
      %v646 = vpop.permute.xlu0 %645
      %v647 = vlaneseq
      %v648 = vand.u32 %v647, 127
      %vm649 = vcmp.lt.s32.totalorder %v648, 17
      %v650 = vsel %vm649, %v644, %v646
      %v651 = vsel %vm649, %v646, %v644
      %v652 = vlaneseq
      %v653 = vshrl.u32 %v652, 7
      %v654 = vsub.s32 0, %v653
      %v655 = vrot.slane %v638, %v654
      %v656 = vlaneseq
      %v657 = vshrl.u32 %v656, 7
      %v658 = vsub.s32 0, %v657
      %v659 = vrot.slane %v639, %v658
      %v660 = vmul.f32 %v651, %v655
      %v661 = vmul.f32 %v650, %v659
      %662 = vrot.lane.b32.xlu0 %v634, 16
      %v663 = vpop.permute.xlu0 %662
      %664 = vrot.lane.b32.xlu0 %v635, 16
      %v665 = vpop.permute.xlu0 %664
      %vm666 = vcmp.lt.s32.totalorder %v648, 16
      %v667 = vsel %vm666, %v663, %v665
      %v668 = vsel %vm666, %v665, %v663
      %v669 = vlaneseq
      %v670 = vshrl.u32 %v669, 7
      %v671 = vsub.s32 1, %v670
      %v672 = vrot.slane %v638, %v671
      %v673 = vlaneseq
      %v674 = vshrl.u32 %v673, 7
      %v675 = vsub.s32 1, %v674
      %v676 = vrot.slane %v639, %v675
      %v677 = vmul.f32 %v668, %v672
      %v678 = vmul.f32 %v667, %v676
      %679 = vrot.lane.b32.xlu0 %v634, 15
      %v680 = vpop.permute.xlu0 %679
      %681 = vrot.lane.b32.xlu0 %v635, 15
      %v682 = vpop.permute.xlu0 %681
      %vm683 = vcmp.lt.s32.totalorder %v648, 15
      %v684 = vsel %vm683, %v680, %v682
      %v685 = vsel %vm683, %v682, %v680
      %v686 = vlaneseq
      %v687 = vshrl.u32 %v686, 7
      %v688 = vsub.s32 2, %v687
      %v689 = vrot.slane %v638, %v688
      %v690 = vlaneseq
      %v691 = vshrl.u32 %v690, 7
      %v692 = vsub.s32 2, %v691
      %v693 = vrot.slane %v639, %v692
      %v694 = vmul.f32 %v685, %v689
      %v695 = vmul.f32 %v684, %v693
      %696 = vrot.lane.b32.xlu0 %v634, 1
      %v697 = vpop.permute.xlu0 %696
      %698 = vrot.lane.b32.xlu0 %v635, 1
      %v699 = vpop.permute.xlu0 %698
      %vm700 = vcmp.lt.s32.totalorder %v648, 1
      %v701 = vsel %vm700, %v697, %v699
      %v702 = vsel %vm700, %v699, %v697
      %v703 = vlaneseq
      %v704 = vshrl.u32 %v703, 7
      %v705 = vsub.s32 3, %v704
      %v706 = vrot.slane %v638, %v705
      %v707 = vlaneseq
      %v708 = vshrl.u32 %v707, 7
      %v709 = vsub.s32 3, %v708
      %v710 = vrot.slane %v639, %v709
      %v711 = vmul.f32 %v702, %v706
      %v712 = vmul.f32 %v701, %v710
      %v713 = vlaneseq
      %v714 = vshrl.u32 %v713, 7
      %v715 = vsub.s32 4, %v714
      %v716 = vrot.slane %v638, %v715
      %v717 = vlaneseq
      %v718 = vshrl.u32 %v717, 7
      %v719 = vsub.s32 4, %v718
      %v720 = vrot.slane %v639, %v719
      %v721 = vmul.f32 %v634, %v716
      %v722 = vmul.f32 %v635, %v720
      %723 = vrot.lane.b32.xlu0 %v634, 127
      %v724 = vpop.permute.xlu0 %723
      %725 = vrot.lane.b32.xlu0 %v635, 127
      %v726 = vpop.permute.xlu0 %725
      %vm727 = vcmp.lt.s32.totalorder %v648, 127
      %v728 = vsel %vm727, %v724, %v726
      %v729 = vsel %vm727, %v726, %v724
      %v730 = vlaneseq
      %v731 = vshrl.u32 %v730, 7
      %v732 = vsub.s32 5, %v731
      %v733 = vrot.slane %v638, %v732
      %v734 = vlaneseq
      %v735 = vshrl.u32 %v734, 7
      %v736 = vsub.s32 5, %v735
      %v737 = vrot.slane %v639, %v736
      %v738 = vmul.f32 %v728, %v733
      %v739 = vmul.f32 %v729, %v737
      %740 = vrot.lane.b32.xlu0 %v634, 113
      %v741 = vpop.permute.xlu0 %740
      %742 = vrot.lane.b32.xlu0 %v635, 113
      %v743 = vpop.permute.xlu0 %742
      %vm744 = vcmp.lt.s32.totalorder %v648, 113
      %v745 = vsel %vm744, %v741, %v743
      %v746 = vsel %vm744, %v743, %v741
      %v747 = vlaneseq
      %v748 = vshrl.u32 %v747, 7
      %v749 = vsub.s32 6, %v748
      %v750 = vrot.slane %v638, %v749
      %v751 = vlaneseq
      %v752 = vshrl.u32 %v751, 7
      %v753 = vsub.s32 6, %v752
      %v754 = vrot.slane %v639, %v753
      %v755 = vmul.f32 %v745, %v750
      %v756 = vmul.f32 %v746, %v754
      %757 = vrot.lane.b32.xlu0 %v634, 112
      %v758 = vpop.permute.xlu0 %757
      %759 = vrot.lane.b32.xlu0 %v635, 112
      %v760 = vpop.permute.xlu0 %759
      %vm761 = vcmp.lt.s32.totalorder %v648, 112
      %v762 = vsel %vm761, %v758, %v760
      %v763 = vsel %vm761, %v760, %v758
      %v764 = vlaneseq
      %v765 = vshrl.u32 %v764, 7
      %v766 = vsub.s32 7, %v765
      %v767 = vrot.slane %v638, %v766
      %v768 = vlaneseq
      %v769 = vshrl.u32 %v768, 7
      %v770 = vsub.s32 7, %v769
      %v771 = vrot.slane %v639, %v770
      %v772 = vmul.f32 %v762, %v767
      %v773 = vmul.f32 %v763, %v771
      %774 = vrot.lane.b32.xlu0 %v634, 111
      %v775 = vpop.permute.xlu0 %774
      %776 = vrot.lane.b32.xlu0 %v635, 111
      %v777 = vpop.permute.xlu0 %776
      %vm778 = vcmp.lt.s32.totalorder %v648, 111
      %v779 = vsel %vm778, %v775, %v777
      %v780 = vsel %vm778, %v777, %v775
      %v781 = vlaneseq
      %v782 = vshrl.u32 %v781, 7
      %v783 = vsub.s32 0, %v782
      %v784 = vrot.slane %v640, %v783
      %v785 = vlaneseq
      %v786 = vshrl.u32 %v785, 7
      %v787 = vsub.s32 0, %v786
      %v788 = vrot.slane %v641, %v787
      %v789 = vmul.f32 %v779, %v784
      %v790 = vmul.f32 %v780, %v788
      %vm791 = vcmask 588800
      %v793 = vsel %vm791, %v642, 0
      %795 = vmatprep.subr.mxu0 0.0
      %796 = vmatpush1.msra.mxu0 0.0
      %797 = vmatprep.subr.mxu0 0.0
      %798 = vmatpush1.msra.mxu0 0.0
      %799 = vmatprep.subr.mxu0 0.0
      %800 = vmatpush1.msra.mxu0 0.0
      %801 = vmatprep.subr.mxu0 0.0
      %802 = vmatpush1.msra.mxu0 0.0
      %803 = vmatprep.subr.mxu0 0.0
      %804 = vmatpush1.msra.mxu0 0.0
      %805 = vmatprep.subr.mxu0 0.0
      %806 = vmatpush1.msra.mxu0 0.0
      %807 = vmatprep.subr.mxu0 0.0
      %808 = vmatpush1.msra.mxu0 0.0
      %809 = vmatprep.subr.mxu0 %v790
      %810 = vmatpush1.msra.mxu0 %v789
      %811 = vmatprep.subr.mxu0 %v773
      %812 = vmatpush1.msra.mxu0 %v772
      %813 = vmatprep.subr.mxu0 %v756
      %814 = vmatpush1.msra.mxu0 %v755
      %815 = vmatprep.subr.mxu0 %v739
      %816 = vmatpush1.msra.mxu0 %v738
      %817 = vmatprep.subr.mxu0 %v722
      %818 = vmatpush1.msra.mxu0 %v721
      %819 = vmatprep.subr.mxu0 %v712
      %820 = vmatpush1.msra.mxu0 %v711
      %821 = vmatprep.subr.mxu0 %v695
      %822 = vmatpush1.msra.mxu0 %v694
      %823 = vmatprep.subr.mxu0 %v678
      %824 = vmatpush1.msra.mxu0 %v677
      %825 = vmatprep.subr.mxu0 %v661
      %826 = vmatpush1.msra.mxu0 %v660
      %827 = vmatprep.subr.mxu0 0.0
      %828 = vmatpush2.msra.mxu0 0.0
      %829 = vmatprep.subr.mxu0 0.0
      %830 = vmatpush2.msra.mxu0 0.0
      %831 = vmatprep.subr.mxu0 0.0
      %832 = vmatpush2.msra.mxu0 0.0
      %833 = vmatprep.subr.mxu0 0.0
      %834 = vmatpush2.msra.mxu0 0.0
      %835 = vmatprep.subr.mxu0 0.0
      %836 = vmatpush2.msra.mxu0 0.0
      %837 = vmatprep.subr.mxu0 0.0
      %838 = vmatpush2.msra.mxu0 0.0
      %839 = vmatprep.subr.mxu0 0.0
      %840 = vmatpush2.msra.mxu0 0.0
      %841 = vmatprep.subr.mxu0 0.0
      %842 = vmatpush2.msra.mxu0 0.0
      %843 = vmatprep.subr.mxu0 0.0
      %844 = vmatpush2.msra.mxu0 0.0
      %845 = vmatprep.subr.mxu0 0.0
      %846 = vmatpush2.msra.mxu0 0.0
      %847 = vmatprep.subr.mxu0 0.0
      %848 = vmatpush2.msra.mxu0 0.0
      %849 = vmatprep.subr.mxu0 0.0
      %850 = vmatpush2.msra.mxu0 0.0
      %851 = vmatprep.subr.mxu0 0.0
      %852 = vmatpush2.msra.mxu0 0.0
      %853 = vmatprep.subr.mxu0 0.0
      %854 = vmatpush2.msra.mxu0 0.0
      %855 = vmatprep.subr.mxu0 0.0
      %856 = vmatpush2.msra.mxu0 0.0
      %857 = vmatprep.subr.mxu0 0.0
      %858 = vmatpush2.msra.mxu0 0.0
      %859 = vmatprep.mubr.f32.mxu0 0.0
      %860 = vmatmul.mubr.f32.gmra.mxu0 %v793
      %v861 = vpop.f32.mrf.mxu0
      %v862 = vadd.f32 0.0, %v861
      %v863 = vpop.f32.mrf.mxu0
      %v864 = vadd.f32 0.0, %v863
      %865 = vdwg.mxu0
      %v866 = vld [vmem:[%s3] sm:$0xff]
      %868 = vset.pattern.permute.xlu0 0
      %869 = vperm.xlu0 %868, %v866
      %v870 = vpop.permute.xlu0 %869
      %v872 = vmul.f32 %v862, %v870
      %v873 = vmul.f32 %v864, %v870
      %v874 = vld [vmem:[%s4] sm:$0xff]
      %876 = vset.pattern.permute.xlu0 0
      %877 = vperm.xlu0 %876, %v874
      %v878 = vpop.permute.xlu0 %877
      %v880 = vadd.f32 %v872, %v878
      %v881 = vadd.f32 %v873, %v878
      %v882 = vsub.f32 0.0, %v880
      %v883 = vsub.f32 0.0, %v881
      %v884 = vmul.f32 %v882, 1.442695
      %v885 = vpow.pop %v884
      %v886 = vmul.f32 %v883, 1.442695
      %v887 = vpow.pop %v886
      %v888 = vadd.f32 %v885, 1.0
      %v889 = vadd.f32 %v887, 1.0
      %v890 = vrcp.pop %v888
      %v891 = vrcp.pop %v889
      %v892 = vmul.f32 %v880, %v890
      %v893 = vmul.f32 %v881, %v891
      %v894 = vld [vmem:[%s5] sm:$0xff]
      %895 = vrot.lane.b32.xlu0 %v892, 17
      %v896 = vpop.permute.xlu0 %895
      %897 = vrot.lane.b32.xlu0 %v893, 17
      %v898 = vpop.permute.xlu0 %897
      %v899 = vsel %vm649, %v896, %v898
      %v900 = vsel %vm649, %v898, %v896
      %v901 = vmul.f32 %v900, %v655
      %v902 = vmul.f32 %v899, %v659
      %904 = vset.pattern.permute.xlu0 0
      %905 = vperm.xlu0 %904, %v894
      %v906 = vpop.permute.xlu0 %905
      %v908 = vmul.f32 %v901, %v906
      %v909 = vmul.f32 %v902, %v906
      %910 = vrot.lane.b32.xlu0 %v892, 16
      %v911 = vpop.permute.xlu0 %910
      %912 = vrot.lane.b32.xlu0 %v893, 16
      %v913 = vpop.permute.xlu0 %912
      %v914 = vsel %vm666, %v911, %v913
      %v915 = vsel %vm666, %v913, %v911
      %v916 = vmul.f32 %v915, %v672
      %v917 = vmul.f32 %v914, %v676
      %918 = vset.pattern.permute.xlu0 1
      %919 = vperm.xlu0 %918, %v894
      %v920 = vpop.permute.xlu0 %919
      %v922 = vmul.f32 %v916, %v920
      %v923 = vmul.f32 %v917, %v920
      %v924 = vadd.f32 %v908, %v922
      %v925 = vadd.f32 %v909, %v923
      %926 = vrot.lane.b32.xlu0 %v892, 15
      %v927 = vpop.permute.xlu0 %926
      %928 = vrot.lane.b32.xlu0 %v893, 15
      %v929 = vpop.permute.xlu0 %928
      %v930 = vsel %vm683, %v927, %v929
      %v931 = vsel %vm683, %v929, %v927
      %v932 = vmul.f32 %v931, %v689
      %v933 = vmul.f32 %v930, %v693
      %934 = vset.pattern.permute.xlu0 2
      %935 = vperm.xlu0 %934, %v894
      %v936 = vpop.permute.xlu0 %935
      %v938 = vmul.f32 %v932, %v936
      %v939 = vmul.f32 %v933, %v936
      %v940 = vadd.f32 %v924, %v938
      %v941 = vadd.f32 %v925, %v939
      %942 = vrot.lane.b32.xlu0 %v892, 1
      %v943 = vpop.permute.xlu0 %942
      %944 = vrot.lane.b32.xlu0 %v893, 1
      %v945 = vpop.permute.xlu0 %944
      %v946 = vsel %vm700, %v943, %v945
      %v947 = vsel %vm700, %v945, %v943
      %v948 = vmul.f32 %v947, %v706
      %v949 = vmul.f32 %v946, %v710
      %950 = vset.pattern.permute.xlu0 3
      %951 = vperm.xlu0 %950, %v894
      %v952 = vpop.permute.xlu0 %951
      %v954 = vmul.f32 %v948, %v952
      %v955 = vmul.f32 %v949, %v952
      %v956 = vadd.f32 %v940, %v954
      %v957 = vadd.f32 %v941, %v955
      %v958 = vmul.f32 %v892, %v716
      %v959 = vmul.f32 %v893, %v720
      %960 = vset.pattern.permute.xlu0 4
      %961 = vperm.xlu0 %960, %v894
      %v962 = vpop.permute.xlu0 %961
      %v964 = vmul.f32 %v958, %v962
      %v965 = vmul.f32 %v959, %v962
      %v966 = vadd.f32 %v956, %v964
      %v967 = vadd.f32 %v957, %v965
      %968 = vrot.lane.b32.xlu0 %v892, 127
      %v969 = vpop.permute.xlu0 %968
      %970 = vrot.lane.b32.xlu0 %v893, 127
      %v971 = vpop.permute.xlu0 %970
      %v972 = vsel %vm727, %v969, %v971
      %v973 = vsel %vm727, %v971, %v969
      %v974 = vmul.f32 %v972, %v733
      %v975 = vmul.f32 %v973, %v737
      %976 = vset.pattern.permute.xlu0 5
      %977 = vperm.xlu0 %976, %v894
      %v978 = vpop.permute.xlu0 %977
      %v980 = vmul.f32 %v974, %v978
      %v981 = vmul.f32 %v975, %v978
      %v982 = vadd.f32 %v966, %v980
      %v983 = vadd.f32 %v967, %v981
      %984 = vrot.lane.b32.xlu0 %v892, 113
      %v985 = vpop.permute.xlu0 %984
      %986 = vrot.lane.b32.xlu0 %v893, 113
      %v987 = vpop.permute.xlu0 %986
      %v988 = vsel %vm744, %v985, %v987
      %v989 = vsel %vm744, %v987, %v985
      %v990 = vmul.f32 %v988, %v750
      %v991 = vmul.f32 %v989, %v754
      %992 = vset.pattern.permute.xlu0 6
      %993 = vperm.xlu0 %992, %v894
      %v994 = vpop.permute.xlu0 %993
      %v996 = vmul.f32 %v990, %v994
      %v997 = vmul.f32 %v991, %v994
      %v998 = vadd.f32 %v982, %v996
      %v999 = vadd.f32 %v983, %v997
      %1000 = vrot.lane.b32.xlu0 %v892, 112
      %v1001 = vpop.permute.xlu0 %1000
      %1002 = vrot.lane.b32.xlu0 %v893, 112
      %v1003 = vpop.permute.xlu0 %1002
      %v1004 = vsel %vm761, %v1001, %v1003
      %v1005 = vsel %vm761, %v1003, %v1001
      %v1006 = vmul.f32 %v1004, %v767
      %v1007 = vmul.f32 %v1005, %v771
      %1008 = vset.pattern.permute.xlu0 7
      %1009 = vperm.xlu0 %1008, %v894
      %v1010 = vpop.permute.xlu0 %1009
      %v1012 = vmul.f32 %v1006, %v1010
      %v1013 = vmul.f32 %v1007, %v1010
      %v1014 = vadd.f32 %v998, %v1012
      %v1015 = vadd.f32 %v999, %v1013
      %1016 = vrot.lane.b32.xlu0 %v892, 111
      %v1017 = vpop.permute.xlu0 %1016
      %1018 = vrot.lane.b32.xlu0 %v893, 111
      %v1019 = vpop.permute.xlu0 %1018
      %v1020 = vsel %vm778, %v1017, %v1019
      %v1021 = vsel %vm778, %v1019, %v1017
      %v1022 = vmul.f32 %v1020, %v784
      %v1023 = vmul.f32 %v1021, %v788
      %1024 = vset.pattern.permute.xlu0 8
      %1025 = vperm.xlu0 %1024, %v894
      %v1026 = vpop.permute.xlu0 %1025
      %v1028 = vmul.f32 %v1022, %v1026
      %v1029 = vmul.f32 %v1023, %v1026
      %v1030 = vadd.f32 %v1014, %v1028
      %v1031 = vadd.f32 %v1015, %v1029
      %v1032 = vld [vmem:[%s6] sm:$0xff]
      %1034 = vset.pattern.permute.xlu0 0
      %1035 = vperm.xlu0 %1034, %v1032
      %v1036 = vpop.permute.xlu0 %1035
      %v1038 = vadd.f32 %v1030, %v1036
      %v1039 = vadd.f32 %v1031, %v1036
      %v1040 = vmul.f32 %v1038, 0.5
      %v1041 = vmul.f32 %v1039, 0.5
      %v1042 = vmul.f32 %v1038, %v1038
      %v1043 = vmul.f32 %v1039, %v1039
      %v1044 = vmul.f32 %v1042, %v1038
      %v1045 = vmul.f32 %v1043, %v1039
      %v1046 = vmul.f32 %v1044, 0.044715
      %v1047 = vmul.f32 %v1045, 0.044715
      %v1048 = vadd.f32 %v1038, %v1046
      %v1049 = vadd.f32 %v1039, %v1047
      %v1050 = vmul.f32 %v1048, 0.7978846
      %v1051 = vmul.f32 %v1049, 0.7978846
      %v1052 = vtanh.pop %v1050
      %v1053 = vtanh.pop %v1051
      %v1054 = vadd.f32 %v1052, 1.0
      %v1055 = vadd.f32 %v1053, 1.0
      %v1056 = vmul.f32 %v1040, %v1054
      %v1057 = vmul.f32 %v1041, %v1055
      %v1058 = vld [vmem:[%s7] sm:$0xff]
      %1060 = vset.pattern.permute.xlu0 0
      %1061 = vperm.xlu0 %1060, %v1058
      %v1062 = vpop.permute.xlu0 %1061
      %v1064 = vmul.f32 %v1056, %v1062
      %v1065 = vmul.f32 %v1057, %v1062
      %v1066 = vld [vmem:[%s8] sm:$0xff]
      %1068 = vset.pattern.permute.xlu0 0
      %1069 = vperm.xlu0 %1068, %v1066
      %v1070 = vpop.permute.xlu0 %1069
      %v1072 = vadd.f32 %v1064, %v1070
      %v1073 = vadd.f32 %v1065, %v1070
      %v1074 = vadd.f32 %v1072, %v892
      %v1075 = vadd.f32 %v1073, %v893
      %v1076 = vld [vmem:[%s9] sm:$0xff]
      %v1077 = vld [vmem:[%s9 + $0x8] sm:$0xff]
      %v1078 = vld [vmem:[%s9 + $0x10] sm:$0xff]
      %v1079 = vld [vmem:[%s9 + $0x18] sm:$0xff]
      %v1080 = vld [vmem:[%s10] sm:$0xff]
      %v1081 = vld [vmem:[%s10 + $0x8] sm:$0xff]
      %v1082 = vld [vmem:[%s10 + $0x10] sm:$0xff]
      %v1083 = vld [vmem:[%s10 + $0x18] sm:$0xff]
      %1085 = vset.pattern.permute.xlu0 0
      %1086 = vperm.xlu0 %1085, %v1080
      %v1087 = vpop.permute.xlu0 %1086
      %1090 = vset.pattern.permute.xlu0 0
      %1091 = vperm.xlu0 %1090, %v1081
      %v1092 = vpop.permute.xlu0 %1091
      %1095 = vset.pattern.permute.xlu0 0
      %1096 = vperm.xlu0 %1095, %v1082
      %v1097 = vpop.permute.xlu0 %1096
      %1100 = vset.pattern.permute.xlu0 0
      %1101 = vperm.xlu0 %1100, %v1083
      %v1102 = vpop.permute.xlu0 %1101
      %vm1104 = vcmask 64512
      %v1106 = vsel %vm1104, %v1076, 0
      %v1109 = vsel %vm1104, %v1077, 0
      %v1112 = vsel %vm1104, %v1078, 0
      %v1115 = vsel %vm1104, %v1079, 0
      %1117 = vmatprep.subr.mxu0 0.0
      %1118 = vmatpush1.msra.mxu0 0.0
      %1119 = vmatprep.subr.mxu0 0.0
      %1120 = vmatpush1.msra.mxu0 0.0
      %1121 = vmatprep.subr.mxu0 0.0
      %1122 = vmatpush1.msra.mxu0 0.0
      %1123 = vmatprep.subr.mxu0 0.0
      %1124 = vmatpush1.msra.mxu0 0.0
      %1125 = vmatprep.subr.mxu0 0.0
      %1126 = vmatpush1.msra.mxu0 0.0
      %1127 = vmatprep.subr.mxu0 0.0
      %1128 = vmatpush1.msra.mxu0 0.0
      %1129 = vmatprep.subr.mxu0 0.0
      %1130 = vmatpush1.msra.mxu0 0.0
      %1131 = vmatprep.subr.mxu0 0.0
      %1132 = vmatpush1.msra.mxu0 0.0
      %1133 = vmatprep.subr.mxu0 0.0
      %1134 = vmatpush1.msra.mxu0 0.0
      %1135 = vmatprep.subr.mxu0 0.0
      %1136 = vmatpush1.msra.mxu0 0.0
      %1137 = vmatprep.subr.mxu0 0.0
      %1138 = vmatpush1.msra.mxu0 0.0
      %1139 = vmatprep.subr.mxu0 0.0
      %1140 = vmatpush1.msra.mxu0 0.0
      %1141 = vmatprep.subr.mxu0 0.0
      %1142 = vmatpush1.msra.mxu0 0.0
      %1143 = vmatprep.subr.mxu0 0.0
      %1144 = vmatpush1.msra.mxu0 0.0
      %1145 = vmatprep.subr.mxu0 0.0
      %1146 = vmatpush1.msra.mxu0 0.0
      %1147 = vmatprep.subr.mxu0 %v1075
      %1148 = vmatpush1.msra.mxu0 %v1074
      %1149 = vmatprep.subr.mxu0 0.0
      %1150 = vmatpush2.msra.mxu0 0.0
      %1151 = vmatprep.subr.mxu0 0.0
      %1152 = vmatpush2.msra.mxu0 0.0
      %1153 = vmatprep.subr.mxu0 0.0
      %1154 = vmatpush2.msra.mxu0 0.0
      %1155 = vmatprep.subr.mxu0 0.0
      %1156 = vmatpush2.msra.mxu0 0.0
      %1157 = vmatprep.subr.mxu0 0.0
      %1158 = vmatpush2.msra.mxu0 0.0
      %1159 = vmatprep.subr.mxu0 0.0
      %1160 = vmatpush2.msra.mxu0 0.0
      %1161 = vmatprep.subr.mxu0 0.0
      %1162 = vmatpush2.msra.mxu0 0.0
      %1163 = vmatprep.subr.mxu0 0.0
      %1164 = vmatpush2.msra.mxu0 0.0
      %1165 = vmatprep.subr.mxu0 0.0
      %1166 = vmatpush2.msra.mxu0 0.0
      %1167 = vmatprep.subr.mxu0 0.0
      %1168 = vmatpush2.msra.mxu0 0.0
      %1169 = vmatprep.subr.mxu0 0.0
      %1170 = vmatpush2.msra.mxu0 0.0
      %1171 = vmatprep.subr.mxu0 0.0
      %1172 = vmatpush2.msra.mxu0 0.0
      %1173 = vmatprep.subr.mxu0 0.0
      %1174 = vmatpush2.msra.mxu0 0.0
      %1175 = vmatprep.subr.mxu0 0.0
      %1176 = vmatpush2.msra.mxu0 0.0
      %1177 = vmatprep.subr.mxu0 0.0
      %1178 = vmatpush2.msra.mxu0 0.0
      %1179 = vmatprep.subr.mxu0 0.0
      %1180 = vmatpush2.msra.mxu0 0.0
      %1181 = vmatprep.mubr.f32.mxu0 0.0
      %1182 = vmatmul.mubr.f32.gmra.mxu0 %v1106
      %v1183 = vpop.f32.mrf.mxu0
      %v1184 = vadd.f32 %v1087, %v1183
      %v1185 = vpop.f32.mrf.mxu0
      %v1186 = vadd.f32 %v1087, %v1185
      %1187 = vmatprep.mubr.f32.mxu0 0.0
      %1188 = vmatmul.mubr.f32.gmra.mxu0 %v1109
      %v1189 = vpop.f32.mrf.mxu0
      %v1190 = vadd.f32 %v1092, %v1189
      %v1191 = vpop.f32.mrf.mxu0
      %v1192 = vadd.f32 %v1092, %v1191
      %1193 = vmatprep.mubr.f32.mxu0 0.0
      %1194 = vmatmul.mubr.f32.gmra.mxu0 %v1112
      %v1195 = vpop.f32.mrf.mxu0
      %v1196 = vadd.f32 %v1097, %v1195
      %v1197 = vpop.f32.mrf.mxu0
      %v1198 = vadd.f32 %v1097, %v1197
      %1199 = vmatprep.mubr.f32.mxu0 0.0
      %1200 = vmatmul.mubr.f32.gmra.mxu0 %v1115
      %v1201 = vpop.f32.mrf.mxu0
      %v1202 = vadd.f32 %v1102, %v1201
      %v1203 = vpop.f32.mrf.mxu0
      %v1204 = vadd.f32 %v1102, %v1203
      %1205 = vdwg.mxu0
      %v1206 = vmul.f32 %v1184, 0.5
      %v1207 = vmul.f32 %v1186, 0.5
      %v1208 = vmul.f32 %v1190, 0.5
      %v1209 = vmul.f32 %v1192, 0.5
      %v1210 = vmul.f32 %v1196, 0.5
      %v1211 = vmul.f32 %v1198, 0.5
      %v1212 = vmul.f32 %v1202, 0.5
      %v1213 = vmul.f32 %v1204, 0.5
      %v1214 = vmul.f32 %v1184, %v1184
      %v1215 = vmul.f32 %v1186, %v1186
      %v1216 = vmul.f32 %v1190, %v1190
      %v1217 = vmul.f32 %v1192, %v1192
      %v1218 = vmul.f32 %v1196, %v1196
      %v1219 = vmul.f32 %v1198, %v1198
      %v1220 = vmul.f32 %v1202, %v1202
      %v1221 = vmul.f32 %v1204, %v1204
      %v1222 = vmul.f32 %v1214, %v1184
      %v1223 = vmul.f32 %v1215, %v1186
      %v1224 = vmul.f32 %v1216, %v1190
      %v1225 = vmul.f32 %v1217, %v1192
      %v1226 = vmul.f32 %v1218, %v1196
      %v1227 = vmul.f32 %v1219, %v1198
      %v1228 = vmul.f32 %v1220, %v1202
      %v1229 = vmul.f32 %v1221, %v1204
      %v1230 = vmul.f32 %v1222, 0.044715
      %v1231 = vmul.f32 %v1223, 0.044715
      %v1232 = vmul.f32 %v1224, 0.044715
      %v1233 = vmul.f32 %v1225, 0.044715
      %v1234 = vmul.f32 %v1226, 0.044715
      %v1235 = vmul.f32 %v1227, 0.044715
      %v1236 = vmul.f32 %v1228, 0.044715
      %v1237 = vmul.f32 %v1229, 0.044715
      %v1238 = vadd.f32 %v1184, %v1230
      %v1239 = vadd.f32 %v1186, %v1231
      %v1240 = vadd.f32 %v1190, %v1232
      %v1241 = vadd.f32 %v1192, %v1233
      %v1242 = vadd.f32 %v1196, %v1234
      %v1243 = vadd.f32 %v1198, %v1235
      %v1244 = vadd.f32 %v1202, %v1236
      %v1245 = vadd.f32 %v1204, %v1237
      %v1246 = vmul.f32 %v1238, 0.7978846
      %v1247 = vmul.f32 %v1239, 0.7978846
      %v1248 = vmul.f32 %v1240, 0.7978846
      %v1249 = vmul.f32 %v1241, 0.7978846
      %v1250 = vmul.f32 %v1242, 0.7978846
      %v1251 = vmul.f32 %v1243, 0.7978846
      %v1252 = vmul.f32 %v1244, 0.7978846
      %v1253 = vmul.f32 %v1245, 0.7978846
      %v1254 = vtanh.pop %v1246
      %v1255 = vtanh.pop %v1247
      %v1256 = vtanh.pop %v1248
      %v1257 = vtanh.pop %v1249
      %v1258 = vtanh.pop %v1250
      %v1259 = vtanh.pop %v1251
      %v1260 = vtanh.pop %v1252
      %v1261 = vtanh.pop %v1253
      %v1262 = vadd.f32 %v1254, 1.0
      %v1263 = vadd.f32 %v1255, 1.0
      %v1264 = vadd.f32 %v1256, 1.0
      %v1265 = vadd.f32 %v1257, 1.0
      %v1266 = vadd.f32 %v1258, 1.0
      %v1267 = vadd.f32 %v1259, 1.0
      %v1268 = vadd.f32 %v1260, 1.0
      %v1269 = vadd.f32 %v1261, 1.0
      %v1270 = vmul.f32 %v1206, %v1262
      %v1271 = vmul.f32 %v1207, %v1263
      %v1272 = vmul.f32 %v1208, %v1264
      %v1273 = vmul.f32 %v1209, %v1265
      %v1274 = vmul.f32 %v1210, %v1266
      %v1275 = vmul.f32 %v1211, %v1267
      %v1276 = vmul.f32 %v1212, %v1268
      %v1277 = vmul.f32 %v1213, %v1269
      %v1278 = vld [vmem:[%s11] sm:$0xff]
      %v1279 = vld [vmem:[%s11 + $0x8] sm:$0xff]
      %v1280 = vld [vmem:[%s11 + $0x10] sm:$0xff]
      %v1281 = vld [vmem:[%s11 + $0x18] sm:$0xff]
      %1283 = vset.pattern.permute.xlu0 0
      %1284 = vperm.xlu0 %1283, %v1278
      %v1285 = vpop.permute.xlu0 %1284
      %1288 = vset.pattern.permute.xlu0 0
      %1289 = vperm.xlu0 %1288, %v1279
      %v1290 = vpop.permute.xlu0 %1289
      %1293 = vset.pattern.permute.xlu0 0
      %1294 = vperm.xlu0 %1293, %v1280
      %v1295 = vpop.permute.xlu0 %1294
      %1298 = vset.pattern.permute.xlu0 0
      %1299 = vperm.xlu0 %1298, %v1281
      %v1300 = vpop.permute.xlu0 %1299
      %v1302 = vmul.f32 %v1270, %v1285
      %v1303 = vmul.f32 %v1271, %v1285
      %v1304 = vmul.f32 %v1272, %v1290
      %v1305 = vmul.f32 %v1273, %v1290
      %v1306 = vmul.f32 %v1274, %v1295
      %v1307 = vmul.f32 %v1275, %v1295
      %v1308 = vmul.f32 %v1276, %v1300
      %v1309 = vmul.f32 %v1277, %v1300
      %v1310 = vld [vmem:[%s12] sm:$0xff]
      %v1311 = vld [vmem:[%s12 + $0x8] sm:$0xff]
      %v1312 = vld [vmem:[%s12 + $0x10] sm:$0xff]
      %v1313 = vld [vmem:[%s12 + $0x18] sm:$0xff]
      %1315 = vset.pattern.permute.xlu0 0
      %1316 = vperm.xlu0 %1315, %v1310
      %v1317 = vpop.permute.xlu0 %1316
      %1320 = vset.pattern.permute.xlu0 0
      %1321 = vperm.xlu0 %1320, %v1311
      %v1322 = vpop.permute.xlu0 %1321
      %1325 = vset.pattern.permute.xlu0 0
      %1326 = vperm.xlu0 %1325, %v1312
      %v1327 = vpop.permute.xlu0 %1326
      %1330 = vset.pattern.permute.xlu0 0
      %1331 = vperm.xlu0 %1330, %v1313
      %v1332 = vpop.permute.xlu0 %1331
      %v1334 = vadd.f32 %v1302, %v1317
      %v1335 = vadd.f32 %v1303, %v1317
      %v1336 = vadd.f32 %v1304, %v1322
      %v1337 = vadd.f32 %v1305, %v1322
      %v1338 = vadd.f32 %v1306, %v1327
      %v1339 = vadd.f32 %v1307, %v1327
      %v1340 = vadd.f32 %v1308, %v1332
      %v1341 = vadd.f32 %v1309, %v1332
      %v1342 = vld [vmem:[%s13] sm:$0xff]
      %v1343 = vld [vmem:[%s14] sm:$0xff]
      %1345 = vset.pattern.permute.xlu0 0
      %1346 = vperm.xlu0 %1345, %v1343
      %v1347 = vpop.permute.xlu0 %1346
      %vm1349 = vcmask 261120
      %v1351 = vsel %vm1349, %v1342, 0
      %1353 = vmatprep.subr.mxu0 0.0
      %1354 = vmatpush1.msra.mxu0 0.0
      %1355 = vmatprep.subr.mxu0 0.0
      %1356 = vmatpush1.msra.mxu0 0.0
      %1357 = vmatprep.subr.mxu0 0.0
      %1358 = vmatpush1.msra.mxu0 0.0
      %1359 = vmatprep.subr.mxu0 0.0
      %1360 = vmatpush1.msra.mxu0 0.0
      %1361 = vmatprep.subr.mxu0 0.0
      %1362 = vmatpush1.msra.mxu0 0.0
      %1363 = vmatprep.subr.mxu0 0.0
      %1364 = vmatpush1.msra.mxu0 0.0
      %1365 = vmatprep.subr.mxu0 0.0
      %1366 = vmatpush1.msra.mxu0 0.0
      %1367 = vmatprep.subr.mxu0 0.0
      %1368 = vmatpush1.msra.mxu0 0.0
      %1369 = vmatprep.subr.mxu0 0.0
      %1370 = vmatpush1.msra.mxu0 0.0
      %1371 = vmatprep.subr.mxu0 0.0
      %1372 = vmatpush1.msra.mxu0 0.0
      %1373 = vmatprep.subr.mxu0 0.0
      %1374 = vmatpush1.msra.mxu0 0.0
      %1375 = vmatprep.subr.mxu0 0.0
      %1376 = vmatpush1.msra.mxu0 0.0
      %1377 = vmatprep.subr.mxu0 %v1341
      %1378 = vmatpush1.msra.mxu0 %v1340
      %1379 = vmatprep.subr.mxu0 %v1339
      %1380 = vmatpush1.msra.mxu0 %v1338
      %1381 = vmatprep.subr.mxu0 %v1337
      %1382 = vmatpush1.msra.mxu0 %v1336
      %1383 = vmatprep.subr.mxu0 %v1335
      %1384 = vmatpush1.msra.mxu0 %v1334
      %1385 = vmatprep.subr.mxu0 0.0
      %1386 = vmatpush2.msra.mxu0 0.0
      %1387 = vmatprep.subr.mxu0 0.0
      %1388 = vmatpush2.msra.mxu0 0.0
      %1389 = vmatprep.subr.mxu0 0.0
      %1390 = vmatpush2.msra.mxu0 0.0
      %1391 = vmatprep.subr.mxu0 0.0
      %1392 = vmatpush2.msra.mxu0 0.0
      %1393 = vmatprep.subr.mxu0 0.0
      %1394 = vmatpush2.msra.mxu0 0.0
      %1395 = vmatprep.subr.mxu0 0.0
      %1396 = vmatpush2.msra.mxu0 0.0
      %1397 = vmatprep.subr.mxu0 0.0
      %1398 = vmatpush2.msra.mxu0 0.0
      %1399 = vmatprep.subr.mxu0 0.0
      %1400 = vmatpush2.msra.mxu0 0.0
      %1401 = vmatprep.subr.mxu0 0.0
      %1402 = vmatpush2.msra.mxu0 0.0
      %1403 = vmatprep.subr.mxu0 0.0
      %1404 = vmatpush2.msra.mxu0 0.0
      %1405 = vmatprep.subr.mxu0 0.0
      %1406 = vmatpush2.msra.mxu0 0.0
      %1407 = vmatprep.subr.mxu0 0.0
      %1408 = vmatpush2.msra.mxu0 0.0
      %1409 = vmatprep.subr.mxu0 0.0
      %1410 = vmatpush2.msra.mxu0 0.0
      %1411 = vmatprep.subr.mxu0 0.0
      %1412 = vmatpush2.msra.mxu0 0.0
      %1413 = vmatprep.subr.mxu0 0.0
      %1414 = vmatpush2.msra.mxu0 0.0
      %1415 = vmatprep.subr.mxu0 0.0
      %1416 = vmatpush2.msra.mxu0 0.0
      %1417 = vmatprep.mubr.f32.mxu0 0.0
      %1418 = vmatmul.mubr.f32.gmra.mxu0 %v1351
      %v1419 = vpop.f32.mrf.mxu0
      %v1420 = vadd.f32 %v1347, %v1419
      %v1421 = vpop.f32.mrf.mxu0
      %v1422 = vadd.f32 %v1347, %v1421
      %1423 = vdwg.mxu0
      %v1424 = vmul.f32 %v1420, 0.5
      %v1425 = vmul.f32 %v1422, 0.5
      %v1426 = vmul.f32 %v1420, %v1420
      %v1427 = vmul.f32 %v1422, %v1422
      %v1428 = vmul.f32 %v1426, %v1420
      %v1429 = vmul.f32 %v1427, %v1422
      %v1430 = vmul.f32 %v1428, 0.044715
      %v1431 = vmul.f32 %v1429, 0.044715
      %v1432 = vadd.f32 %v1420, %v1430
      %v1433 = vadd.f32 %v1422, %v1431
      %v1434 = vmul.f32 %v1432, 0.7978846
      %v1435 = vmul.f32 %v1433, 0.7978846
      %v1436 = vtanh.pop %v1434
      %v1437 = vtanh.pop %v1435
      %v1438 = vadd.f32 %v1436, 1.0
      %v1439 = vadd.f32 %v1437, 1.0
      %v1440 = vmul.f32 %v1424, %v1438
      %v1441 = vmul.f32 %v1425, %v1439
      %v1442 = vld [vmem:[%s15] sm:$0xff]
      %1444 = vset.pattern.permute.xlu0 0
      %1445 = vperm.xlu0 %1444, %v1442
      %v1446 = vpop.permute.xlu0 %1445
      %v1448 = vmul.f32 %v1440, %v1446
      %v1449 = vmul.f32 %v1441, %v1446
      %v1450 = vld [vmem:[%s16] sm:$0xff]
      %1452 = vset.pattern.permute.xlu0 0
      %1453 = vperm.xlu0 %1452, %v1450
      %v1454 = vpop.permute.xlu0 %1453
      %v1456 = vadd.f32 %v1448, %v1454
      %v1457 = vadd.f32 %v1449, %v1454
      %v1458 = vld [vmem:[%s17] sm:$0xff]
      %1459 = vrot.lane.b32.xlu0 %v1456, 17
      %v1460 = vpop.permute.xlu0 %1459
      %1461 = vrot.lane.b32.xlu0 %v1457, 17
      %v1462 = vpop.permute.xlu0 %1461
      %v1463 = vsel %vm649, %v1460, %v1462
      %v1464 = vsel %vm649, %v1462, %v1460
      %v1465 = vmul.f32 %v1464, %v655
      %v1466 = vmul.f32 %v1463, %v659
      %1467 = vrot.lane.b32.xlu0 %v1456, 16
      %v1468 = vpop.permute.xlu0 %1467
      %1469 = vrot.lane.b32.xlu0 %v1457, 16
      %v1470 = vpop.permute.xlu0 %1469
      %v1471 = vsel %vm666, %v1468, %v1470
      %v1472 = vsel %vm666, %v1470, %v1468
      %v1473 = vmul.f32 %v1472, %v672
      %v1474 = vmul.f32 %v1471, %v676
      %1475 = vrot.lane.b32.xlu0 %v1456, 15
      %v1476 = vpop.permute.xlu0 %1475
      %1477 = vrot.lane.b32.xlu0 %v1457, 15
      %v1478 = vpop.permute.xlu0 %1477
      %v1479 = vsel %vm683, %v1476, %v1478
      %v1480 = vsel %vm683, %v1478, %v1476
      %v1481 = vmul.f32 %v1480, %v689
      %v1482 = vmul.f32 %v1479, %v693
      %1483 = vrot.lane.b32.xlu0 %v1456, 1
      %v1484 = vpop.permute.xlu0 %1483
      %1485 = vrot.lane.b32.xlu0 %v1457, 1
      %v1486 = vpop.permute.xlu0 %1485
      %v1487 = vsel %vm700, %v1484, %v1486
      %v1488 = vsel %vm700, %v1486, %v1484
      %v1489 = vmul.f32 %v1488, %v706
      %v1490 = vmul.f32 %v1487, %v710
      %v1491 = vmul.f32 %v1456, %v716
      %v1492 = vmul.f32 %v1457, %v720
      %1493 = vrot.lane.b32.xlu0 %v1456, 127
      %v1494 = vpop.permute.xlu0 %1493
      %1495 = vrot.lane.b32.xlu0 %v1457, 127
      %v1496 = vpop.permute.xlu0 %1495
      %v1497 = vsel %vm727, %v1494, %v1496
      %v1498 = vsel %vm727, %v1496, %v1494
      %v1499 = vmul.f32 %v1497, %v733
      %v1500 = vmul.f32 %v1498, %v737
      %1501 = vrot.lane.b32.xlu0 %v1456, 113
      %v1502 = vpop.permute.xlu0 %1501
      %1503 = vrot.lane.b32.xlu0 %v1457, 113
      %v1504 = vpop.permute.xlu0 %1503
      %v1505 = vsel %vm744, %v1502, %v1504
      %v1506 = vsel %vm744, %v1504, %v1502
      %v1507 = vmul.f32 %v1505, %v750
      %v1508 = vmul.f32 %v1506, %v754
      %1509 = vrot.lane.b32.xlu0 %v1456, 112
      %v1510 = vpop.permute.xlu0 %1509
      %1511 = vrot.lane.b32.xlu0 %v1457, 112
      %v1512 = vpop.permute.xlu0 %1511
      %v1513 = vsel %vm761, %v1510, %v1512
      %v1514 = vsel %vm761, %v1512, %v1510
      %v1515 = vmul.f32 %v1513, %v767
      %v1516 = vmul.f32 %v1514, %v771
      %1517 = vrot.lane.b32.xlu0 %v1456, 111
      %v1518 = vpop.permute.xlu0 %1517
      %1519 = vrot.lane.b32.xlu0 %v1457, 111
      %v1520 = vpop.permute.xlu0 %1519
      %v1521 = vsel %vm778, %v1518, %v1520
      %v1522 = vsel %vm778, %v1520, %v1518
      %v1523 = vmul.f32 %v1521, %v784
      %v1524 = vmul.f32 %v1522, %v788
      %v1526 = vsel %vm791, %v1458, 0
      %1528 = vmatprep.subr.mxu0 0.0
      %1529 = vmatpush1.msra.mxu0 0.0
      %1530 = vmatprep.subr.mxu0 0.0
      %1531 = vmatpush1.msra.mxu0 0.0
      %1532 = vmatprep.subr.mxu0 0.0
      %1533 = vmatpush1.msra.mxu0 0.0
      %1534 = vmatprep.subr.mxu0 0.0
      %1535 = vmatpush1.msra.mxu0 0.0
      %1536 = vmatprep.subr.mxu0 0.0
      %1537 = vmatpush1.msra.mxu0 0.0
      %1538 = vmatprep.subr.mxu0 0.0
      %1539 = vmatpush1.msra.mxu0 0.0
      %1540 = vmatprep.subr.mxu0 0.0
      %1541 = vmatpush1.msra.mxu0 0.0
      %1542 = vmatprep.subr.mxu0 %v1524
      %1543 = vmatpush1.msra.mxu0 %v1523
      %1544 = vmatprep.subr.mxu0 %v1516
      %1545 = vmatpush1.msra.mxu0 %v1515
      %1546 = vmatprep.subr.mxu0 %v1508
      %1547 = vmatpush1.msra.mxu0 %v1507
      %1548 = vmatprep.subr.mxu0 %v1500
      %1549 = vmatpush1.msra.mxu0 %v1499
      %1550 = vmatprep.subr.mxu0 %v1492
      %1551 = vmatpush1.msra.mxu0 %v1491
      %1552 = vmatprep.subr.mxu0 %v1490
      %1553 = vmatpush1.msra.mxu0 %v1489
      %1554 = vmatprep.subr.mxu0 %v1482
      %1555 = vmatpush1.msra.mxu0 %v1481
      %1556 = vmatprep.subr.mxu0 %v1474
      %1557 = vmatpush1.msra.mxu0 %v1473
      %1558 = vmatprep.subr.mxu0 %v1466
      %1559 = vmatpush1.msra.mxu0 %v1465
      %1560 = vmatprep.subr.mxu0 0.0
      %1561 = vmatpush2.msra.mxu0 0.0
      %1562 = vmatprep.subr.mxu0 0.0
      %1563 = vmatpush2.msra.mxu0 0.0
      %1564 = vmatprep.subr.mxu0 0.0
      %1565 = vmatpush2.msra.mxu0 0.0
      %1566 = vmatprep.subr.mxu0 0.0
      %1567 = vmatpush2.msra.mxu0 0.0
      %1568 = vmatprep.subr.mxu0 0.0
      %1569 = vmatpush2.msra.mxu0 0.0
      %1570 = vmatprep.subr.mxu0 0.0
      %1571 = vmatpush2.msra.mxu0 0.0
      %1572 = vmatprep.subr.mxu0 0.0
      %1573 = vmatpush2.msra.mxu0 0.0
      %1574 = vmatprep.subr.mxu0 0.0
      %1575 = vmatpush2.msra.mxu0 0.0
      %1576 = vmatprep.subr.mxu0 0.0
      %1577 = vmatpush2.msra.mxu0 0.0
      %1578 = vmatprep.subr.mxu0 0.0
      %1579 = vmatpush2.msra.mxu0 0.0
      %1580 = vmatprep.subr.mxu0 0.0
      %1581 = vmatpush2.msra.mxu0 0.0
      %1582 = vmatprep.subr.mxu0 0.0
      %1583 = vmatpush2.msra.mxu0 0.0
      %1584 = vmatprep.subr.mxu0 0.0
      %1585 = vmatpush2.msra.mxu0 0.0
      %1586 = vmatprep.subr.mxu0 0.0
      %1587 = vmatpush2.msra.mxu0 0.0
      %1588 = vmatprep.subr.mxu0 0.0
      %1589 = vmatpush2.msra.mxu0 0.0
      %1590 = vmatprep.subr.mxu0 0.0
      %1591 = vmatpush2.msra.mxu0 0.0
      %1592 = vmatprep.mubr.f32.mxu0 0.0
      %1593 = vmatmul.mubr.f32.gmra.mxu0 %v1526
      %v1594 = vpop.f32.mrf.mxu0
      %v1595 = vadd.f32 0.0, %v1594
      %v1596 = vpop.f32.mrf.mxu0
      %v1597 = vadd.f32 0.0, %v1596
      %1598 = vdwg.mxu0
      %v1599 = vld [vmem:[%s18] sm:$0xff]
      %1601 = vset.pattern.permute.xlu0 0
      %1602 = vperm.xlu0 %1601, %v1599
      %v1603 = vpop.permute.xlu0 %1602
      %v1605 = vmul.f32 %v1595, %v1603
      %v1606 = vmul.f32 %v1597, %v1603
      %v1607 = vld [vmem:[%s19] sm:$0xff]
      %1609 = vset.pattern.permute.xlu0 0
      %1610 = vperm.xlu0 %1609, %v1607
      %v1611 = vpop.permute.xlu0 %1610
      %v1613 = vadd.f32 %v1605, %v1611
      %v1614 = vadd.f32 %v1606, %v1611
      %v1615 = vsub.f32 0.0, %v1613
      %v1616 = vsub.f32 0.0, %v1614
      %v1617 = vmul.f32 %v1615, 1.442695
      %v1618 = vpow.pop %v1617
      %v1619 = vmul.f32 %v1616, 1.442695
      %v1620 = vpow.pop %v1619
      %v1621 = vadd.f32 %v1618, 1.0
      %v1622 = vadd.f32 %v1620, 1.0
      %v1623 = vrcp.pop %v1621
      %v1624 = vrcp.pop %v1622
      %v1625 = vmul.f32 %v1613, %v1623
      %v1626 = vmul.f32 %v1614, %v1624
      %v1627 = vpack.c.bf16 %v1625, %v1625
      %v1628 = vpack.c.bf16 %v1626, %v1626
      %v1631 = vunpack.c.l.b16 %v1627
      %v1632 = vunpack.c.l.b16 %v1628
      %v1633 = vpack.c.b16 %v1632, %v1631
      %1635 = vst [vmem:[%s632] sm:$0xff] %v1633
      %p1636 = scmp.lt.s32.totalorder %s31, 1
      %s1637 = scalar_select %p1636, %s31, 1
      %s1638 = smul.addr %s1637, 2
      %s1639 = smul.addr %s1638, 4
      %s1640 = scalar_lea.vmem %s20, %s1639
      // Predicated region
      $region101: #{c2f_cmunextb_forward.4} parent=99 // pred_check
        %p1641 = pneg %p474
      $region102: #{c2f_cmunextb_forward.4} parent=99 // pred_check_branch
        %1643 = sbr.rel (%p1641) target = $region104
      $region103: #{c2f_cmunextb_forward.4} parent=99 // pred_region
        _
      $region104: #{c2f_cmunextb_forward.4} parent=99 // pred_fallthru
        _
    $region100: #{c2f_cmunextb_forward.4} parent=5 // pred_fallthru
      _
    %p1644 = scmp.le.s32.totalorder 2, %s26
    // Predicated region
    $region105: #{c2f_cmunextb_forward.4} parent=5 // pred_check
      %p1645 = pneg %p1644
    $region106: #{c2f_cmunextb_forward.4} parent=5 // pred_check_branch
      %1647 = sbr.rel (%p1645) target = $region108
    $region107: #{c2f_cmunextb_forward.4} parent=5 // pred_region
      %s1648 = ssub.s32 %s26, 2
      // Predicated region
      $region109: #{c2f_cmunextb_forward.4} parent=107 // pred_check
        %p1649 = pneg %p480
      $region110: #{c2f_cmunextb_forward.4} parent=107 // pred_check_branch
        %1651 = sbr.rel (%p1649) target = $region112
      $region111: #{c2f_cmunextb_forward.4} parent=107 // pred_region
        %p1652 = scmp.lt.s32.totalorder %s32, 1
        %s1653 = scalar_select %p1652, %s32, 1
        %s1654 = smul.addr %s1653, 2
        %s1655 = smul.addr %s1654, 4
        %s1656 = scalar_lea.vmem %s20, %s1655
      $region112: #{c2f_cmunextb_forward.4} parent=107 // pred_fallthru
        _
    $region108: #{c2f_cmunextb_forward.4} parent=5 // pred_fallthru
      _
  $region6: #{c2f_cmunextb_forward.4} parent=0 // loop_footer
    %s30 = sadd.s32 1, %s26
  $region7: #{c2f_cmunextb_forward.4} parent=0 // loop_footer_branch
    %25 = sbr.rel target = $region3
  $region8: #{c2f_cmunextb_forward.4} parent=0 // loop_exit
    _

</llo_original>
